<compile_context>
chip_gen: v6e
topology: v6e:2x2x1
jax: 0.10.0
libtpu: 0.0.40
codegen_flags: <defaults>
</compile_context>

<pallas_src>
import functools
import math

import jax
import jax.numpy as jnp
from jax.experimental import pallas as pl
from jax.experimental.pallas import tpu as pltpu


# --------------------------------------------------------------------------------------
# Shared math (used both in-kernel and by the pure-jnp reference)
# --------------------------------------------------------------------------------------
def _layernorm(x, g, b, eps=1e-5):
    mu = jnp.mean(x, axis=-1, keepdims=True)
    xc = x - mu
    var = jnp.mean(xc * xc, axis=-1, keepdims=True)
    return xc * jax.lax.rsqrt(var + eps) * g + b


def _mha_reference(q_in, k_in, v_in, wq, bq, wk, bk, wv, bv, wo, bo, nhead):
    """nn.MultiheadAttention forward on 2-D (seq, d_model) operands (one batch element)."""
    _, d = q_in.shape
    dh = d // nhead
    scale = 1.0 / math.sqrt(dh)
    Q = jnp.dot(q_in, wq) + bq
    K = jnp.dot(k_in, wk) + bk
    V = jnp.dot(v_in, wv) + bv
    heads = []
    for h in range(nhead):
        sl = slice(h * dh, (h + 1) * dh)
        s = jnp.dot(Q[:, sl] * scale, K[:, sl].T)
        s = s - jnp.max(s, axis=-1, keepdims=True)
        p = jnp.exp(s)
        p = p / jnp.sum(p, axis=-1, keepdims=True)
        heads.append(jnp.dot(p, V[:, sl]))
    o = jnp.concatenate(heads, axis=-1)
    return jnp.dot(o, wo) + bo


def reference_forward(tgt, memory, query_pos, pos, P, nhead):
    (sa_wq, sa_bq, sa_wk, sa_bk, sa_wv, sa_bv, sa_wo, sa_bo,
     ca_wq, ca_bq, ca_wk, ca_bk, ca_wv, ca_bv, ca_wo, ca_bo,
     w1, b1, w2, b2,
     n1g, n1b, n2g, n2b, n3g, n3b) = P
    outs = []
    B = tgt.shape[1]
    for b in range(B):
        t, m = tgt[:, b], memory[:, b]
        qp, ps = query_pos[:, b], pos[:, b]
        q = t + qp
        t2 = _mha_reference(q, q, t, sa_wq, sa_bq, sa_wk, sa_bk, sa_wv, sa_bv,
                            sa_wo, sa_bo, nhead)
        t = _layernorm(t + t2, n1g, n1b)
        t2 = _mha_reference(t + qp, m + ps, m, ca_wq, ca_bq, ca_wk, ca_bk, ca_wv, ca_bv,
                            ca_wo, ca_bo, nhead)
        t = _layernorm(t + t2, n2g, n2b)
        h = jnp.maximum(jnp.dot(t, w1) + b1, 0.0)
        t2 = jnp.dot(h, w2) + b2
        t = _layernorm(t + t2, n3g, n3b)
        outs.append(t)
    return jnp.stack(outs, axis=1)


# --------------------------------------------------------------------------------------
# Kernel-side helpers
# --------------------------------------------------------------------------------------
def _mxu_dot(a, b):
    """Matmul with bf16 operands at the MXU boundary, f32 accumulation."""
    return jnp.dot(a.astype(jnp.bfloat16), b.astype(jnp.bfloat16),
                   preferred_element_type=jnp.float32)


def _mha(xq, xk, xv, wq_ref, wk_ref, wv_ref, wo_ref, bqkv, bo, BB, Tq, Tk, nhead):
    """Multi-head attention with per-head projection weights.

    xq: (BB*Tq, d), xk/xv: (BB*Tk, d) f32.  Weight refs are (H, d, dh) / (H, dh, d) bf16 so head
    split/merge are leading-axis indexes; the head merge is folded into the output projection
    (acc += o_h @ Wo[h]).  The 1/sqrt(dh) scale is already folded into Wq / bq.  bqkv is a
    (3*H, 1, dh) f32 value [q biases | k biases | v biases].  Heads are a static unroll, so the
    independent per-head matmul chains interleave under the LLO scheduler.
    """
    d = xq.shape[-1]
    dh = d // nhead
    xq_b = xq.astype(jnp.bfloat16)
    xk_b = xk.astype(jnp.bfloat16)
    xv_b = xv.astype(jnp.bfloat16)

    acc = jnp.zeros((BB * Tq, d), jnp.float32)
    for h in range(nhead):
        Qh = jnp.dot(xq_b, wq_ref[h], preferred_element_type=jnp.float32) + bqkv[0 * nhead + h]
        Kh = jnp.dot(xk_b, wk_ref[h], preferred_element_type=jnp.float32) + bqkv[1 * nhead + h]
        Vh = jnp.dot(xv_b, wv_ref[h], preferred_element_type=jnp.float32) + bqkv[2 * nhead + h]
        Qh = Qh.reshape(BB, Tq, dh).astype(jnp.bfloat16)     # leading split: free
        Kh = Kh.reshape(BB, Tk, dh).astype(jnp.bfloat16)
        Vh = Vh.reshape(BB, Tk, dh).astype(jnp.bfloat16)

        s = jnp.einsum('bqd,bkd->bqk', Qh, Kh, preferred_element_type=jnp.float32)
        s = s - jnp.max(s, axis=-1, keepdims=True)
        e = jnp.exp(s)
        p = e * pl.reciprocal(jnp.sum(e, axis=-1, keepdims=True), approx=True)
        o = jnp.einsum('bqk,bkd->bqd', p.astype(jnp.bfloat16), Vh,
                       preferred_element_type=jnp.float32)    # (BB, Tq, dh)

        # head merge folded into the output projection (no concat): acc += o_h @ Wo[h]
        acc = acc + jnp.dot(o.reshape(BB * Tq, dh).astype(jnp.bfloat16), wo_ref[h],
                            preferred_element_type=jnp.float32)
    return acc + bo


# --------------------------------------------------------------------------------------
# Pallas kernel: full decoder layer (self-attn -> cross-attn -> FFN, post-norm), whole batch
# block per grid step.
# --------------------------------------------------------------------------------------
def decoder_layer_kernel(
    tgt_ref, mem_ref, qpos_ref, pos_ref,
    sa_wq_ref, sa_wk_ref, sa_wv_ref, sa_wo_ref, sa_bqkv_ref,
    ca_wq_ref, ca_wk_ref, ca_wv_ref, ca_wo_ref, ca_bqkv_ref,
    w1_ref, b1_ref, w2_ref, vec_ref,
    out_ref, *, nhead,
):
    # TODO(synk): dropout layers are identity (eval-mode semantics); forward_post
    # (normalize_before=False) and divide_norm=False only; attn/key-padding masks are not
    # implemented (module is exercised with mask=None).
    BB, T, d = tgt_ref.shape
    S = mem_ref.shape[1]

    # ---- hoist all small vector params before the first matmul ----
    vec = vec_ref[...]                    # (9, d) f32, row-sliced only (no lane offsets)
    sa_bo, ca_bo, b2 = vec[0:1], vec[1:2], vec[2:3]
    n1g, n1b = vec[3:4], vec[4:5]
    n2g, n2b = vec[5:6], vec[6:7]
    n3g, n3b = vec[7:8], vec[8:9]
    sa_bqkv = sa_bqkv_ref[...]            # (3*H, 1, dh) f32
    ca_bqkv = ca_bqkv_ref[...]
    b1 = b1_ref[...]                      # (1, dff) f32

    # ---- batch folded into M: (BB, L, d) -> (BB*L, d) (leading merge: free) ----
    tgt = tgt_ref[...].reshape(BB * T, d)
    qpos = qpos_ref[...].reshape(BB * T, d)
    mem = mem_ref[...].reshape(BB * S, d)
    pos = pos_ref[...].reshape(BB * S, d)

    # ---- self-attention: q = k = tgt + query_pos, value = tgt ----
    q_in = tgt + qpos
    sa = _mha(q_in, q_in, tgt,
              sa_wq_ref, sa_wk_ref, sa_wv_ref, sa_wo_ref, sa_bqkv, sa_bo,
              BB, T, T, nhead)
    x = _layernorm(tgt + sa, n1g, n1b)

    # ---- cross-attention: q = tgt + query_pos, k = memory + pos, value = memory ----
    ca = _mha(x + qpos, mem + pos, mem,
              ca_wq_ref, ca_wk_ref, ca_wv_ref, ca_wo_ref, ca_bqkv, ca_bo,
              BB, T, S, nhead)
    x = _layernorm(x + ca, n2g, n2b)

    # ---- feed-forward (relu) ----
    h = jnp.maximum(_mxu_dot(x, w1_ref[...]) + b1, 0.0)
    y = _mxu_dot(h, w2_ref[...]) + b2
    x = _layernorm(x + y, n3g, n3b)

    # d=32-lane store is masked regardless of layout at this width; negligible here.
    out_ref[...] = x.reshape(BB, T, d).astype(out_ref.dtype)


# --------------------------------------------------------------------------------------
# Parameter packing (done once, model-load time) + wrapper
# --------------------------------------------------------------------------------------
def pack_params(params, nhead):
    (sa_wq, sa_bq, sa_wk, sa_bk, sa_wv, sa_bv, sa_wo, sa_bo,
     ca_wq, ca_bq, ca_wk, ca_bk, ca_wv, ca_bv, ca_wo, ca_bo,
     w1, b1, w2, b2,
     n1g, n1b, n2g, n2b, n3g, n3b) = params
    d = sa_wq.shape[0]
    assert d % nhead == 0, "d_model must be divisible by nhead"
    dh = d // nhead
    scale = 1.0 / math.sqrt(dh)
    bf16, f32 = jnp.bfloat16, jnp.float32

    def in_proj(w):    # (d, d) math layout -> per-head (H, d, dh): head split done at pack time
        return jnp.transpose(w.reshape(d, nhead, dh), (1, 0, 2)).astype(bf16)

    def out_proj(w):   # (d, d) -> (H, dh, d): head merge folds into per-head output projection
        return w.reshape(nhead, dh, d).astype(bf16)

    def qkv_bias(bq, bk, bv):   # (1,d) x3 -> (3*H, 1, dh), row-indexed only in the kernel
        return jnp.concatenate(
            [b.reshape(nhead, 1, dh) for b in (bq, bk, bv)], axis=0).astype(f32)

    sa = (in_proj(sa_wq * scale), in_proj(sa_wk), in_proj(sa_wv), out_proj(sa_wo),
          qkv_bias(sa_bq * scale, sa_bk, sa_bv))
    ca = (in_proj(ca_wq * scale), in_proj(ca_wk), in_proj(ca_wv), out_proj(ca_wo),
          qkv_bias(ca_bq * scale, ca_bk, ca_bv))
    vec = jnp.concatenate([sa_bo, ca_bo, b2, n1g, n1b, n2g, n2b, n3g, n3b],
                          axis=0).astype(f32)                                   # (9, d)
    return (*sa, *ca, w1.astype(bf16), b1.astype(f32), w2.astype(bf16), vec)


def _param_spec(p):
    nd = p.ndim
    return pl.BlockSpec(p.shape, lambda i: (0,) * nd)


def transformer_decoder_layer(tgt, memory, query_pos, pos, packed, *, nhead,
                              num_batch_blocks=1):
    """tgt/query_pos: (T, B, d); memory/pos: (S, B, d).  Returns (T, B, d).

    num_batch_blocks=1 (default) folds the whole batch into a single grid step (best on
    single-TC v5e/v6e); on v7x use num_batch_blocks=2 to shard across the two TensorCores.
    """
    T, B, d = tgt.shape
    S = memory.shape[0]
    assert d % nhead == 0, "d_model must be divisible by nhead"
    assert B % num_batch_blocks == 0, "batch must divide num_batch_blocks"
    BB = B // num_batch_blocks

    (sa_wq, sa_wk, sa_wv, sa_wo, sa_bqkv,
     ca_wq, ca_wk, ca_wv, ca_wo, ca_bqkv,
     w1, b1, w2, vec) = packed
    param_list = (sa_wq, sa_wk, sa_wv, sa_wo, sa_bqkv,
                  ca_wq, ca_wk, ca_wv, ca_wo, ca_bqkv, w1, b1, w2, vec)

    # Batch-major slabs; blocks satisfy the (8,128) rule because the trailing block dims equal
    # the full array dims.
    tgt_b = jnp.transpose(tgt, (1, 0, 2))
    mem_b = jnp.transpose(memory, (1, 0, 2))
    qpos_b = jnp.transpose(query_pos, (1, 0, 2))
    pos_b = jnp.transpose(pos, (1, 0, 2))

    def data_spec(L):
        return pl.BlockSpec((BB, L, d), lambda i: (i, 0, 0))

    in_specs = ([data_spec(T), data_spec(S), data_spec(T), data_spec(S)]
                + [_param_spec(p) for p in param_list])

    out = pl.pallas_call(
        functools.partial(decoder_layer_kernel, nhead=nhead),
        out_shape=jax.ShapeDtypeStruct((B, T, d), tgt.dtype),
        grid_spec=pltpu.PrefetchScalarGridSpec(
            num_scalar_prefetch=0,
            grid=(num_batch_blocks,),
            in_specs=in_specs,
            out_specs=pl.BlockSpec((BB, T, d), lambda i: (i, 0, 0)),
        ),
        compiler_params=pltpu.CompilerParams(dimension_semantics=("parallel",)),
    )(tgt_b, mem_b, qpos_b, pos_b, *param_list)

    return jnp.transpose(out, (1, 0, 2))


# --------------------------------------------------------------------------------------
# Main
# --------------------------------------------------------------------------------------
if __name__ == "__main__":
    d_model, nhead, dim_feedforward = 32, 4, 64
    T, S, B = 8, 16, 2

    root = jax.random.PRNGKey(0)
    kdata, kparam = jax.random.split(root)

    dk = jax.random.split(kdata, 4)
    tgt = jax.random.normal(dk[0], (T, B, d_model), jnp.float32)
    memory = jax.random.normal(dk[1], (S, B, d_model), jnp.float32)
    query_pos = jax.random.normal(dk[2], (T, B, d_model), jnp.float32)
    pos = jax.random.normal(dk[3], (S, B, d_model), jnp.float32)

    pk = jax.random.split(kparam, 32)

    def nrm(k, shape, scale=0.05):
        return (scale * jax.random.normal(k, shape)).astype(jnp.float32)

    d, f = d_model, dim_feedforward
    params = [
        # self-attention in/out projections (math layout: x @ W + b)
        nrm(pk[0], (d, d)), nrm(pk[1], (1, d)),
        nrm(pk[2], (d, d)), nrm(pk[3], (1, d)),
        nrm(pk[4], (d, d)), nrm(pk[5], (1, d)),
        nrm(pk[6], (d, d)), nrm(pk[7], (1, d)),
        # cross-attention
        nrm(pk[8], (d, d)), nrm(pk[9], (1, d)),
        nrm(pk[10], (d, d)), nrm(pk[11], (1, d)),
        nrm(pk[12], (d, d)), nrm(pk[13], (1, d)),
        nrm(pk[14], (d, d)), nrm(pk[15], (1, d)),
        # FFN
        nrm(pk[16], (d, f)), nrm(pk[17], (1, f)),
        nrm(pk[18], (f, d)), nrm(pk[19], (1, d)),
        # LayerNorm 1/2/3 (gamma ~ 1, beta ~ 0 with small perturbation)
        1.0 + nrm(pk[20], (1, d)), nrm(pk[21], (1, d)),
        1.0 + nrm(pk[22], (1, d)), nrm(pk[23], (1, d)),
        1.0 + nrm(pk[24], (1, d)), nrm(pk[25], (1, d)),
    ]

    packed = pack_params(params, nhead)
    fwd = jax.jit(functools.partial(transformer_decoder_layer, nhead=nhead))
    out = fwd(tgt, memory, query_pos, pos, packed)
    out = jax.block_until_ready(out)

    ref = reference_forward(tgt, memory, query_pos, pos, params, nhead)
    ref = jax.block_until_ready(ref)

    assert out.shape == (T, B, d_model)
    # bf16 MXU operands + approximate softmax reciprocal vs. the pure-f32 reference
    # -> looser tolerance (stats / accumulation stay f32, so drift is small).
    assert jnp.allclose(out, ref, rtol=2e-2, atol=2e-2), "mismatch vs reference"

    print("KERNEL_OK")
</pallas_src>

<mosaic_0001>
module attributes {stable_mosaic.version = 11 : i64} {
  func.func @decoder_layer_kernel(%arg0: i32, %arg1: memref<2x8x32xf32, #tpu.memory_space<vmem>>, %arg2: memref<2x16x32xf32, #tpu.memory_space<vmem>>, %arg3: memref<2x8x32xf32, #tpu.memory_space<vmem>>, %arg4: memref<2x16x32xf32, #tpu.memory_space<vmem>>, %arg5: memref<4x32x8xbf16, #tpu.memory_space<vmem>>, %arg6: memref<4x32x8xbf16, #tpu.memory_space<vmem>>, %arg7: memref<4x32x8xbf16, #tpu.memory_space<vmem>>, %arg8: memref<4x8x32xbf16, #tpu.memory_space<vmem>>, %arg9: memref<12x1x8xf32, #tpu.memory_space<vmem>>, %arg10: memref<4x32x8xbf16, #tpu.memory_space<vmem>>, %arg11: memref<4x32x8xbf16, #tpu.memory_space<vmem>>, %arg12: memref<4x32x8xbf16, #tpu.memory_space<vmem>>, %arg13: memref<4x8x32xbf16, #tpu.memory_space<vmem>>, %arg14: memref<12x1x8xf32, #tpu.memory_space<vmem>>, %arg15: memref<32x64xbf16, #tpu.memory_space<vmem>>, %arg16: memref<1x64xf32, #tpu.memory_space<vmem>>, %arg17: memref<64x32xbf16, #tpu.memory_space<vmem>>, %arg18: memref<9x32xf32, #tpu.memory_space<vmem>>, %arg19: memref<2x8x32xf32, #tpu.memory_space<vmem>>) attributes {dimension_semantics = [#tpu.dimension_semantics<parallel>], iteration_bounds = array<i64: 1>, scalar_prefetch = 0 : i64, scratch_operands = 0 : i64, tpu.core_type = #tpu.core_type<tc>, window_params = [{transform_indices = @transform_0, window_bounds = array<i64: 2, 8, 32>}, {transform_indices = @transform_1, window_bounds = array<i64: 2, 16, 32>}, {transform_indices = @transform_2, window_bounds = array<i64: 2, 8, 32>}, {transform_indices = @transform_3, window_bounds = array<i64: 2, 16, 32>}, {pipeline_mode = #tpu.pipeline_mode<synchronous>, transform_indices = @transform_4, window_bounds = array<i64: 4, 32, 8>}, {pipeline_mode = #tpu.pipeline_mode<synchronous>, transform_indices = @transform_5, window_bounds = array<i64: 4, 32, 8>}, {pipeline_mode = #tpu.pipeline_mode<synchronous>, transform_indices = @transform_6, window_bounds = array<i64: 4, 32, 8>}, {pipeline_mode = #tpu.pipeline_mode<synchronous>, transform_indices = @transform_7, window_bounds = array<i64: 4, 8, 32>}, {pipeline_mode = #tpu.pipeline_mode<synchronous>, transform_indices = @transform_8, window_bounds = array<i64: 12, 1, 8>}, {pipeline_mode = #tpu.pipeline_mode<synchronous>, transform_indices = @transform_9, window_bounds = array<i64: 4, 32, 8>}, {pipeline_mode = #tpu.pipeline_mode<synchronous>, transform_indices = @transform_10, window_bounds = array<i64: 4, 32, 8>}, {pipeline_mode = #tpu.pipeline_mode<synchronous>, transform_indices = @transform_11, window_bounds = array<i64: 4, 32, 8>}, {pipeline_mode = #tpu.pipeline_mode<synchronous>, transform_indices = @transform_12, window_bounds = array<i64: 4, 8, 32>}, {pipeline_mode = #tpu.pipeline_mode<synchronous>, transform_indices = @transform_13, window_bounds = array<i64: 12, 1, 8>}, {pipeline_mode = #tpu.pipeline_mode<synchronous>, transform_indices = @transform_14, window_bounds = array<i64: 32, 64>}, {pipeline_mode = #tpu.pipeline_mode<synchronous>, transform_indices = @transform_15, window_bounds = array<i64: 1, 64>}, {pipeline_mode = #tpu.pipeline_mode<synchronous>, transform_indices = @transform_16, window_bounds = array<i64: 64, 32>}, {pipeline_mode = #tpu.pipeline_mode<synchronous>, transform_indices = @transform_17, window_bounds = array<i64: 9, 32>}, {transform_indices = @transform_18, window_bounds = array<i64: 2, 8, 32>}]} {
    %c0 = arith.constant 0 : index
    %c0_0 = arith.constant 0 : index
    %0 = vector.load %arg18[%c0, %c0_0] : memref<9x32xf32, #tpu.memory_space<vmem>>, vector<9x32xf32>
    %1 = vector.extract_strided_slice %0 {offsets = [0, 0], sizes = [1, 32], strides = [1, 1]} : vector<9x32xf32> to vector<1x32xf32>
    %2 = vector.extract_strided_slice %0 {offsets = [1, 0], sizes = [1, 32], strides = [1, 1]} : vector<9x32xf32> to vector<1x32xf32>
    %3 = vector.extract_strided_slice %0 {offsets = [2, 0], sizes = [1, 32], strides = [1, 1]} : vector<9x32xf32> to vector<1x32xf32>
    %4 = vector.extract_strided_slice %0 {offsets = [3, 0], sizes = [1, 32], strides = [1, 1]} : vector<9x32xf32> to vector<1x32xf32>
    %5 = vector.extract_strided_slice %0 {offsets = [4, 0], sizes = [1, 32], strides = [1, 1]} : vector<9x32xf32> to vector<1x32xf32>
    %6 = vector.extract_strided_slice %0 {offsets = [5, 0], sizes = [1, 32], strides = [1, 1]} : vector<9x32xf32> to vector<1x32xf32>
    %7 = vector.extract_strided_slice %0 {offsets = [6, 0], sizes = [1, 32], strides = [1, 1]} : vector<9x32xf32> to vector<1x32xf32>
    %8 = vector.extract_strided_slice %0 {offsets = [7, 0], sizes = [1, 32], strides = [1, 1]} : vector<9x32xf32> to vector<1x32xf32>
    %9 = vector.extract_strided_slice %0 {offsets = [8, 0], sizes = [1, 32], strides = [1, 1]} : vector<9x32xf32> to vector<1x32xf32>
    %c0_1 = arith.constant 0 : index
    %c0_2 = arith.constant 0 : index
    %c0_3 = arith.constant 0 : index
    %10 = vector.load %arg9[%c0_1, %c0_2, %c0_3] : memref<12x1x8xf32, #tpu.memory_space<vmem>>, vector<12x1x8xf32>
    %c0_4 = arith.constant 0 : index
    %c0_5 = arith.constant 0 : index
    %c0_6 = arith.constant 0 : index
    %11 = vector.load %arg14[%c0_4, %c0_5, %c0_6] : memref<12x1x8xf32, #tpu.memory_space<vmem>>, vector<12x1x8xf32>
    %c0_7 = arith.constant 0 : index
    %c0_8 = arith.constant 0 : index
    %12 = vector.load %arg16[%c0_7, %c0_8] : memref<1x64xf32, #tpu.memory_space<vmem>>, vector<1x64xf32>
    %c0_9 = arith.constant 0 : index
    %c0_10 = arith.constant 0 : index
    %c0_11 = arith.constant 0 : index
    %13 = vector.load %arg1[%c0_9, %c0_10, %c0_11] : memref<2x8x32xf32, #tpu.memory_space<vmem>>, vector<2x8x32xf32>
    %14 = vector.shape_cast %13 : vector<2x8x32xf32> to vector<16x32xf32>
    %c0_12 = arith.constant 0 : index
    %c0_13 = arith.constant 0 : index
    %c0_14 = arith.constant 0 : index
    %15 = vector.load %arg3[%c0_12, %c0_13, %c0_14] : memref<2x8x32xf32, #tpu.memory_space<vmem>>, vector<2x8x32xf32>
    %16 = vector.shape_cast %15 : vector<2x8x32xf32> to vector<16x32xf32>
    %c0_15 = arith.constant 0 : index
    %c0_16 = arith.constant 0 : index
    %c0_17 = arith.constant 0 : index
    %17 = vector.load %arg2[%c0_15, %c0_16, %c0_17] : memref<2x16x32xf32, #tpu.memory_space<vmem>>, vector<2x16x32xf32>
    %18 = vector.shape_cast %17 : vector<2x16x32xf32> to vector<32x32xf32>
    %c0_18 = arith.constant 0 : index
    %c0_19 = arith.constant 0 : index
    %c0_20 = arith.constant 0 : index
    %19 = vector.load %arg4[%c0_18, %c0_19, %c0_20] : memref<2x16x32xf32, #tpu.memory_space<vmem>>, vector<2x16x32xf32>
    %20 = vector.shape_cast %19 : vector<2x16x32xf32> to vector<32x32xf32>
    %21 = arith.addf %14, %16 : vector<16x32xf32>
    %22 = arith.truncf %21 : vector<16x32xf32> to vector<16x32xbf16>
    %23 = arith.truncf %21 : vector<16x32xf32> to vector<16x32xbf16>
    %24 = arith.truncf %14 : vector<16x32xf32> to vector<16x32xbf16>
    %cst = arith.constant 0.000000e+00 : f32
    %25 = vector.broadcast %cst : f32 to vector<16x32xf32>
    %c0_21 = arith.constant 0 : index
    %c0_22 = arith.constant 0 : index
    %c0_23 = arith.constant 0 : index
    %26 = vector.load %arg5[%c0_21, %c0_22, %c0_23] : memref<4x32x8xbf16, #tpu.memory_space<vmem>>, vector<1x32x8xbf16>
    %27 = vector.shape_cast %26 : vector<1x32x8xbf16> to vector<32x8xbf16>
    %cst_24 = arith.constant dense<0.000000e+00> : vector<16x8xf32>
    %28 = tpu.matmul %22, %27, %cst_24 {dimension_numbers = #tpu.dot_dimension_numbers<[1], [0], [0], [1], [0, 0, 1, 1], [], []>} : vector<16x32xbf16>, vector<32x8xbf16>, vector<16x8xf32> -> vector<16x8xf32>
    %29 = vector.extract_strided_slice %10 {offsets = [0, 0, 0], sizes = [1, 1, 8], strides = [1, 1, 1]} : vector<12x1x8xf32> to vector<1x1x8xf32>
    %30 = vector.shape_cast %29 : vector<1x1x8xf32> to vector<1x8xf32>
    %31 = vector.broadcast %30 : vector<1x8xf32> to vector<16x8xf32>
    %32 = arith.addf %28, %31 : vector<16x8xf32>
    %c0_25 = arith.constant 0 : index
    %c0_26 = arith.constant 0 : index
    %c0_27 = arith.constant 0 : index
    %33 = vector.load %arg6[%c0_25, %c0_26, %c0_27] : memref<4x32x8xbf16, #tpu.memory_space<vmem>>, vector<1x32x8xbf16>
    %34 = vector.shape_cast %33 : vector<1x32x8xbf16> to vector<32x8xbf16>
    %cst_28 = arith.constant dense<0.000000e+00> : vector<16x8xf32>
    %35 = tpu.matmul %23, %34, %cst_28 {dimension_numbers = #tpu.dot_dimension_numbers<[1], [0], [0], [1], [0, 0, 1, 1], [], []>} : vector<16x32xbf16>, vector<32x8xbf16>, vector<16x8xf32> -> vector<16x8xf32>
    %36 = vector.extract_strided_slice %10 {offsets = [4, 0, 0], sizes = [1, 1, 8], strides = [1, 1, 1]} : vector<12x1x8xf32> to vector<1x1x8xf32>
    %37 = vector.shape_cast %36 : vector<1x1x8xf32> to vector<1x8xf32>
    %38 = vector.broadcast %37 : vector<1x8xf32> to vector<16x8xf32>
    %39 = arith.addf %35, %38 : vector<16x8xf32>
    %c0_29 = arith.constant 0 : index
    %c0_30 = arith.constant 0 : index
    %c0_31 = arith.constant 0 : index
    %40 = vector.load %arg7[%c0_29, %c0_30, %c0_31] : memref<4x32x8xbf16, #tpu.memory_space<vmem>>, vector<1x32x8xbf16>
    %41 = vector.shape_cast %40 : vector<1x32x8xbf16> to vector<32x8xbf16>
    %cst_32 = arith.constant dense<0.000000e+00> : vector<16x8xf32>
    %42 = tpu.matmul %24, %41, %cst_32 {dimension_numbers = #tpu.dot_dimension_numbers<[1], [0], [0], [1], [0, 0, 1, 1], [], []>} : vector<16x32xbf16>, vector<32x8xbf16>, vector<16x8xf32> -> vector<16x8xf32>
    %43 = vector.extract_strided_slice %10 {offsets = [8, 0, 0], sizes = [1, 1, 8], strides = [1, 1, 1]} : vector<12x1x8xf32> to vector<1x1x8xf32>
    %44 = vector.shape_cast %43 : vector<1x1x8xf32> to vector<1x8xf32>
    %45 = vector.broadcast %44 : vector<1x8xf32> to vector<16x8xf32>
    %46 = arith.addf %42, %45 : vector<16x8xf32>
    %47 = vector.shape_cast %32 : vector<16x8xf32> to vector<2x8x8xf32>
    %48 = arith.truncf %47 : vector<2x8x8xf32> to vector<2x8x8xbf16>
    %49 = vector.shape_cast %39 : vector<16x8xf32> to vector<2x8x8xf32>
    %50 = arith.truncf %49 : vector<2x8x8xf32> to vector<2x8x8xbf16>
    %51 = vector.shape_cast %46 : vector<16x8xf32> to vector<2x8x8xf32>
    %52 = arith.truncf %51 : vector<2x8x8xf32> to vector<2x8x8xbf16>
    "tpu.trace_start"() <{level = 10 : i32, message = "bqd,bkd->bqk"}> : () -> ()
    %cst_33 = arith.constant dense<0.000000e+00> : vector<2x8x8xf32>
    %53 = tpu.matmul %48, %50, %cst_33 {dimension_numbers = #tpu.dot_dimension_numbers<[2], [2], [1], [1], [0, 0, 0, 1, 1, 1], [0], [0]>} : vector<2x8x8xbf16>, vector<2x8x8xbf16>, vector<2x8x8xf32> -> vector<2x8x8xf32>
    "tpu.trace_stop"() : () -> ()
    %cst_34 = arith.constant dense<0xFF800000> : vector<2x8xf32>
    %54 = vector.multi_reduction <maximumf>, %53, %cst_34 [2] : vector<2x8x8xf32> to vector<2x8xf32>
    %55 = vector.shape_cast %54 : vector<2x8xf32> to vector<2x8x1xf32>
    %56 = vector.broadcast %55 : vector<2x8x1xf32> to vector<2x8x8xf32>
    %57 = arith.subf %53, %56 : vector<2x8x8xf32>
    %58 = math.exp %57 : vector<2x8x8xf32>
    %cst_35 = arith.constant dense<0.000000e+00> : vector<2x8xf32>
    %59 = vector.multi_reduction <add>, %58, %cst_35 [2] : vector<2x8x8xf32> to vector<2x8xf32>
    %60 = vector.shape_cast %59 : vector<2x8xf32> to vector<2x8x1xf32>
    %61 = tpu.reciprocal %60 {approx = true} : vector<2x8x1xf32> -> vector<2x8x1xf32>
    %62 = vector.broadcast %61 : vector<2x8x1xf32> to vector<2x8x8xf32>
    %63 = arith.mulf %58, %62 : vector<2x8x8xf32>
    %64 = arith.truncf %63 : vector<2x8x8xf32> to vector<2x8x8xbf16>
    "tpu.trace_start"() <{level = 10 : i32, message = "bqk,bkd->bqd"}> : () -> ()
    %cst_36 = arith.constant dense<0.000000e+00> : vector<2x8x8xf32>
    %65 = tpu.matmul %64, %52, %cst_36 {dimension_numbers = #tpu.dot_dimension_numbers<[2], [1], [1], [2], [0, 0, 0, 1, 1, 2], [0], [0]>} : vector<2x8x8xbf16>, vector<2x8x8xbf16>, vector<2x8x8xf32> -> vector<2x8x8xf32>
    "tpu.trace_stop"() : () -> ()
    %66 = vector.shape_cast %65 : vector<2x8x8xf32> to vector<16x8xf32>
    %67 = arith.truncf %66 : vector<16x8xf32> to vector<16x8xbf16>
    %c0_37 = arith.constant 0 : index
    %c0_38 = arith.constant 0 : index
    %c0_39 = arith.constant 0 : index
    %68 = vector.load %arg8[%c0_37, %c0_38, %c0_39] : memref<4x8x32xbf16, #tpu.memory_space<vmem>>, vector<1x8x32xbf16>
    %69 = vector.shape_cast %68 : vector<1x8x32xbf16> to vector<8x32xbf16>
    %cst_40 = arith.constant dense<0.000000e+00> : vector<16x32xf32>
    %70 = tpu.matmul %67, %69, %cst_40 {dimension_numbers = #tpu.dot_dimension_numbers<[1], [0], [0], [1], [0, 0, 1, 1], [], []>} : vector<16x8xbf16>, vector<8x32xbf16>, vector<16x32xf32> -> vector<16x32xf32>
    %71 = arith.addf %25, %70 : vector<16x32xf32>
    %c1 = arith.constant 1 : index
    %c0_41 = arith.constant 0 : index
    %c0_42 = arith.constant 0 : index
    %72 = vector.load %arg5[%c1, %c0_41, %c0_42] : memref<4x32x8xbf16, #tpu.memory_space<vmem>>, vector<1x32x8xbf16>
    %73 = vector.shape_cast %72 : vector<1x32x8xbf16> to vector<32x8xbf16>
    %cst_43 = arith.constant dense<0.000000e+00> : vector<16x8xf32>
    %74 = tpu.matmul %22, %73, %cst_43 {dimension_numbers = #tpu.dot_dimension_numbers<[1], [0], [0], [1], [0, 0, 1, 1], [], []>} : vector<16x32xbf16>, vector<32x8xbf16>, vector<16x8xf32> -> vector<16x8xf32>
    %75 = vector.extract_strided_slice %10 {offsets = [1, 0, 0], sizes = [1, 1, 8], strides = [1, 1, 1]} : vector<12x1x8xf32> to vector<1x1x8xf32>
    %76 = vector.shape_cast %75 : vector<1x1x8xf32> to vector<1x8xf32>
    %77 = vector.broadcast %76 : vector<1x8xf32> to vector<16x8xf32>
    %78 = arith.addf %74, %77 : vector<16x8xf32>
    %c1_44 = arith.constant 1 : index
    %c0_45 = arith.constant 0 : index
    %c0_46 = arith.constant 0 : index
    %79 = vector.load %arg6[%c1_44, %c0_45, %c0_46] : memref<4x32x8xbf16, #tpu.memory_space<vmem>>, vector<1x32x8xbf16>
    %80 = vector.shape_cast %79 : vector<1x32x8xbf16> to vector<32x8xbf16>
    %cst_47 = arith.constant dense<0.000000e+00> : vector<16x8xf32>
    %81 = tpu.matmul %23, %80, %cst_47 {dimension_numbers = #tpu.dot_dimension_numbers<[1], [0], [0], [1], [0, 0, 1, 1], [], []>} : vector<16x32xbf16>, vector<32x8xbf16>, vector<16x8xf32> -> vector<16x8xf32>
    %82 = vector.extract_strided_slice %10 {offsets = [5, 0, 0], sizes = [1, 1, 8], strides = [1, 1, 1]} : vector<12x1x8xf32> to vector<1x1x8xf32>
    %83 = vector.shape_cast %82 : vector<1x1x8xf32> to vector<1x8xf32>
    %84 = vector.broadcast %83 : vector<1x8xf32> to vector<16x8xf32>
    %85 = arith.addf %81, %84 : vector<16x8xf32>
    %c1_48 = arith.constant 1 : index
    %c0_49 = arith.constant 0 : index
    %c0_50 = arith.constant 0 : index
    %86 = vector.load %arg7[%c1_48, %c0_49, %c0_50] : memref<4x32x8xbf16, #tpu.memory_space<vmem>>, vector<1x32x8xbf16>
    %87 = vector.shape_cast %86 : vector<1x32x8xbf16> to vector<32x8xbf16>
    %cst_51 = arith.constant dense<0.000000e+00> : vector<16x8xf32>
    %88 = tpu.matmul %24, %87, %cst_51 {dimension_numbers = #tpu.dot_dimension_numbers<[1], [0], [0], [1], [0, 0, 1, 1], [], []>} : vector<16x32xbf16>, vector<32x8xbf16>, vector<16x8xf32> -> vector<16x8xf32>
    %89 = vector.extract_strided_slice %10 {offsets = [9, 0, 0], sizes = [1, 1, 8], strides = [1, 1, 1]} : vector<12x1x8xf32> to vector<1x1x8xf32>
    %90 = vector.shape_cast %89 : vector<1x1x8xf32> to vector<1x8xf32>
    %91 = vector.broadcast %90 : vector<1x8xf32> to vector<16x8xf32>
    %92 = arith.addf %88, %91 : vector<16x8xf32>
    %93 = vector.shape_cast %78 : vector<16x8xf32> to vector<2x8x8xf32>
    %94 = arith.truncf %93 : vector<2x8x8xf32> to vector<2x8x8xbf16>
    %95 = vector.shape_cast %85 : vector<16x8xf32> to vector<2x8x8xf32>
    %96 = arith.truncf %95 : vector<2x8x8xf32> to vector<2x8x8xbf16>
    %97 = vector.shape_cast %92 : vector<16x8xf32> to vector<2x8x8xf32>
    %98 = arith.truncf %97 : vector<2x8x8xf32> to vector<2x8x8xbf16>
    "tpu.trace_start"() <{level = 10 : i32, message = "bqd,bkd->bqk"}> : () -> ()
    %cst_52 = arith.constant dense<0.000000e+00> : vector<2x8x8xf32>
    %99 = tpu.matmul %94, %96, %cst_52 {dimension_numbers = #tpu.dot_dimension_numbers<[2], [2], [1], [1], [0, 0, 0, 1, 1, 1], [0], [0]>} : vector<2x8x8xbf16>, vector<2x8x8xbf16>, vector<2x8x8xf32> -> vector<2x8x8xf32>
    "tpu.trace_stop"() : () -> ()
    %cst_53 = arith.constant dense<0xFF800000> : vector<2x8xf32>
    %100 = vector.multi_reduction <maximumf>, %99, %cst_53 [2] : vector<2x8x8xf32> to vector<2x8xf32>
    %101 = vector.shape_cast %100 : vector<2x8xf32> to vector<2x8x1xf32>
    %102 = vector.broadcast %101 : vector<2x8x1xf32> to vector<2x8x8xf32>
    %103 = arith.subf %99, %102 : vector<2x8x8xf32>
    %104 = math.exp %103 : vector<2x8x8xf32>
    %cst_54 = arith.constant dense<0.000000e+00> : vector<2x8xf32>
    %105 = vector.multi_reduction <add>, %104, %cst_54 [2] : vector<2x8x8xf32> to vector<2x8xf32>
    %106 = vector.shape_cast %105 : vector<2x8xf32> to vector<2x8x1xf32>
    %107 = tpu.reciprocal %106 {approx = true} : vector<2x8x1xf32> -> vector<2x8x1xf32>
    %108 = vector.broadcast %107 : vector<2x8x1xf32> to vector<2x8x8xf32>
    %109 = arith.mulf %104, %108 : vector<2x8x8xf32>
    %110 = arith.truncf %109 : vector<2x8x8xf32> to vector<2x8x8xbf16>
    "tpu.trace_start"() <{level = 10 : i32, message = "bqk,bkd->bqd"}> : () -> ()
    %cst_55 = arith.constant dense<0.000000e+00> : vector<2x8x8xf32>
    %111 = tpu.matmul %110, %98, %cst_55 {dimension_numbers = #tpu.dot_dimension_numbers<[2], [1], [1], [2], [0, 0, 0, 1, 1, 2], [0], [0]>} : vector<2x8x8xbf16>, vector<2x8x8xbf16>, vector<2x8x8xf32> -> vector<2x8x8xf32>
    "tpu.trace_stop"() : () -> ()
    %112 = vector.shape_cast %111 : vector<2x8x8xf32> to vector<16x8xf32>
    %113 = arith.truncf %112 : vector<16x8xf32> to vector<16x8xbf16>
    %c1_56 = arith.constant 1 : index
    %c0_57 = arith.constant 0 : index
    %c0_58 = arith.constant 0 : index
    %114 = vector.load %arg8[%c1_56, %c0_57, %c0_58] : memref<4x8x32xbf16, #tpu.memory_space<vmem>>, vector<1x8x32xbf16>
    %115 = vector.shape_cast %114 : vector<1x8x32xbf16> to vector<8x32xbf16>
    %cst_59 = arith.constant dense<0.000000e+00> : vector<16x32xf32>
    %116 = tpu.matmul %113, %115, %cst_59 {dimension_numbers = #tpu.dot_dimension_numbers<[1], [0], [0], [1], [0, 0, 1, 1], [], []>} : vector<16x8xbf16>, vector<8x32xbf16>, vector<16x32xf32> -> vector<16x32xf32>
    %117 = arith.addf %71, %116 : vector<16x32xf32>
    %c2 = arith.constant 2 : index
    %c0_60 = arith.constant 0 : index
    %c0_61 = arith.constant 0 : index
    %118 = vector.load %arg5[%c2, %c0_60, %c0_61] : memref<4x32x8xbf16, #tpu.memory_space<vmem>>, vector<1x32x8xbf16>
    %119 = vector.shape_cast %118 : vector<1x32x8xbf16> to vector<32x8xbf16>
    %cst_62 = arith.constant dense<0.000000e+00> : vector<16x8xf32>
    %120 = tpu.matmul %22, %119, %cst_62 {dimension_numbers = #tpu.dot_dimension_numbers<[1], [0], [0], [1], [0, 0, 1, 1], [], []>} : vector<16x32xbf16>, vector<32x8xbf16>, vector<16x8xf32> -> vector<16x8xf32>
    %121 = vector.extract_strided_slice %10 {offsets = [2, 0, 0], sizes = [1, 1, 8], strides = [1, 1, 1]} : vector<12x1x8xf32> to vector<1x1x8xf32>
    %122 = vector.shape_cast %121 : vector<1x1x8xf32> to vector<1x8xf32>
    %123 = vector.broadcast %122 : vector<1x8xf32> to vector<16x8xf32>
    %124 = arith.addf %120, %123 : vector<16x8xf32>
    %c2_63 = arith.constant 2 : index
    %c0_64 = arith.constant 0 : index
    %c0_65 = arith.constant 0 : index
    %125 = vector.load %arg6[%c2_63, %c0_64, %c0_65] : memref<4x32x8xbf16, #tpu.memory_space<vmem>>, vector<1x32x8xbf16>
    %126 = vector.shape_cast %125 : vector<1x32x8xbf16> to vector<32x8xbf16>
    %cst_66 = arith.constant dense<0.000000e+00> : vector<16x8xf32>
    %127 = tpu.matmul %23, %126, %cst_66 {dimension_numbers = #tpu.dot_dimension_numbers<[1], [0], [0], [1], [0, 0, 1, 1], [], []>} : vector<16x32xbf16>, vector<32x8xbf16>, vector<16x8xf32> -> vector<16x8xf32>
    %128 = vector.extract_strided_slice %10 {offsets = [6, 0, 0], sizes = [1, 1, 8], strides = [1, 1, 1]} : vector<12x1x8xf32> to vector<1x1x8xf32>
    %129 = vector.shape_cast %128 : vector<1x1x8xf32> to vector<1x8xf32>
    %130 = vector.broadcast %129 : vector<1x8xf32> to vector<16x8xf32>
    %131 = arith.addf %127, %130 : vector<16x8xf32>
    %c2_67 = arith.constant 2 : index
    %c0_68 = arith.constant 0 : index
    %c0_69 = arith.constant 0 : index
    %132 = vector.load %arg7[%c2_67, %c0_68, %c0_69] : memref<4x32x8xbf16, #tpu.memory_space<vmem>>, vector<1x32x8xbf16>
    %133 = vector.shape_cast %132 : vector<1x32x8xbf16> to vector<32x8xbf16>
    %cst_70 = arith.constant dense<0.000000e+00> : vector<16x8xf32>
    %134 = tpu.matmul %24, %133, %cst_70 {dimension_numbers = #tpu.dot_dimension_numbers<[1], [0], [0], [1], [0, 0, 1, 1], [], []>} : vector<16x32xbf16>, vector<32x8xbf16>, vector<16x8xf32> -> vector<16x8xf32>
    %135 = vector.extract_strided_slice %10 {offsets = [10, 0, 0], sizes = [1, 1, 8], strides = [1, 1, 1]} : vector<12x1x8xf32> to vector<1x1x8xf32>
    %136 = vector.shape_cast %135 : vector<1x1x8xf32> to vector<1x8xf32>
    %137 = vector.broadcast %136 : vector<1x8xf32> to vector<16x8xf32>
    %138 = arith.addf %134, %137 : vector<16x8xf32>
    %139 = vector.shape_cast %124 : vector<16x8xf32> to vector<2x8x8xf32>
    %140 = arith.truncf %139 : vector<2x8x8xf32> to vector<2x8x8xbf16>
    %141 = vector.shape_cast %131 : vector<16x8xf32> to vector<2x8x8xf32>
    %142 = arith.truncf %141 : vector<2x8x8xf32> to vector<2x8x8xbf16>
    %143 = vector.shape_cast %138 : vector<16x8xf32> to vector<2x8x8xf32>
    %144 = arith.truncf %143 : vector<2x8x8xf32> to vector<2x8x8xbf16>
    "tpu.trace_start"() <{level = 10 : i32, message = "bqd,bkd->bqk"}> : () -> ()
    %cst_71 = arith.constant dense<0.000000e+00> : vector<2x8x8xf32>
    %145 = tpu.matmul %140, %142, %cst_71 {dimension_numbers = #tpu.dot_dimension_numbers<[2], [2], [1], [1], [0, 0, 0, 1, 1, 1], [0], [0]>} : vector<2x8x8xbf16>, vector<2x8x8xbf16>, vector<2x8x8xf32> -> vector<2x8x8xf32>
    "tpu.trace_stop"() : () -> ()
    %cst_72 = arith.constant dense<0xFF800000> : vector<2x8xf32>
    %146 = vector.multi_reduction <maximumf>, %145, %cst_72 [2] : vector<2x8x8xf32> to vector<2x8xf32>
    %147 = vector.shape_cast %146 : vector<2x8xf32> to vector<2x8x1xf32>
    %148 = vector.broadcast %147 : vector<2x8x1xf32> to vector<2x8x8xf32>
    %149 = arith.subf %145, %148 : vector<2x8x8xf32>
    %150 = math.exp %149 : vector<2x8x8xf32>
    %cst_73 = arith.constant dense<0.000000e+00> : vector<2x8xf32>
    %151 = vector.multi_reduction <add>, %150, %cst_73 [2] : vector<2x8x8xf32> to vector<2x8xf32>
    %152 = vector.shape_cast %151 : vector<2x8xf32> to vector<2x8x1xf32>
    %153 = tpu.reciprocal %152 {approx = true} : vector<2x8x1xf32> -> vector<2x8x1xf32>
    %154 = vector.broadcast %153 : vector<2x8x1xf32> to vector<2x8x8xf32>
    %155 = arith.mulf %150, %154 : vector<2x8x8xf32>
    %156 = arith.truncf %155 : vector<2x8x8xf32> to vector<2x8x8xbf16>
    "tpu.trace_start"() <{level = 10 : i32, message = "bqk,bkd->bqd"}> : () -> ()
    %cst_74 = arith.constant dense<0.000000e+00> : vector<2x8x8xf32>
    %157 = tpu.matmul %156, %144, %cst_74 {dimension_numbers = #tpu.dot_dimension_numbers<[2], [1], [1], [2], [0, 0, 0, 1, 1, 2], [0], [0]>} : vector<2x8x8xbf16>, vector<2x8x8xbf16>, vector<2x8x8xf32> -> vector<2x8x8xf32>
    "tpu.trace_stop"() : () -> ()
    %158 = vector.shape_cast %157 : vector<2x8x8xf32> to vector<16x8xf32>
    %159 = arith.truncf %158 : vector<16x8xf32> to vector<16x8xbf16>
    %c2_75 = arith.constant 2 : index
    %c0_76 = arith.constant 0 : index
    %c0_77 = arith.constant 0 : index
    %160 = vector.load %arg8[%c2_75, %c0_76, %c0_77] : memref<4x8x32xbf16, #tpu.memory_space<vmem>>, vector<1x8x32xbf16>
    %161 = vector.shape_cast %160 : vector<1x8x32xbf16> to vector<8x32xbf16>
    %cst_78 = arith.constant dense<0.000000e+00> : vector<16x32xf32>
    %162 = tpu.matmul %159, %161, %cst_78 {dimension_numbers = #tpu.dot_dimension_numbers<[1], [0], [0], [1], [0, 0, 1, 1], [], []>} : vector<16x8xbf16>, vector<8x32xbf16>, vector<16x32xf32> -> vector<16x32xf32>
    %163 = arith.addf %117, %162 : vector<16x32xf32>
    %c3 = arith.constant 3 : index
    %c0_79 = arith.constant 0 : index
    %c0_80 = arith.constant 0 : index
    %164 = vector.load %arg5[%c3, %c0_79, %c0_80] : memref<4x32x8xbf16, #tpu.memory_space<vmem>>, vector<1x32x8xbf16>
    %165 = vector.shape_cast %164 : vector<1x32x8xbf16> to vector<32x8xbf16>
    %cst_81 = arith.constant dense<0.000000e+00> : vector<16x8xf32>
    %166 = tpu.matmul %22, %165, %cst_81 {dimension_numbers = #tpu.dot_dimension_numbers<[1], [0], [0], [1], [0, 0, 1, 1], [], []>} : vector<16x32xbf16>, vector<32x8xbf16>, vector<16x8xf32> -> vector<16x8xf32>
    %167 = vector.extract_strided_slice %10 {offsets = [3, 0, 0], sizes = [1, 1, 8], strides = [1, 1, 1]} : vector<12x1x8xf32> to vector<1x1x8xf32>
    %168 = vector.shape_cast %167 : vector<1x1x8xf32> to vector<1x8xf32>
    %169 = vector.broadcast %168 : vector<1x8xf32> to vector<16x8xf32>
    %170 = arith.addf %166, %169 : vector<16x8xf32>
    %c3_82 = arith.constant 3 : index
    %c0_83 = arith.constant 0 : index
    %c0_84 = arith.constant 0 : index
    %171 = vector.load %arg6[%c3_82, %c0_83, %c0_84] : memref<4x32x8xbf16, #tpu.memory_space<vmem>>, vector<1x32x8xbf16>
    %172 = vector.shape_cast %171 : vector<1x32x8xbf16> to vector<32x8xbf16>
    %cst_85 = arith.constant dense<0.000000e+00> : vector<16x8xf32>
    %173 = tpu.matmul %23, %172, %cst_85 {dimension_numbers = #tpu.dot_dimension_numbers<[1], [0], [0], [1], [0, 0, 1, 1], [], []>} : vector<16x32xbf16>, vector<32x8xbf16>, vector<16x8xf32> -> vector<16x8xf32>
    %174 = vector.extract_strided_slice %10 {offsets = [7, 0, 0], sizes = [1, 1, 8], strides = [1, 1, 1]} : vector<12x1x8xf32> to vector<1x1x8xf32>
    %175 = vector.shape_cast %174 : vector<1x1x8xf32> to vector<1x8xf32>
    %176 = vector.broadcast %175 : vector<1x8xf32> to vector<16x8xf32>
    %177 = arith.addf %173, %176 : vector<16x8xf32>
    %c3_86 = arith.constant 3 : index
    %c0_87 = arith.constant 0 : index
    %c0_88 = arith.constant 0 : index
    %178 = vector.load %arg7[%c3_86, %c0_87, %c0_88] : memref<4x32x8xbf16, #tpu.memory_space<vmem>>, vector<1x32x8xbf16>
    %179 = vector.shape_cast %178 : vector<1x32x8xbf16> to vector<32x8xbf16>
    %cst_89 = arith.constant dense<0.000000e+00> : vector<16x8xf32>
    %180 = tpu.matmul %24, %179, %cst_89 {dimension_numbers = #tpu.dot_dimension_numbers<[1], [0], [0], [1], [0, 0, 1, 1], [], []>} : vector<16x32xbf16>, vector<32x8xbf16>, vector<16x8xf32> -> vector<16x8xf32>
    %181 = vector.extract_strided_slice %10 {offsets = [11, 0, 0], sizes = [1, 1, 8], strides = [1, 1, 1]} : vector<12x1x8xf32> to vector<1x1x8xf32>
    %182 = vector.shape_cast %181 : vector<1x1x8xf32> to vector<1x8xf32>
    %183 = vector.broadcast %182 : vector<1x8xf32> to vector<16x8xf32>
    %184 = arith.addf %180, %183 : vector<16x8xf32>
    %185 = vector.shape_cast %170 : vector<16x8xf32> to vector<2x8x8xf32>
    %186 = arith.truncf %185 : vector<2x8x8xf32> to vector<2x8x8xbf16>
    %187 = vector.shape_cast %177 : vector<16x8xf32> to vector<2x8x8xf32>
    %188 = arith.truncf %187 : vector<2x8x8xf32> to vector<2x8x8xbf16>
    %189 = vector.shape_cast %184 : vector<16x8xf32> to vector<2x8x8xf32>
    %190 = arith.truncf %189 : vector<2x8x8xf32> to vector<2x8x8xbf16>
    "tpu.trace_start"() <{level = 10 : i32, message = "bqd,bkd->bqk"}> : () -> ()
    %cst_90 = arith.constant dense<0.000000e+00> : vector<2x8x8xf32>
    %191 = tpu.matmul %186, %188, %cst_90 {dimension_numbers = #tpu.dot_dimension_numbers<[2], [2], [1], [1], [0, 0, 0, 1, 1, 1], [0], [0]>} : vector<2x8x8xbf16>, vector<2x8x8xbf16>, vector<2x8x8xf32> -> vector<2x8x8xf32>
    "tpu.trace_stop"() : () -> ()
    %cst_91 = arith.constant dense<0xFF800000> : vector<2x8xf32>
    %192 = vector.multi_reduction <maximumf>, %191, %cst_91 [2] : vector<2x8x8xf32> to vector<2x8xf32>
    %193 = vector.shape_cast %192 : vector<2x8xf32> to vector<2x8x1xf32>
    %194 = vector.broadcast %193 : vector<2x8x1xf32> to vector<2x8x8xf32>
    %195 = arith.subf %191, %194 : vector<2x8x8xf32>
    %196 = math.exp %195 : vector<2x8x8xf32>
    %cst_92 = arith.constant dense<0.000000e+00> : vector<2x8xf32>
    %197 = vector.multi_reduction <add>, %196, %cst_92 [2] : vector<2x8x8xf32> to vector<2x8xf32>
    %198 = vector.shape_cast %197 : vector<2x8xf32> to vector<2x8x1xf32>
    %199 = tpu.reciprocal %198 {approx = true} : vector<2x8x1xf32> -> vector<2x8x1xf32>
    %200 = vector.broadcast %199 : vector<2x8x1xf32> to vector<2x8x8xf32>
    %201 = arith.mulf %196, %200 : vector<2x8x8xf32>
    %202 = arith.truncf %201 : vector<2x8x8xf32> to vector<2x8x8xbf16>
    "tpu.trace_start"() <{level = 10 : i32, message = "bqk,bkd->bqd"}> : () -> ()
    %cst_93 = arith.constant dense<0.000000e+00> : vector<2x8x8xf32>
    %203 = tpu.matmul %202, %190, %cst_93 {dimension_numbers = #tpu.dot_dimension_numbers<[2], [1], [1], [2], [0, 0, 0, 1, 1, 2], [0], [0]>} : vector<2x8x8xbf16>, vector<2x8x8xbf16>, vector<2x8x8xf32> -> vector<2x8x8xf32>
    "tpu.trace_stop"() : () -> ()
    %204 = vector.shape_cast %203 : vector<2x8x8xf32> to vector<16x8xf32>
    %205 = arith.truncf %204 : vector<16x8xf32> to vector<16x8xbf16>
    %c3_94 = arith.constant 3 : index
    %c0_95 = arith.constant 0 : index
    %c0_96 = arith.constant 0 : index
    %206 = vector.load %arg8[%c3_94, %c0_95, %c0_96] : memref<4x8x32xbf16, #tpu.memory_space<vmem>>, vector<1x8x32xbf16>
    %207 = vector.shape_cast %206 : vector<1x8x32xbf16> to vector<8x32xbf16>
    %cst_97 = arith.constant dense<0.000000e+00> : vector<16x32xf32>
    %208 = tpu.matmul %205, %207, %cst_97 {dimension_numbers = #tpu.dot_dimension_numbers<[1], [0], [0], [1], [0, 0, 1, 1], [], []>} : vector<16x8xbf16>, vector<8x32xbf16>, vector<16x32xf32> -> vector<16x32xf32>
    %209 = arith.addf %163, %208 : vector<16x32xf32>
    %210 = vector.broadcast %1 : vector<1x32xf32> to vector<16x32xf32>
    %211 = arith.addf %209, %210 : vector<16x32xf32>
    %212 = arith.addf %14, %211 : vector<16x32xf32>
    %cst_98 = arith.constant dense<0.000000e+00> : vector<16xf32>
    %213 = vector.multi_reduction <add>, %212, %cst_98 [1] : vector<16x32xf32> to vector<16xf32>
    %214 = vector.shape_cast %213 : vector<16xf32> to vector<16x1xf32>
    %cst_99 = arith.constant 3.200000e+01 : f32
    %215 = vector.broadcast %cst_99 : f32 to vector<16x1xf32>
    %216 = arith.divf %214, %215 : vector<16x1xf32>
    %217 = vector.broadcast %216 : vector<16x1xf32> to vector<16x32xf32>
    %218 = arith.subf %212, %217 : vector<16x32xf32>
    %219 = arith.mulf %218, %218 : vector<16x32xf32>
    %cst_100 = arith.constant dense<0.000000e+00> : vector<16xf32>
    %220 = vector.multi_reduction <add>, %219, %cst_100 [1] : vector<16x32xf32> to vector<16xf32>
    %221 = vector.shape_cast %220 : vector<16xf32> to vector<16x1xf32>
    %cst_101 = arith.constant 3.200000e+01 : f32
    %222 = vector.broadcast %cst_101 : f32 to vector<16x1xf32>
    %223 = arith.divf %221, %222 : vector<16x1xf32>
    %cst_102 = arith.constant 9.99999974E-6 : f32
    %224 = vector.broadcast %cst_102 : f32 to vector<16x1xf32>
    %225 = arith.addf %223, %224 : vector<16x1xf32>
    %226 = math.rsqrt %225 : vector<16x1xf32>
    %227 = vector.broadcast %226 : vector<16x1xf32> to vector<16x32xf32>
    %228 = arith.mulf %218, %227 : vector<16x32xf32>
    %229 = vector.broadcast %4 : vector<1x32xf32> to vector<16x32xf32>
    %230 = arith.mulf %228, %229 : vector<16x32xf32>
    %231 = vector.broadcast %5 : vector<1x32xf32> to vector<16x32xf32>
    %232 = arith.addf %230, %231 : vector<16x32xf32>
    %233 = arith.addf %232, %16 : vector<16x32xf32>
    %234 = arith.addf %18, %20 : vector<32x32xf32>
    %235 = arith.truncf %233 : vector<16x32xf32> to vector<16x32xbf16>
    %236 = arith.truncf %234 : vector<32x32xf32> to vector<32x32xbf16>
    %237 = arith.truncf %18 : vector<32x32xf32> to vector<32x32xbf16>
    %cst_103 = arith.constant 0.000000e+00 : f32
    %238 = vector.broadcast %cst_103 : f32 to vector<16x32xf32>
    %c0_104 = arith.constant 0 : index
    %c0_105 = arith.constant 0 : index
    %c0_106 = arith.constant 0 : index
    %239 = vector.load %arg10[%c0_104, %c0_105, %c0_106] : memref<4x32x8xbf16, #tpu.memory_space<vmem>>, vector<1x32x8xbf16>
    %240 = vector.shape_cast %239 : vector<1x32x8xbf16> to vector<32x8xbf16>
    %cst_107 = arith.constant dense<0.000000e+00> : vector<16x8xf32>
    %241 = tpu.matmul %235, %240, %cst_107 {dimension_numbers = #tpu.dot_dimension_numbers<[1], [0], [0], [1], [0, 0, 1, 1], [], []>} : vector<16x32xbf16>, vector<32x8xbf16>, vector<16x8xf32> -> vector<16x8xf32>
    %242 = vector.extract_strided_slice %11 {offsets = [0, 0, 0], sizes = [1, 1, 8], strides = [1, 1, 1]} : vector<12x1x8xf32> to vector<1x1x8xf32>
    %243 = vector.shape_cast %242 : vector<1x1x8xf32> to vector<1x8xf32>
    %244 = vector.broadcast %243 : vector<1x8xf32> to vector<16x8xf32>
    %245 = arith.addf %241, %244 : vector<16x8xf32>
    %c0_108 = arith.constant 0 : index
    %c0_109 = arith.constant 0 : index
    %c0_110 = arith.constant 0 : index
    %246 = vector.load %arg11[%c0_108, %c0_109, %c0_110] : memref<4x32x8xbf16, #tpu.memory_space<vmem>>, vector<1x32x8xbf16>
    %247 = vector.shape_cast %246 : vector<1x32x8xbf16> to vector<32x8xbf16>
    %cst_111 = arith.constant dense<0.000000e+00> : vector<32x8xf32>
    %248 = tpu.matmul %236, %247, %cst_111 {dimension_numbers = #tpu.dot_dimension_numbers<[1], [0], [0], [1], [0, 0, 1, 1], [], []>} : vector<32x32xbf16>, vector<32x8xbf16>, vector<32x8xf32> -> vector<32x8xf32>
    %249 = vector.extract_strided_slice %11 {offsets = [4, 0, 0], sizes = [1, 1, 8], strides = [1, 1, 1]} : vector<12x1x8xf32> to vector<1x1x8xf32>
    %250 = vector.shape_cast %249 : vector<1x1x8xf32> to vector<1x8xf32>
    %251 = vector.broadcast %250 : vector<1x8xf32> to vector<32x8xf32>
    %252 = arith.addf %248, %251 : vector<32x8xf32>
    %c0_112 = arith.constant 0 : index
    %c0_113 = arith.constant 0 : index
    %c0_114 = arith.constant 0 : index
    %253 = vector.load %arg12[%c0_112, %c0_113, %c0_114] : memref<4x32x8xbf16, #tpu.memory_space<vmem>>, vector<1x32x8xbf16>
    %254 = vector.shape_cast %253 : vector<1x32x8xbf16> to vector<32x8xbf16>
    %cst_115 = arith.constant dense<0.000000e+00> : vector<32x8xf32>
    %255 = tpu.matmul %237, %254, %cst_115 {dimension_numbers = #tpu.dot_dimension_numbers<[1], [0], [0], [1], [0, 0, 1, 1], [], []>} : vector<32x32xbf16>, vector<32x8xbf16>, vector<32x8xf32> -> vector<32x8xf32>
    %256 = vector.extract_strided_slice %11 {offsets = [8, 0, 0], sizes = [1, 1, 8], strides = [1, 1, 1]} : vector<12x1x8xf32> to vector<1x1x8xf32>
    %257 = vector.shape_cast %256 : vector<1x1x8xf32> to vector<1x8xf32>
    %258 = vector.broadcast %257 : vector<1x8xf32> to vector<32x8xf32>
    %259 = arith.addf %255, %258 : vector<32x8xf32>
    %260 = vector.shape_cast %245 : vector<16x8xf32> to vector<2x8x8xf32>
    %261 = arith.truncf %260 : vector<2x8x8xf32> to vector<2x8x8xbf16>
    %262 = vector.shape_cast %252 : vector<32x8xf32> to vector<2x16x8xf32>
    %263 = arith.truncf %262 : vector<2x16x8xf32> to vector<2x16x8xbf16>
    %264 = vector.shape_cast %259 : vector<32x8xf32> to vector<2x16x8xf32>
    %265 = arith.truncf %264 : vector<2x16x8xf32> to vector<2x16x8xbf16>
    "tpu.trace_start"() <{level = 10 : i32, message = "bqd,bkd->bqk"}> : () -> ()
    %cst_116 = arith.constant dense<0.000000e+00> : vector<2x8x16xf32>
    %266 = tpu.matmul %261, %263, %cst_116 {dimension_numbers = #tpu.dot_dimension_numbers<[2], [2], [1], [1], [0, 0, 0, 1, 1, 1], [0], [0]>} : vector<2x8x8xbf16>, vector<2x16x8xbf16>, vector<2x8x16xf32> -> vector<2x8x16xf32>
    "tpu.trace_stop"() : () -> ()
    %cst_117 = arith.constant dense<0xFF800000> : vector<2x8xf32>
    %267 = vector.multi_reduction <maximumf>, %266, %cst_117 [2] : vector<2x8x16xf32> to vector<2x8xf32>
    %268 = vector.shape_cast %267 : vector<2x8xf32> to vector<2x8x1xf32>
    %269 = vector.broadcast %268 : vector<2x8x1xf32> to vector<2x8x16xf32>
    %270 = arith.subf %266, %269 : vector<2x8x16xf32>
    %271 = math.exp %270 : vector<2x8x16xf32>
    %cst_118 = arith.constant dense<0.000000e+00> : vector<2x8xf32>
    %272 = vector.multi_reduction <add>, %271, %cst_118 [2] : vector<2x8x16xf32> to vector<2x8xf32>
    %273 = vector.shape_cast %272 : vector<2x8xf32> to vector<2x8x1xf32>
    %274 = tpu.reciprocal %273 {approx = true} : vector<2x8x1xf32> -> vector<2x8x1xf32>
    %275 = vector.broadcast %274 : vector<2x8x1xf32> to vector<2x8x16xf32>
    %276 = arith.mulf %271, %275 : vector<2x8x16xf32>
    %277 = arith.truncf %276 : vector<2x8x16xf32> to vector<2x8x16xbf16>
    "tpu.trace_start"() <{level = 10 : i32, message = "bqk,bkd->bqd"}> : () -> ()
    %cst_119 = arith.constant dense<0.000000e+00> : vector<2x8x8xf32>
    %278 = tpu.matmul %277, %265, %cst_119 {dimension_numbers = #tpu.dot_dimension_numbers<[2], [1], [1], [2], [0, 0, 0, 1, 1, 2], [0], [0]>} : vector<2x8x16xbf16>, vector<2x16x8xbf16>, vector<2x8x8xf32> -> vector<2x8x8xf32>
    "tpu.trace_stop"() : () -> ()
    %279 = vector.shape_cast %278 : vector<2x8x8xf32> to vector<16x8xf32>
    %280 = arith.truncf %279 : vector<16x8xf32> to vector<16x8xbf16>
    %c0_120 = arith.constant 0 : index
    %c0_121 = arith.constant 0 : index
    %c0_122 = arith.constant 0 : index
    %281 = vector.load %arg13[%c0_120, %c0_121, %c0_122] : memref<4x8x32xbf16, #tpu.memory_space<vmem>>, vector<1x8x32xbf16>
    %282 = vector.shape_cast %281 : vector<1x8x32xbf16> to vector<8x32xbf16>
    %cst_123 = arith.constant dense<0.000000e+00> : vector<16x32xf32>
    %283 = tpu.matmul %280, %282, %cst_123 {dimension_numbers = #tpu.dot_dimension_numbers<[1], [0], [0], [1], [0, 0, 1, 1], [], []>} : vector<16x8xbf16>, vector<8x32xbf16>, vector<16x32xf32> -> vector<16x32xf32>
    %284 = arith.addf %238, %283 : vector<16x32xf32>
    %c1_124 = arith.constant 1 : index
    %c0_125 = arith.constant 0 : index
    %c0_126 = arith.constant 0 : index
    %285 = vector.load %arg10[%c1_124, %c0_125, %c0_126] : memref<4x32x8xbf16, #tpu.memory_space<vmem>>, vector<1x32x8xbf16>
    %286 = vector.shape_cast %285 : vector<1x32x8xbf16> to vector<32x8xbf16>
    %cst_127 = arith.constant dense<0.000000e+00> : vector<16x8xf32>
    %287 = tpu.matmul %235, %286, %cst_127 {dimension_numbers = #tpu.dot_dimension_numbers<[1], [0], [0], [1], [0, 0, 1, 1], [], []>} : vector<16x32xbf16>, vector<32x8xbf16>, vector<16x8xf32> -> vector<16x8xf32>
    %288 = vector.extract_strided_slice %11 {offsets = [1, 0, 0], sizes = [1, 1, 8], strides = [1, 1, 1]} : vector<12x1x8xf32> to vector<1x1x8xf32>
    %289 = vector.shape_cast %288 : vector<1x1x8xf32> to vector<1x8xf32>
    %290 = vector.broadcast %289 : vector<1x8xf32> to vector<16x8xf32>
    %291 = arith.addf %287, %290 : vector<16x8xf32>
    %c1_128 = arith.constant 1 : index
    %c0_129 = arith.constant 0 : index
    %c0_130 = arith.constant 0 : index
    %292 = vector.load %arg11[%c1_128, %c0_129, %c0_130] : memref<4x32x8xbf16, #tpu.memory_space<vmem>>, vector<1x32x8xbf16>
    %293 = vector.shape_cast %292 : vector<1x32x8xbf16> to vector<32x8xbf16>
    %cst_131 = arith.constant dense<0.000000e+00> : vector<32x8xf32>
    %294 = tpu.matmul %236, %293, %cst_131 {dimension_numbers = #tpu.dot_dimension_numbers<[1], [0], [0], [1], [0, 0, 1, 1], [], []>} : vector<32x32xbf16>, vector<32x8xbf16>, vector<32x8xf32> -> vector<32x8xf32>
    %295 = vector.extract_strided_slice %11 {offsets = [5, 0, 0], sizes = [1, 1, 8], strides = [1, 1, 1]} : vector<12x1x8xf32> to vector<1x1x8xf32>
    %296 = vector.shape_cast %295 : vector<1x1x8xf32> to vector<1x8xf32>
    %297 = vector.broadcast %296 : vector<1x8xf32> to vector<32x8xf32>
    %298 = arith.addf %294, %297 : vector<32x8xf32>
    %c1_132 = arith.constant 1 : index
    %c0_133 = arith.constant 0 : index
    %c0_134 = arith.constant 0 : index
    %299 = vector.load %arg12[%c1_132, %c0_133, %c0_134] : memref<4x32x8xbf16, #tpu.memory_space<vmem>>, vector<1x32x8xbf16>
    %300 = vector.shape_cast %299 : vector<1x32x8xbf16> to vector<32x8xbf16>
    %cst_135 = arith.constant dense<0.000000e+00> : vector<32x8xf32>
    %301 = tpu.matmul %237, %300, %cst_135 {dimension_numbers = #tpu.dot_dimension_numbers<[1], [0], [0], [1], [0, 0, 1, 1], [], []>} : vector<32x32xbf16>, vector<32x8xbf16>, vector<32x8xf32> -> vector<32x8xf32>
    %302 = vector.extract_strided_slice %11 {offsets = [9, 0, 0], sizes = [1, 1, 8], strides = [1, 1, 1]} : vector<12x1x8xf32> to vector<1x1x8xf32>
    %303 = vector.shape_cast %302 : vector<1x1x8xf32> to vector<1x8xf32>
    %304 = vector.broadcast %303 : vector<1x8xf32> to vector<32x8xf32>
    %305 = arith.addf %301, %304 : vector<32x8xf32>
    %306 = vector.shape_cast %291 : vector<16x8xf32> to vector<2x8x8xf32>
    %307 = arith.truncf %306 : vector<2x8x8xf32> to vector<2x8x8xbf16>
    %308 = vector.shape_cast %298 : vector<32x8xf32> to vector<2x16x8xf32>
    %309 = arith.truncf %308 : vector<2x16x8xf32> to vector<2x16x8xbf16>
    %310 = vector.shape_cast %305 : vector<32x8xf32> to vector<2x16x8xf32>
    %311 = arith.truncf %310 : vector<2x16x8xf32> to vector<2x16x8xbf16>
    "tpu.trace_start"() <{level = 10 : i32, message = "bqd,bkd->bqk"}> : () -> ()
    %cst_136 = arith.constant dense<0.000000e+00> : vector<2x8x16xf32>
    %312 = tpu.matmul %307, %309, %cst_136 {dimension_numbers = #tpu.dot_dimension_numbers<[2], [2], [1], [1], [0, 0, 0, 1, 1, 1], [0], [0]>} : vector<2x8x8xbf16>, vector<2x16x8xbf16>, vector<2x8x16xf32> -> vector<2x8x16xf32>
    "tpu.trace_stop"() : () -> ()
    %cst_137 = arith.constant dense<0xFF800000> : vector<2x8xf32>
    %313 = vector.multi_reduction <maximumf>, %312, %cst_137 [2] : vector<2x8x16xf32> to vector<2x8xf32>
    %314 = vector.shape_cast %313 : vector<2x8xf32> to vector<2x8x1xf32>
    %315 = vector.broadcast %314 : vector<2x8x1xf32> to vector<2x8x16xf32>
    %316 = arith.subf %312, %315 : vector<2x8x16xf32>
    %317 = math.exp %316 : vector<2x8x16xf32>
    %cst_138 = arith.constant dense<0.000000e+00> : vector<2x8xf32>
    %318 = vector.multi_reduction <add>, %317, %cst_138 [2] : vector<2x8x16xf32> to vector<2x8xf32>
    %319 = vector.shape_cast %318 : vector<2x8xf32> to vector<2x8x1xf32>
    %320 = tpu.reciprocal %319 {approx = true} : vector<2x8x1xf32> -> vector<2x8x1xf32>
    %321 = vector.broadcast %320 : vector<2x8x1xf32> to vector<2x8x16xf32>
    %322 = arith.mulf %317, %321 : vector<2x8x16xf32>
    %323 = arith.truncf %322 : vector<2x8x16xf32> to vector<2x8x16xbf16>
    "tpu.trace_start"() <{level = 10 : i32, message = "bqk,bkd->bqd"}> : () -> ()
    %cst_139 = arith.constant dense<0.000000e+00> : vector<2x8x8xf32>
    %324 = tpu.matmul %323, %311, %cst_139 {dimension_numbers = #tpu.dot_dimension_numbers<[2], [1], [1], [2], [0, 0, 0, 1, 1, 2], [0], [0]>} : vector<2x8x16xbf16>, vector<2x16x8xbf16>, vector<2x8x8xf32> -> vector<2x8x8xf32>
    "tpu.trace_stop"() : () -> ()
    %325 = vector.shape_cast %324 : vector<2x8x8xf32> to vector<16x8xf32>
    %326 = arith.truncf %325 : vector<16x8xf32> to vector<16x8xbf16>
    %c1_140 = arith.constant 1 : index
    %c0_141 = arith.constant 0 : index
    %c0_142 = arith.constant 0 : index
    %327 = vector.load %arg13[%c1_140, %c0_141, %c0_142] : memref<4x8x32xbf16, #tpu.memory_space<vmem>>, vector<1x8x32xbf16>
    %328 = vector.shape_cast %327 : vector<1x8x32xbf16> to vector<8x32xbf16>
    %cst_143 = arith.constant dense<0.000000e+00> : vector<16x32xf32>
    %329 = tpu.matmul %326, %328, %cst_143 {dimension_numbers = #tpu.dot_dimension_numbers<[1], [0], [0], [1], [0, 0, 1, 1], [], []>} : vector<16x8xbf16>, vector<8x32xbf16>, vector<16x32xf32> -> vector<16x32xf32>
    %330 = arith.addf %284, %329 : vector<16x32xf32>
    %c2_144 = arith.constant 2 : index
    %c0_145 = arith.constant 0 : index
    %c0_146 = arith.constant 0 : index
    %331 = vector.load %arg10[%c2_144, %c0_145, %c0_146] : memref<4x32x8xbf16, #tpu.memory_space<vmem>>, vector<1x32x8xbf16>
    %332 = vector.shape_cast %331 : vector<1x32x8xbf16> to vector<32x8xbf16>
    %cst_147 = arith.constant dense<0.000000e+00> : vector<16x8xf32>
    %333 = tpu.matmul %235, %332, %cst_147 {dimension_numbers = #tpu.dot_dimension_numbers<[1], [0], [0], [1], [0, 0, 1, 1], [], []>} : vector<16x32xbf16>, vector<32x8xbf16>, vector<16x8xf32> -> vector<16x8xf32>
    %334 = vector.extract_strided_slice %11 {offsets = [2, 0, 0], sizes = [1, 1, 8], strides = [1, 1, 1]} : vector<12x1x8xf32> to vector<1x1x8xf32>
    %335 = vector.shape_cast %334 : vector<1x1x8xf32> to vector<1x8xf32>
    %336 = vector.broadcast %335 : vector<1x8xf32> to vector<16x8xf32>
    %337 = arith.addf %333, %336 : vector<16x8xf32>
    %c2_148 = arith.constant 2 : index
    %c0_149 = arith.constant 0 : index
    %c0_150 = arith.constant 0 : index
    %338 = vector.load %arg11[%c2_148, %c0_149, %c0_150] : memref<4x32x8xbf16, #tpu.memory_space<vmem>>, vector<1x32x8xbf16>
    %339 = vector.shape_cast %338 : vector<1x32x8xbf16> to vector<32x8xbf16>
    %cst_151 = arith.constant dense<0.000000e+00> : vector<32x8xf32>
    %340 = tpu.matmul %236, %339, %cst_151 {dimension_numbers = #tpu.dot_dimension_numbers<[1], [0], [0], [1], [0, 0, 1, 1], [], []>} : vector<32x32xbf16>, vector<32x8xbf16>, vector<32x8xf32> -> vector<32x8xf32>
    %341 = vector.extract_strided_slice %11 {offsets = [6, 0, 0], sizes = [1, 1, 8], strides = [1, 1, 1]} : vector<12x1x8xf32> to vector<1x1x8xf32>
    %342 = vector.shape_cast %341 : vector<1x1x8xf32> to vector<1x8xf32>
    %343 = vector.broadcast %342 : vector<1x8xf32> to vector<32x8xf32>
    %344 = arith.addf %340, %343 : vector<32x8xf32>
    %c2_152 = arith.constant 2 : index
    %c0_153 = arith.constant 0 : index
    %c0_154 = arith.constant 0 : index
    %345 = vector.load %arg12[%c2_152, %c0_153, %c0_154] : memref<4x32x8xbf16, #tpu.memory_space<vmem>>, vector<1x32x8xbf16>
    %346 = vector.shape_cast %345 : vector<1x32x8xbf16> to vector<32x8xbf16>
    %cst_155 = arith.constant dense<0.000000e+00> : vector<32x8xf32>
    %347 = tpu.matmul %237, %346, %cst_155 {dimension_numbers = #tpu.dot_dimension_numbers<[1], [0], [0], [1], [0, 0, 1, 1], [], []>} : vector<32x32xbf16>, vector<32x8xbf16>, vector<32x8xf32> -> vector<32x8xf32>
    %348 = vector.extract_strided_slice %11 {offsets = [10, 0, 0], sizes = [1, 1, 8], strides = [1, 1, 1]} : vector<12x1x8xf32> to vector<1x1x8xf32>
    %349 = vector.shape_cast %348 : vector<1x1x8xf32> to vector<1x8xf32>
    %350 = vector.broadcast %349 : vector<1x8xf32> to vector<32x8xf32>
    %351 = arith.addf %347, %350 : vector<32x8xf32>
    %352 = vector.shape_cast %337 : vector<16x8xf32> to vector<2x8x8xf32>
    %353 = arith.truncf %352 : vector<2x8x8xf32> to vector<2x8x8xbf16>
    %354 = vector.shape_cast %344 : vector<32x8xf32> to vector<2x16x8xf32>
    %355 = arith.truncf %354 : vector<2x16x8xf32> to vector<2x16x8xbf16>
    %356 = vector.shape_cast %351 : vector<32x8xf32> to vector<2x16x8xf32>
    %357 = arith.truncf %356 : vector<2x16x8xf32> to vector<2x16x8xbf16>
    "tpu.trace_start"() <{level = 10 : i32, message = "bqd,bkd->bqk"}> : () -> ()
    %cst_156 = arith.constant dense<0.000000e+00> : vector<2x8x16xf32>
    %358 = tpu.matmul %353, %355, %cst_156 {dimension_numbers = #tpu.dot_dimension_numbers<[2], [2], [1], [1], [0, 0, 0, 1, 1, 1], [0], [0]>} : vector<2x8x8xbf16>, vector<2x16x8xbf16>, vector<2x8x16xf32> -> vector<2x8x16xf32>
    "tpu.trace_stop"() : () -> ()
    %cst_157 = arith.constant dense<0xFF800000> : vector<2x8xf32>
    %359 = vector.multi_reduction <maximumf>, %358, %cst_157 [2] : vector<2x8x16xf32> to vector<2x8xf32>
    %360 = vector.shape_cast %359 : vector<2x8xf32> to vector<2x8x1xf32>
    %361 = vector.broadcast %360 : vector<2x8x1xf32> to vector<2x8x16xf32>
    %362 = arith.subf %358, %361 : vector<2x8x16xf32>
    %363 = math.exp %362 : vector<2x8x16xf32>
    %cst_158 = arith.constant dense<0.000000e+00> : vector<2x8xf32>
    %364 = vector.multi_reduction <add>, %363, %cst_158 [2] : vector<2x8x16xf32> to vector<2x8xf32>
    %365 = vector.shape_cast %364 : vector<2x8xf32> to vector<2x8x1xf32>
    %366 = tpu.reciprocal %365 {approx = true} : vector<2x8x1xf32> -> vector<2x8x1xf32>
    %367 = vector.broadcast %366 : vector<2x8x1xf32> to vector<2x8x16xf32>
    %368 = arith.mulf %363, %367 : vector<2x8x16xf32>
    %369 = arith.truncf %368 : vector<2x8x16xf32> to vector<2x8x16xbf16>
    "tpu.trace_start"() <{level = 10 : i32, message = "bqk,bkd->bqd"}> : () -> ()
    %cst_159 = arith.constant dense<0.000000e+00> : vector<2x8x8xf32>
    %370 = tpu.matmul %369, %357, %cst_159 {dimension_numbers = #tpu.dot_dimension_numbers<[2], [1], [1], [2], [0, 0, 0, 1, 1, 2], [0], [0]>} : vector<2x8x16xbf16>, vector<2x16x8xbf16>, vector<2x8x8xf32> -> vector<2x8x8xf32>
    "tpu.trace_stop"() : () -> ()
    %371 = vector.shape_cast %370 : vector<2x8x8xf32> to vector<16x8xf32>
    %372 = arith.truncf %371 : vector<16x8xf32> to vector<16x8xbf16>
    %c2_160 = arith.constant 2 : index
    %c0_161 = arith.constant 0 : index
    %c0_162 = arith.constant 0 : index
    %373 = vector.load %arg13[%c2_160, %c0_161, %c0_162] : memref<4x8x32xbf16, #tpu.memory_space<vmem>>, vector<1x8x32xbf16>
    %374 = vector.shape_cast %373 : vector<1x8x32xbf16> to vector<8x32xbf16>
    %cst_163 = arith.constant dense<0.000000e+00> : vector<16x32xf32>
    %375 = tpu.matmul %372, %374, %cst_163 {dimension_numbers = #tpu.dot_dimension_numbers<[1], [0], [0], [1], [0, 0, 1, 1], [], []>} : vector<16x8xbf16>, vector<8x32xbf16>, vector<16x32xf32> -> vector<16x32xf32>
    %376 = arith.addf %330, %375 : vector<16x32xf32>
    %c3_164 = arith.constant 3 : index
    %c0_165 = arith.constant 0 : index
    %c0_166 = arith.constant 0 : index
    %377 = vector.load %arg10[%c3_164, %c0_165, %c0_166] : memref<4x32x8xbf16, #tpu.memory_space<vmem>>, vector<1x32x8xbf16>
    %378 = vector.shape_cast %377 : vector<1x32x8xbf16> to vector<32x8xbf16>
    %cst_167 = arith.constant dense<0.000000e+00> : vector<16x8xf32>
    %379 = tpu.matmul %235, %378, %cst_167 {dimension_numbers = #tpu.dot_dimension_numbers<[1], [0], [0], [1], [0, 0, 1, 1], [], []>} : vector<16x32xbf16>, vector<32x8xbf16>, vector<16x8xf32> -> vector<16x8xf32>
    %380 = vector.extract_strided_slice %11 {offsets = [3, 0, 0], sizes = [1, 1, 8], strides = [1, 1, 1]} : vector<12x1x8xf32> to vector<1x1x8xf32>
    %381 = vector.shape_cast %380 : vector<1x1x8xf32> to vector<1x8xf32>
    %382 = vector.broadcast %381 : vector<1x8xf32> to vector<16x8xf32>
    %383 = arith.addf %379, %382 : vector<16x8xf32>
    %c3_168 = arith.constant 3 : index
    %c0_169 = arith.constant 0 : index
    %c0_170 = arith.constant 0 : index
    %384 = vector.load %arg11[%c3_168, %c0_169, %c0_170] : memref<4x32x8xbf16, #tpu.memory_space<vmem>>, vector<1x32x8xbf16>
    %385 = vector.shape_cast %384 : vector<1x32x8xbf16> to vector<32x8xbf16>
    %cst_171 = arith.constant dense<0.000000e+00> : vector<32x8xf32>
    %386 = tpu.matmul %236, %385, %cst_171 {dimension_numbers = #tpu.dot_dimension_numbers<[1], [0], [0], [1], [0, 0, 1, 1], [], []>} : vector<32x32xbf16>, vector<32x8xbf16>, vector<32x8xf32> -> vector<32x8xf32>
    %387 = vector.extract_strided_slice %11 {offsets = [7, 0, 0], sizes = [1, 1, 8], strides = [1, 1, 1]} : vector<12x1x8xf32> to vector<1x1x8xf32>
    %388 = vector.shape_cast %387 : vector<1x1x8xf32> to vector<1x8xf32>
    %389 = vector.broadcast %388 : vector<1x8xf32> to vector<32x8xf32>
    %390 = arith.addf %386, %389 : vector<32x8xf32>
    %c3_172 = arith.constant 3 : index
    %c0_173 = arith.constant 0 : index
    %c0_174 = arith.constant 0 : index
    %391 = vector.load %arg12[%c3_172, %c0_173, %c0_174] : memref<4x32x8xbf16, #tpu.memory_space<vmem>>, vector<1x32x8xbf16>
    %392 = vector.shape_cast %391 : vector<1x32x8xbf16> to vector<32x8xbf16>
    %cst_175 = arith.constant dense<0.000000e+00> : vector<32x8xf32>
    %393 = tpu.matmul %237, %392, %cst_175 {dimension_numbers = #tpu.dot_dimension_numbers<[1], [0], [0], [1], [0, 0, 1, 1], [], []>} : vector<32x32xbf16>, vector<32x8xbf16>, vector<32x8xf32> -> vector<32x8xf32>
    %394 = vector.extract_strided_slice %11 {offsets = [11, 0, 0], sizes = [1, 1, 8], strides = [1, 1, 1]} : vector<12x1x8xf32> to vector<1x1x8xf32>
    %395 = vector.shape_cast %394 : vector<1x1x8xf32> to vector<1x8xf32>
    %396 = vector.broadcast %395 : vector<1x8xf32> to vector<32x8xf32>
    %397 = arith.addf %393, %396 : vector<32x8xf32>
    %398 = vector.shape_cast %383 : vector<16x8xf32> to vector<2x8x8xf32>
    %399 = arith.truncf %398 : vector<2x8x8xf32> to vector<2x8x8xbf16>
    %400 = vector.shape_cast %390 : vector<32x8xf32> to vector<2x16x8xf32>
    %401 = arith.truncf %400 : vector<2x16x8xf32> to vector<2x16x8xbf16>
    %402 = vector.shape_cast %397 : vector<32x8xf32> to vector<2x16x8xf32>
    %403 = arith.truncf %402 : vector<2x16x8xf32> to vector<2x16x8xbf16>
    "tpu.trace_start"() <{level = 10 : i32, message = "bqd,bkd->bqk"}> : () -> ()
    %cst_176 = arith.constant dense<0.000000e+00> : vector<2x8x16xf32>
    %404 = tpu.matmul %399, %401, %cst_176 {dimension_numbers = #tpu.dot_dimension_numbers<[2], [2], [1], [1], [0, 0, 0, 1, 1, 1], [0], [0]>} : vector<2x8x8xbf16>, vector<2x16x8xbf16>, vector<2x8x16xf32> -> vector<2x8x16xf32>
    "tpu.trace_stop"() : () -> ()
    %cst_177 = arith.constant dense<0xFF800000> : vector<2x8xf32>
    %405 = vector.multi_reduction <maximumf>, %404, %cst_177 [2] : vector<2x8x16xf32> to vector<2x8xf32>
    %406 = vector.shape_cast %405 : vector<2x8xf32> to vector<2x8x1xf32>
    %407 = vector.broadcast %406 : vector<2x8x1xf32> to vector<2x8x16xf32>
    %408 = arith.subf %404, %407 : vector<2x8x16xf32>
    %409 = math.exp %408 : vector<2x8x16xf32>
    %cst_178 = arith.constant dense<0.000000e+00> : vector<2x8xf32>
    %410 = vector.multi_reduction <add>, %409, %cst_178 [2] : vector<2x8x16xf32> to vector<2x8xf32>
    %411 = vector.shape_cast %410 : vector<2x8xf32> to vector<2x8x1xf32>
    %412 = tpu.reciprocal %411 {approx = true} : vector<2x8x1xf32> -> vector<2x8x1xf32>
    %413 = vector.broadcast %412 : vector<2x8x1xf32> to vector<2x8x16xf32>
    %414 = arith.mulf %409, %413 : vector<2x8x16xf32>
    %415 = arith.truncf %414 : vector<2x8x16xf32> to vector<2x8x16xbf16>
    "tpu.trace_start"() <{level = 10 : i32, message = "bqk,bkd->bqd"}> : () -> ()
    %cst_179 = arith.constant dense<0.000000e+00> : vector<2x8x8xf32>
    %416 = tpu.matmul %415, %403, %cst_179 {dimension_numbers = #tpu.dot_dimension_numbers<[2], [1], [1], [2], [0, 0, 0, 1, 1, 2], [0], [0]>} : vector<2x8x16xbf16>, vector<2x16x8xbf16>, vector<2x8x8xf32> -> vector<2x8x8xf32>
    "tpu.trace_stop"() : () -> ()
    %417 = vector.shape_cast %416 : vector<2x8x8xf32> to vector<16x8xf32>
    %418 = arith.truncf %417 : vector<16x8xf32> to vector<16x8xbf16>
    %c3_180 = arith.constant 3 : index
    %c0_181 = arith.constant 0 : index
    %c0_182 = arith.constant 0 : index
    %419 = vector.load %arg13[%c3_180, %c0_181, %c0_182] : memref<4x8x32xbf16, #tpu.memory_space<vmem>>, vector<1x8x32xbf16>
    %420 = vector.shape_cast %419 : vector<1x8x32xbf16> to vector<8x32xbf16>
    %cst_183 = arith.constant dense<0.000000e+00> : vector<16x32xf32>
    %421 = tpu.matmul %418, %420, %cst_183 {dimension_numbers = #tpu.dot_dimension_numbers<[1], [0], [0], [1], [0, 0, 1, 1], [], []>} : vector<16x8xbf16>, vector<8x32xbf16>, vector<16x32xf32> -> vector<16x32xf32>
    %422 = arith.addf %376, %421 : vector<16x32xf32>
    %423 = vector.broadcast %2 : vector<1x32xf32> to vector<16x32xf32>
    %424 = arith.addf %422, %423 : vector<16x32xf32>
    %425 = arith.addf %232, %424 : vector<16x32xf32>
    %cst_184 = arith.constant dense<0.000000e+00> : vector<16xf32>
    %426 = vector.multi_reduction <add>, %425, %cst_184 [1] : vector<16x32xf32> to vector<16xf32>
    %427 = vector.shape_cast %426 : vector<16xf32> to vector<16x1xf32>
    %cst_185 = arith.constant 3.200000e+01 : f32
    %428 = vector.broadcast %cst_185 : f32 to vector<16x1xf32>
    %429 = arith.divf %427, %428 : vector<16x1xf32>
    %430 = vector.broadcast %429 : vector<16x1xf32> to vector<16x32xf32>
    %431 = arith.subf %425, %430 : vector<16x32xf32>
    %432 = arith.mulf %431, %431 : vector<16x32xf32>
    %cst_186 = arith.constant dense<0.000000e+00> : vector<16xf32>
    %433 = vector.multi_reduction <add>, %432, %cst_186 [1] : vector<16x32xf32> to vector<16xf32>
    %434 = vector.shape_cast %433 : vector<16xf32> to vector<16x1xf32>
    %cst_187 = arith.constant 3.200000e+01 : f32
    %435 = vector.broadcast %cst_187 : f32 to vector<16x1xf32>
    %436 = arith.divf %434, %435 : vector<16x1xf32>
    %cst_188 = arith.constant 9.99999974E-6 : f32
    %437 = vector.broadcast %cst_188 : f32 to vector<16x1xf32>
    %438 = arith.addf %436, %437 : vector<16x1xf32>
    %439 = math.rsqrt %438 : vector<16x1xf32>
    %440 = vector.broadcast %439 : vector<16x1xf32> to vector<16x32xf32>
    %441 = arith.mulf %431, %440 : vector<16x32xf32>
    %442 = vector.broadcast %6 : vector<1x32xf32> to vector<16x32xf32>
    %443 = arith.mulf %441, %442 : vector<16x32xf32>
    %444 = vector.broadcast %7 : vector<1x32xf32> to vector<16x32xf32>
    %445 = arith.addf %443, %444 : vector<16x32xf32>
    %c0_189 = arith.constant 0 : index
    %c0_190 = arith.constant 0 : index
    %446 = vector.load %arg15[%c0_189, %c0_190] : memref<32x64xbf16, #tpu.memory_space<vmem>>, vector<32x64xbf16>
    %447 = arith.truncf %445 : vector<16x32xf32> to vector<16x32xbf16>
    %cst_191 = arith.constant dense<0.000000e+00> : vector<16x64xf32>
    %448 = tpu.matmul %447, %446, %cst_191 {dimension_numbers = #tpu.dot_dimension_numbers<[1], [0], [0], [1], [0, 0, 1, 1], [], []>} : vector<16x32xbf16>, vector<32x64xbf16>, vector<16x64xf32> -> vector<16x64xf32>
    %449 = vector.broadcast %12 : vector<1x64xf32> to vector<16x64xf32>
    %450 = arith.addf %448, %449 : vector<16x64xf32>
    %cst_192 = arith.constant 0.000000e+00 : f32
    %451 = vector.broadcast %cst_192 : f32 to vector<16x64xf32>
    %452 = arith.maximumf %450, %451 : vector<16x64xf32>
    %c0_193 = arith.constant 0 : index
    %c0_194 = arith.constant 0 : index
    %453 = vector.load %arg17[%c0_193, %c0_194] : memref<64x32xbf16, #tpu.memory_space<vmem>>, vector<64x32xbf16>
    %454 = arith.truncf %452 : vector<16x64xf32> to vector<16x64xbf16>
    %cst_195 = arith.constant dense<0.000000e+00> : vector<16x32xf32>
    %455 = tpu.matmul %454, %453, %cst_195 {dimension_numbers = #tpu.dot_dimension_numbers<[1], [0], [0], [1], [0, 0, 1, 1], [], []>} : vector<16x64xbf16>, vector<64x32xbf16>, vector<16x32xf32> -> vector<16x32xf32>
    %456 = vector.broadcast %3 : vector<1x32xf32> to vector<16x32xf32>
    %457 = arith.addf %455, %456 : vector<16x32xf32>
    %458 = arith.addf %445, %457 : vector<16x32xf32>
    %cst_196 = arith.constant dense<0.000000e+00> : vector<16xf32>
    %459 = vector.multi_reduction <add>, %458, %cst_196 [1] : vector<16x32xf32> to vector<16xf32>
    %460 = vector.shape_cast %459 : vector<16xf32> to vector<16x1xf32>
    %cst_197 = arith.constant 3.200000e+01 : f32
    %461 = vector.broadcast %cst_197 : f32 to vector<16x1xf32>
    %462 = arith.divf %460, %461 : vector<16x1xf32>
    %463 = vector.broadcast %462 : vector<16x1xf32> to vector<16x32xf32>
    %464 = arith.subf %458, %463 : vector<16x32xf32>
    %465 = arith.mulf %464, %464 : vector<16x32xf32>
    %cst_198 = arith.constant dense<0.000000e+00> : vector<16xf32>
    %466 = vector.multi_reduction <add>, %465, %cst_198 [1] : vector<16x32xf32> to vector<16xf32>
    %467 = vector.shape_cast %466 : vector<16xf32> to vector<16x1xf32>
    %cst_199 = arith.constant 3.200000e+01 : f32
    %468 = vector.broadcast %cst_199 : f32 to vector<16x1xf32>
    %469 = arith.divf %467, %468 : vector<16x1xf32>
    %cst_200 = arith.constant 9.99999974E-6 : f32
    %470 = vector.broadcast %cst_200 : f32 to vector<16x1xf32>
    %471 = arith.addf %469, %470 : vector<16x1xf32>
    %472 = math.rsqrt %471 : vector<16x1xf32>
    %473 = vector.broadcast %472 : vector<16x1xf32> to vector<16x32xf32>
    %474 = arith.mulf %464, %473 : vector<16x32xf32>
    %475 = vector.broadcast %8 : vector<1x32xf32> to vector<16x32xf32>
    %476 = arith.mulf %474, %475 : vector<16x32xf32>
    %477 = vector.broadcast %9 : vector<1x32xf32> to vector<16x32xf32>
    %478 = arith.addf %476, %477 : vector<16x32xf32>
    %479 = vector.shape_cast %478 : vector<16x32xf32> to vector<2x8x32xf32>
    %c0_201 = arith.constant 0 : index
    %c0_202 = arith.constant 0 : index
    %c0_203 = arith.constant 0 : index
    %480 = vector.load %arg19[%c0_201, %c0_202, %c0_203] : memref<2x8x32xf32, #tpu.memory_space<vmem>>, vector<2x8x32xf32>
    tpu.vector_store %arg19[%c0_201, %c0_202, %c0_203], %479 {strides = array<i32>} : memref<2x8x32xf32, #tpu.memory_space<vmem>>, vector<2x8x32xf32>,
    return
  }
  func.func @transform_0(%arg0: i32) -> (i32, i32, i32) {
    %c0_i32 = arith.constant 0 : i32
    %c0_i32_0 = arith.constant 0 : i32
    %c0_i32_1 = arith.constant 0 : i32
    return %arg0, %c0_i32, %c0_i32_0 : i32, i32, i32
  }
  func.func @transform_1(%arg0: i32) -> (i32, i32, i32) {
    %c0_i32 = arith.constant 0 : i32
    %c0_i32_0 = arith.constant 0 : i32
    %c0_i32_1 = arith.constant 0 : i32
    return %arg0, %c0_i32, %c0_i32_0 : i32, i32, i32
  }
  func.func @transform_2(%arg0: i32) -> (i32, i32, i32) {
    %c0_i32 = arith.constant 0 : i32
    %c0_i32_0 = arith.constant 0 : i32
    %c0_i32_1 = arith.constant 0 : i32
    return %arg0, %c0_i32, %c0_i32_0 : i32, i32, i32
  }
  func.func @transform_3(%arg0: i32) -> (i32, i32, i32) {
    %c0_i32 = arith.constant 0 : i32
    %c0_i32_0 = arith.constant 0 : i32
    %c0_i32_1 = arith.constant 0 : i32
    return %arg0, %c0_i32, %c0_i32_0 : i32, i32, i32
  }
  func.func @transform_4(%arg0: i32) -> (i32, i32, i32) {
    %c0_i32 = arith.constant 0 : i32
    %c0_i32_0 = arith.constant 0 : i32
    %c0_i32_1 = arith.constant 0 : i32
    %c0_i32_2 = arith.constant 0 : i32
    return %c0_i32, %c0_i32_0, %c0_i32_1 : i32, i32, i32
  }
  func.func @transform_5(%arg0: i32) -> (i32, i32, i32) {
    %c0_i32 = arith.constant 0 : i32
    %c0_i32_0 = arith.constant 0 : i32
    %c0_i32_1 = arith.constant 0 : i32
    %c0_i32_2 = arith.constant 0 : i32
    return %c0_i32, %c0_i32_0, %c0_i32_1 : i32, i32, i32
  }
  func.func @transform_6(%arg0: i32) -> (i32, i32, i32) {
    %c0_i32 = arith.constant 0 : i32
    %c0_i32_0 = arith.constant 0 : i32
    %c0_i32_1 = arith.constant 0 : i32
    %c0_i32_2 = arith.constant 0 : i32
    return %c0_i32, %c0_i32_0, %c0_i32_1 : i32, i32, i32
  }
  func.func @transform_7(%arg0: i32) -> (i32, i32, i32) {
    %c0_i32 = arith.constant 0 : i32
    %c0_i32_0 = arith.constant 0 : i32
    %c0_i32_1 = arith.constant 0 : i32
    %c0_i32_2 = arith.constant 0 : i32
    return %c0_i32, %c0_i32_0, %c0_i32_1 : i32, i32, i32
  }
  func.func @transform_8(%arg0: i32) -> (i32, i32, i32) {
    %c0_i32 = arith.constant 0 : i32
    %c0_i32_0 = arith.constant 0 : i32
    %c0_i32_1 = arith.constant 0 : i32
    %c0_i32_2 = arith.constant 0 : i32
    return %c0_i32, %c0_i32_0, %c0_i32_1 : i32, i32, i32
  }
  func.func @transform_9(%arg0: i32) -> (i32, i32, i32) {
    %c0_i32 = arith.constant 0 : i32
    %c0_i32_0 = arith.constant 0 : i32
    %c0_i32_1 = arith.constant 0 : i32
    %c0_i32_2 = arith.constant 0 : i32
    return %c0_i32, %c0_i32_0, %c0_i32_1 : i32, i32, i32
  }
  func.func @transform_10(%arg0: i32) -> (i32, i32, i32) {
    %c0_i32 = arith.constant 0 : i32
    %c0_i32_0 = arith.constant 0 : i32
    %c0_i32_1 = arith.constant 0 : i32
    %c0_i32_2 = arith.constant 0 : i32
    return %c0_i32, %c0_i32_0, %c0_i32_1 : i32, i32, i32
  }
  func.func @transform_11(%arg0: i32) -> (i32, i32, i32) {
    %c0_i32 = arith.constant 0 : i32
    %c0_i32_0 = arith.constant 0 : i32
    %c0_i32_1 = arith.constant 0 : i32
    %c0_i32_2 = arith.constant 0 : i32
    return %c0_i32, %c0_i32_0, %c0_i32_1 : i32, i32, i32
  }
  func.func @transform_12(%arg0: i32) -> (i32, i32, i32) {
    %c0_i32 = arith.constant 0 : i32
    %c0_i32_0 = arith.constant 0 : i32
    %c0_i32_1 = arith.constant 0 : i32
    %c0_i32_2 = arith.constant 0 : i32
    return %c0_i32, %c0_i32_0, %c0_i32_1 : i32, i32, i32
  }
  func.func @transform_13(%arg0: i32) -> (i32, i32, i32) {
    %c0_i32 = arith.constant 0 : i32
    %c0_i32_0 = arith.constant 0 : i32
    %c0_i32_1 = arith.constant 0 : i32
    %c0_i32_2 = arith.constant 0 : i32
    return %c0_i32, %c0_i32_0, %c0_i32_1 : i32, i32, i32
  }
  func.func @transform_14(%arg0: i32) -> (i32, i32) {
    %c0_i32 = arith.constant 0 : i32
    %c0_i32_0 = arith.constant 0 : i32
    %c0_i32_1 = arith.constant 0 : i32
    return %c0_i32, %c0_i32_0 : i32, i32
  }
  func.func @transform_15(%arg0: i32) -> (i32, i32) {
    %c0_i32 = arith.constant 0 : i32
    %c0_i32_0 = arith.constant 0 : i32
    %c0_i32_1 = arith.constant 0 : i32
    return %c0_i32, %c0_i32_0 : i32, i32
  }
  func.func @transform_16(%arg0: i32) -> (i32, i32) {
    %c0_i32 = arith.constant 0 : i32
    %c0_i32_0 = arith.constant 0 : i32
    %c0_i32_1 = arith.constant 0 : i32
    return %c0_i32, %c0_i32_0 : i32, i32
  }
  func.func @transform_17(%arg0: i32) -> (i32, i32) {
    %c0_i32 = arith.constant 0 : i32
    %c0_i32_0 = arith.constant 0 : i32
    %c0_i32_1 = arith.constant 0 : i32
    return %c0_i32, %c0_i32_0 : i32, i32
  }
  func.func @transform_18(%arg0: i32) -> (i32, i32, i32) {
    %c0_i32 = arith.constant 0 : i32
    %c0_i32_0 = arith.constant 0 : i32
    %c0_i32_1 = arith.constant 0 : i32
    return %arg0, %c0_i32, %c0_i32_0 : i32, i32, i32
  }
}

</mosaic_0001>

<llo_original>
// kernel: transformer_decoder_layer.1
$region0: #{transformer_decoder_layer.1}
  #allocation0 [shape = 'u32[]', space=smem, size = 0x4, offset = 0x4, fixed_abs, tag = 'smem constant byte address 0x4 - core index']
  #allocation1 [shape = 'u32[144,128]{1,0:T(1,128)}', space=vmem, size = 0x12000, scoped, tag = 'internal scratch']
  %s0 = inlined_call_operand.vmem [shape: f32[2,8,32], index: 0, kind: input, shape index: {}]
  %s1 = inlined_call_operand.vmem [shape: f32[2,16,32], index: 1, kind: input, shape index: {}]
  %s2 = inlined_call_operand.vmem [shape: f32[2,8,32], index: 2, kind: input, shape index: {}]
  %s3 = inlined_call_operand.vmem [shape: f32[2,16,32], index: 3, kind: input, shape index: {}]
  %s4 = inlined_call_operand.vmem [shape: bf16[4,32,8], index: 4, kind: input, shape index: {}]
  %s5 = inlined_call_operand.vmem [shape: bf16[4,32,8], index: 5, kind: input, shape index: {}]
  %s6 = inlined_call_operand.vmem [shape: bf16[4,32,8], index: 6, kind: input, shape index: {}]
  %s7 = inlined_call_operand.vmem [shape: bf16[4,8,32], index: 7, kind: input, shape index: {}]
  %s8 = inlined_call_operand.vmem [shape: f32[12,1,8], index: 8, kind: input, shape index: {}]
  %s9 = inlined_call_operand.vmem [shape: bf16[4,32,8], index: 9, kind: input, shape index: {}]
  %s10 = inlined_call_operand.vmem [shape: bf16[4,32,8], index: 10, kind: input, shape index: {}]
  %s11 = inlined_call_operand.vmem [shape: bf16[4,32,8], index: 11, kind: input, shape index: {}]
  %s12 = inlined_call_operand.vmem [shape: bf16[4,8,32], index: 12, kind: input, shape index: {}]
  %s13 = inlined_call_operand.vmem [shape: f32[12,1,8], index: 13, kind: input, shape index: {}]
  %s14 = inlined_call_operand.vmem [shape: bf16[32,64], index: 14, kind: input, shape index: {}]
  %s15 = inlined_call_operand.vmem [shape: f32[1,64], index: 15, kind: input, shape index: {}]
  %s16 = inlined_call_operand.vmem [shape: bf16[64,32], index: 16, kind: input, shape index: {}]
  %s17 = inlined_call_operand.vmem [shape: f32[9,32], index: 17, kind: input, shape index: {}]
  %s18 = inlined_call_operand.vmem [shape: f32[2,8,32], index: 18, kind: output, shape index: {}]
  %s19 = sld [smem:[#allocation0]]
  $region82: #{transformer_decoder_layer.1} parent=0
    _
  %s21 = ssub.s32 1, %s19
  %s22 = scalar_select 0, %s21, %s19
  // Predicated region
  $region2: #{transformer_decoder_layer.1} parent=0 // pred_check
    _
  $region3: #{transformer_decoder_layer.1} parent=0 // pred_check_branch
    %24 = sbr.rel (0) target = $region5
  $region4: #{transformer_decoder_layer.1} parent=0 // pred_region
    _
  $region5: #{transformer_decoder_layer.1} parent=0 // pred_fallthru
    _
  // Predicated region
  $region6: #{transformer_decoder_layer.1} parent=0 // pred_check
    _
  $region7: #{transformer_decoder_layer.1} parent=0 // pred_check_branch
    %26 = sbr.rel (0) target = $region9
  $region8: #{transformer_decoder_layer.1} parent=0 // pred_region
    _
  $region9: #{transformer_decoder_layer.1} parent=0 // pred_fallthru
    _
  // Predicated region
  $region10: #{transformer_decoder_layer.1} parent=0 // pred_check
    _
  $region11: #{transformer_decoder_layer.1} parent=0 // pred_check_branch
    %28 = sbr.rel (0) target = $region13
  $region12: #{transformer_decoder_layer.1} parent=0 // pred_region
    _
  $region13: #{transformer_decoder_layer.1} parent=0 // pred_fallthru
    _
  // Predicated region
  $region14: #{transformer_decoder_layer.1} parent=0 // pred_check
    _
  $region15: #{transformer_decoder_layer.1} parent=0 // pred_check_branch
    %30 = sbr.rel (0) target = $region17
  $region16: #{transformer_decoder_layer.1} parent=0 // pred_region
    _
  $region17: #{transformer_decoder_layer.1} parent=0 // pred_fallthru
    _
  // Predicated region
  $region18: #{transformer_decoder_layer.1} parent=0 // pred_check
    _
  $region19: #{transformer_decoder_layer.1} parent=0 // pred_check_branch
    %32 = sbr.rel (0) target = $region21
  $region20: #{transformer_decoder_layer.1} parent=0 // pred_region
    _
  $region21: #{transformer_decoder_layer.1} parent=0 // pred_fallthru
    _
  // Predicated region
  $region22: #{transformer_decoder_layer.1} parent=0 // pred_check
    _
  $region23: #{transformer_decoder_layer.1} parent=0 // pred_check_branch
    %34 = sbr.rel (0) target = $region25
  $region24: #{transformer_decoder_layer.1} parent=0 // pred_region
    _
  $region25: #{transformer_decoder_layer.1} parent=0 // pred_fallthru
    _
  // Predicated region
  $region26: #{transformer_decoder_layer.1} parent=0 // pred_check
    _
  $region27: #{transformer_decoder_layer.1} parent=0 // pred_check_branch
    %36 = sbr.rel (0) target = $region29
  $region28: #{transformer_decoder_layer.1} parent=0 // pred_region
    _
  $region29: #{transformer_decoder_layer.1} parent=0 // pred_fallthru
    _
  // Predicated region
  $region30: #{transformer_decoder_layer.1} parent=0 // pred_check
    _
  $region31: #{transformer_decoder_layer.1} parent=0 // pred_check_branch
    %38 = sbr.rel (0) target = $region33
  $region32: #{transformer_decoder_layer.1} parent=0 // pred_region
    _
  $region33: #{transformer_decoder_layer.1} parent=0 // pred_fallthru
    _
  // Predicated region
  $region34: #{transformer_decoder_layer.1} parent=0 // pred_check
    _
  $region35: #{transformer_decoder_layer.1} parent=0 // pred_check_branch
    %40 = sbr.rel (0) target = $region37
  $region36: #{transformer_decoder_layer.1} parent=0 // pred_region
    _
  $region37: #{transformer_decoder_layer.1} parent=0 // pred_fallthru
    _
  // Predicated region
  $region38: #{transformer_decoder_layer.1} parent=0 // pred_check
    _
  $region39: #{transformer_decoder_layer.1} parent=0 // pred_check_branch
    %42 = sbr.rel (0) target = $region41
  $region40: #{transformer_decoder_layer.1} parent=0 // pred_region
    _
  $region41: #{transformer_decoder_layer.1} parent=0 // pred_fallthru
    _
  // Predicated region
  $region42: #{transformer_decoder_layer.1} parent=0 // pred_check
    _
  $region43: #{transformer_decoder_layer.1} parent=0 // pred_check_branch
    %44 = sbr.rel (0) target = $region45
  $region44: #{transformer_decoder_layer.1} parent=0 // pred_region
    _
  $region45: #{transformer_decoder_layer.1} parent=0 // pred_fallthru
    _
  // Predicated region
  $region46: #{transformer_decoder_layer.1} parent=0 // pred_check
    _
  $region47: #{transformer_decoder_layer.1} parent=0 // pred_check_branch
    %46 = sbr.rel (0) target = $region49
  $region48: #{transformer_decoder_layer.1} parent=0 // pred_region
    _
  $region49: #{transformer_decoder_layer.1} parent=0 // pred_fallthru
    _
  // Predicated region
  $region50: #{transformer_decoder_layer.1} parent=0 // pred_check
    _
  $region51: #{transformer_decoder_layer.1} parent=0 // pred_check_branch
    %48 = sbr.rel (0) target = $region53
  $region52: #{transformer_decoder_layer.1} parent=0 // pred_region
    _
  $region53: #{transformer_decoder_layer.1} parent=0 // pred_fallthru
    _
  // Predicated region
  $region54: #{transformer_decoder_layer.1} parent=0 // pred_check
    _
  $region55: #{transformer_decoder_layer.1} parent=0 // pred_check_branch
    %50 = sbr.rel (0) target = $region57
  $region56: #{transformer_decoder_layer.1} parent=0 // pred_region
    _
  $region57: #{transformer_decoder_layer.1} parent=0 // pred_fallthru
    _
  // Predicated region
  $region58: #{transformer_decoder_layer.1} parent=0 // pred_check
    _
  $region59: #{transformer_decoder_layer.1} parent=0 // pred_check_branch
    %52 = sbr.rel (0) target = $region61
  $region60: #{transformer_decoder_layer.1} parent=0 // pred_region
    _
  $region61: #{transformer_decoder_layer.1} parent=0 // pred_fallthru
    _
  // Predicated region
  $region62: #{transformer_decoder_layer.1} parent=0 // pred_check
    _
  $region63: #{transformer_decoder_layer.1} parent=0 // pred_check_branch
    %54 = sbr.rel (0) target = $region65
  $region64: #{transformer_decoder_layer.1} parent=0 // pred_region
    _
  $region65: #{transformer_decoder_layer.1} parent=0 // pred_fallthru
    _
  // Predicated region
  $region66: #{transformer_decoder_layer.1} parent=0 // pred_check
    _
  $region67: #{transformer_decoder_layer.1} parent=0 // pred_check_branch
    %56 = sbr.rel (0) target = $region69
  $region68: #{transformer_decoder_layer.1} parent=0 // pred_region
    _
  $region69: #{transformer_decoder_layer.1} parent=0 // pred_fallthru
    _
  // Predicated region
  $region70: #{transformer_decoder_layer.1} parent=0 // pred_check
    _
  $region71: #{transformer_decoder_layer.1} parent=0 // pred_check_branch
    %58 = sbr.rel (0) target = $region73
  $region72: #{transformer_decoder_layer.1} parent=0 // pred_region
    _
  $region73: #{transformer_decoder_layer.1} parent=0 // pred_fallthru
    _
  %v60 = vld [vmem:[%s17] sm:$0xff]
  %v61 = vld [vmem:[%s17 + $0x8] sm:$0x1]
  %v62 = vld [vmem:[%s8] sm:$0x1]
  %v63 = vld [vmem:[%s8 + $0x1] sm:$0x1]
  %v64 = vld [vmem:[%s8 + $0x2] sm:$0x1]
  %v65 = vld [vmem:[%s8 + $0x3] sm:$0x1]
  %v66 = vld [vmem:[%s8 + $0x4] sm:$0x1]
  %v67 = vld [vmem:[%s8 + $0x5] sm:$0x1]
  %v68 = vld [vmem:[%s8 + $0x6] sm:$0x1]
  %v69 = vld [vmem:[%s8 + $0x7] sm:$0x1]
  %v70 = vld [vmem:[%s8 + $0x8] sm:$0x1]
  %v71 = vld [vmem:[%s8 + $0x9] sm:$0x1]
  %v72 = vld [vmem:[%s8 + $0xa] sm:$0x1]
  %v73 = vld [vmem:[%s8 + $0xb] sm:$0x1]
  %v74 = vld [vmem:[%s13] sm:$0x1]
  %v75 = vld [vmem:[%s13 + $0x1] sm:$0x1]
  %v76 = vld [vmem:[%s13 + $0x2] sm:$0x1]
  %v77 = vld [vmem:[%s13 + $0x3] sm:$0x1]
  %v78 = vld [vmem:[%s13 + $0x4] sm:$0x1]
  %v79 = vld [vmem:[%s13 + $0x5] sm:$0x1]
  %v80 = vld [vmem:[%s13 + $0x6] sm:$0x1]
  %v81 = vld [vmem:[%s13 + $0x7] sm:$0x1]
  %v82 = vld [vmem:[%s13 + $0x8] sm:$0x1]
  %v83 = vld [vmem:[%s13 + $0x9] sm:$0x1]
  %v84 = vld [vmem:[%s13 + $0xa] sm:$0x1]
  %v85 = vld [vmem:[%s13 + $0xb] sm:$0x1]
  %v86 = vld [vmem:[%s15] sm:$0x1]
  %v87 = vld [vmem:[%s0] sm:$0xff]
  %v88 = vld [vmem:[%s0 + $0x8] sm:$0xff]
  %v89 = vld [vmem:[%s2] sm:$0xff]
  %v90 = vld [vmem:[%s2 + $0x8] sm:$0xff]
  %v91 = vld [vmem:[%s1] sm:$0xff]
  %v92 = vld [vmem:[%s1 + $0x8] sm:$0xff]
  %v93 = vld [vmem:[%s1 + $0x10] sm:$0xff]
  %v94 = vld [vmem:[%s1 + $0x18] sm:$0xff]
  %v95 = vld [vmem:[%s3] sm:$0xff]
  %v96 = vld [vmem:[%s3 + $0x8] sm:$0xff]
  %v97 = vld [vmem:[%s3 + $0x10] sm:$0xff]
  %v98 = vld [vmem:[%s3 + $0x18] sm:$0xff]
  %v99 = vadd.f32 %v87, %v89
  %v100 = vadd.f32 %v88, %v90
  %v101 = vpack.c.bf16 %v100, %v99
  %v102 = vpack.c.bf16 %v88, %v87
  %v103 = vld [vmem:[%s4] sm:$0xf]
  %v104 = vld [vmem:[%s4 + $0x4] sm:$0xf]
  %v105 = vld [vmem:[%s4 + $0x8] sm:$0xf]
  %v106 = vld [vmem:[%s4 + $0xc] sm:$0xf]
  %v108 = vlaneseq
  %v109 = vshrl.u32 %v108, 7
  %v110 = vsub.s32 0, %v109
  %v111 = vrot.slane %v62, %v110
  %v117 = vunpack.c.l.b16 %v103
  %v118 = vunpack.c.l.b16 %v104
  %v119 = vunpack.c.l.b16 %v105
  %v120 = vunpack.c.l.b16 %v106
  %v121 = vpack.c.b16 %v118, %v117
  %v122 = vpack.c.b16 %v120, %v119
  %vm125 = vcmask 261120
  %v127 = vsel %vm125, %v101, 0
  %129 = vmatprep.subr.bf16.mxu0 0
  %130 = vmatpush1.bf16.msra.mxu0 0
  %131 = vmatprep.subr.bf16.mxu0 0
  %132 = vmatpush1.bf16.msra.mxu0 0
  %133 = vmatprep.subr.bf16.mxu0 0
  %134 = vmatpush1.bf16.msra.mxu0 0
  %135 = vmatprep.subr.bf16.mxu0 0
  %136 = vmatpush1.bf16.msra.mxu0 0
  %137 = vmatprep.subr.bf16.mxu0 0
  %138 = vmatpush1.bf16.msra.mxu0 0
  %139 = vmatprep.subr.bf16.mxu0 0
  %140 = vmatpush1.bf16.msra.mxu0 0
  %141 = vmatprep.subr.bf16.mxu0 0
  %142 = vmatpush1.bf16.msra.mxu0 %v122
  %143 = vmatprep.subr.bf16.mxu0 0
  %144 = vmatpush1.bf16.msra.mxu0 %v121
  %145 = vmatprep.subr.bf16.mxu0 0
  %146 = vmatpush2.bf16.msra.mxu0 0
  %147 = vmatprep.subr.bf16.mxu0 0
  %148 = vmatpush2.bf16.msra.mxu0 0
  %149 = vmatprep.subr.bf16.mxu0 0
  %150 = vmatpush2.bf16.msra.mxu0 0
  %151 = vmatprep.subr.bf16.mxu0 0
  %152 = vmatpush2.bf16.msra.mxu0 0
  %153 = vmatprep.subr.bf16.mxu0 0
  %154 = vmatpush2.bf16.msra.mxu0 0
  %155 = vmatprep.subr.bf16.mxu0 0
  %156 = vmatpush2.bf16.msra.mxu0 0
  %157 = vmatprep.subr.bf16.mxu0 0
  %158 = vmatpush2.bf16.msra.mxu0 0
  %159 = vmatprep.subr.bf16.mxu0 0
  %160 = vmatpush2.bf16.msra.mxu0 0
  %161 = vmatprep.mubr.bf16.mxu0 0
  %162 = vmatmul.mubr.bf16.gmra.mxu0 %v127
  %v163 = vpop.f32.mrf.mxu0
  %v164 = vadd.f32 %v111, %v163
  %v165 = vpop.f32.mrf.mxu0
  %v166 = vpop.f32.mrf.mxu0
  %v167 = vadd.f32 %v111, %v166
  %v168 = vpop.f32.mrf.mxu0
  %169 = vdwg.mxu0
  %v170 = vld [vmem:[%s5] sm:$0xf]
  %v171 = vld [vmem:[%s5 + $0x4] sm:$0xf]
  %v172 = vld [vmem:[%s5 + $0x8] sm:$0xf]
  %v173 = vld [vmem:[%s5 + $0xc] sm:$0xf]
  %v175 = vlaneseq
  %v176 = vshrl.u32 %v175, 7
  %v177 = vsub.s32 0, %v176
  %v178 = vrot.slane %v66, %v177
  %v184 = vunpack.c.l.b16 %v170
  %v185 = vunpack.c.l.b16 %v171
  %v186 = vunpack.c.l.b16 %v172
  %v187 = vunpack.c.l.b16 %v173
  %v188 = vpack.c.b16 %v185, %v184
  %v189 = vpack.c.b16 %v187, %v186
  %192 = vmatprep.subr.bf16.mxu0 0
  %193 = vmatpush1.bf16.msra.mxu0 0
  %194 = vmatprep.subr.bf16.mxu0 0
  %195 = vmatpush1.bf16.msra.mxu0 0
  %196 = vmatprep.subr.bf16.mxu0 0
  %197 = vmatpush1.bf16.msra.mxu0 0
  %198 = vmatprep.subr.bf16.mxu0 0
  %199 = vmatpush1.bf16.msra.mxu0 0
  %200 = vmatprep.subr.bf16.mxu0 0
  %201 = vmatpush1.bf16.msra.mxu0 0
  %202 = vmatprep.subr.bf16.mxu0 0
  %203 = vmatpush1.bf16.msra.mxu0 0
  %204 = vmatprep.subr.bf16.mxu0 0
  %205 = vmatpush1.bf16.msra.mxu0 %v189
  %206 = vmatprep.subr.bf16.mxu0 0
  %207 = vmatpush1.bf16.msra.mxu0 %v188
  %208 = vmatprep.subr.bf16.mxu0 0
  %209 = vmatpush2.bf16.msra.mxu0 0
  %210 = vmatprep.subr.bf16.mxu0 0
  %211 = vmatpush2.bf16.msra.mxu0 0
  %212 = vmatprep.subr.bf16.mxu0 0
  %213 = vmatpush2.bf16.msra.mxu0 0
  %214 = vmatprep.subr.bf16.mxu0 0
  %215 = vmatpush2.bf16.msra.mxu0 0
  %216 = vmatprep.subr.bf16.mxu0 0
  %217 = vmatpush2.bf16.msra.mxu0 0
  %218 = vmatprep.subr.bf16.mxu0 0
  %219 = vmatpush2.bf16.msra.mxu0 0
  %220 = vmatprep.subr.bf16.mxu0 0
  %221 = vmatpush2.bf16.msra.mxu0 0
  %222 = vmatprep.subr.bf16.mxu0 0
  %223 = vmatpush2.bf16.msra.mxu0 0
  %224 = vmatprep.mubr.bf16.mxu0 0
  %225 = vmatmul.mubr.bf16.gmra.mxu0 %v127
  %v226 = vpop.f32.mrf.mxu0
  %v227 = vadd.f32 %v178, %v226
  %v228 = vpop.f32.mrf.mxu0
  %v229 = vpop.f32.mrf.mxu0
  %v230 = vadd.f32 %v178, %v229
  %v231 = vpop.f32.mrf.mxu0
  %232 = vdwg.mxu0
  %v233 = vld [vmem:[%s6] sm:$0xf]
  %v234 = vld [vmem:[%s6 + $0x4] sm:$0xf]
  %v235 = vld [vmem:[%s6 + $0x8] sm:$0xf]
  %v236 = vld [vmem:[%s6 + $0xc] sm:$0xf]
  %v238 = vlaneseq
  %v239 = vshrl.u32 %v238, 7
  %v240 = vsub.s32 0, %v239
  %v241 = vrot.slane %v70, %v240
  %v247 = vunpack.c.l.b16 %v233
  %v248 = vunpack.c.l.b16 %v234
  %v249 = vunpack.c.l.b16 %v235
  %v250 = vunpack.c.l.b16 %v236
  %v251 = vpack.c.b16 %v248, %v247
  %v252 = vpack.c.b16 %v250, %v249
  %v256 = vsel %vm125, %v102, 0
  %258 = vmatprep.subr.bf16.mxu0 0
  %259 = vmatpush1.bf16.msra.mxu0 0
  %260 = vmatprep.subr.bf16.mxu0 0
  %261 = vmatpush1.bf16.msra.mxu0 0
  %262 = vmatprep.subr.bf16.mxu0 0
  %263 = vmatpush1.bf16.msra.mxu0 0
  %264 = vmatprep.subr.bf16.mxu0 0
  %265 = vmatpush1.bf16.msra.mxu0 0
  %266 = vmatprep.subr.bf16.mxu0 0
  %267 = vmatpush1.bf16.msra.mxu0 0
  %268 = vmatprep.subr.bf16.mxu0 0
  %269 = vmatpush1.bf16.msra.mxu0 0
  %270 = vmatprep.subr.bf16.mxu0 0
  %271 = vmatpush1.bf16.msra.mxu0 %v252
  %272 = vmatprep.subr.bf16.mxu0 0
  %273 = vmatpush1.bf16.msra.mxu0 %v251
  %274 = vmatprep.subr.bf16.mxu0 0
  %275 = vmatpush2.bf16.msra.mxu0 0
  %276 = vmatprep.subr.bf16.mxu0 0
  %277 = vmatpush2.bf16.msra.mxu0 0
  %278 = vmatprep.subr.bf16.mxu0 0
  %279 = vmatpush2.bf16.msra.mxu0 0
  %280 = vmatprep.subr.bf16.mxu0 0
  %281 = vmatpush2.bf16.msra.mxu0 0
  %282 = vmatprep.subr.bf16.mxu0 0
  %283 = vmatpush2.bf16.msra.mxu0 0
  %284 = vmatprep.subr.bf16.mxu0 0
  %285 = vmatpush2.bf16.msra.mxu0 0
  %286 = vmatprep.subr.bf16.mxu0 0
  %287 = vmatpush2.bf16.msra.mxu0 0
  %288 = vmatprep.subr.bf16.mxu0 0
  %289 = vmatpush2.bf16.msra.mxu0 0
  %290 = vmatprep.mubr.bf16.mxu0 0
  %291 = vmatmul.mubr.bf16.gmra.mxu0 %v256
  %v292 = vpop.f32.mrf.mxu0
  %v293 = vadd.f32 %v241, %v292
  %v294 = vpop.f32.mrf.mxu0
  %v295 = vpop.f32.mrf.mxu0
  %v296 = vadd.f32 %v241, %v295
  %v297 = vpop.f32.mrf.mxu0
  %298 = vdwg.mxu0
  %v299 = vpack.c.bf16 %v164, %v164
  %v300 = vpack.c.bf16 %v167, %v167
  %v301 = vpack.c.bf16 %v227, %v227
  %v302 = vpack.c.bf16 %v230, %v230
  %v303 = vpack.c.bf16 %v293, %v293
  %v304 = vpack.c.bf16 %v296, %v296
  %vm305 = vcmask 64512
  %v307 = vsel %vm305, %v299, 0
  %v310 = vsel %vm305, %v301, 0
  %312 = vmatprep.subr.bf16.mxu0 0
  %313 = vmatpush1.bf16.xpose.msra.mxu0 0
  %314 = vmatprep.subr.bf16.mxu0 0
  %315 = vmatpush1.bf16.xpose.msra.mxu0 0
  %316 = vmatprep.subr.bf16.mxu0 0
  %317 = vmatpush1.bf16.xpose.msra.mxu0 0
  %318 = vmatprep.subr.bf16.mxu0 0
  %319 = vmatpush1.bf16.xpose.msra.mxu0 0
  %320 = vmatprep.subr.bf16.mxu0 0
  %321 = vmatpush1.bf16.xpose.msra.mxu0 0
  %322 = vmatprep.subr.bf16.mxu0 0
  %323 = vmatpush1.bf16.xpose.msra.mxu0 0
  %324 = vmatprep.subr.bf16.mxu0 0
  %325 = vmatpush1.bf16.xpose.msra.mxu0 0
  %326 = vmatprep.subr.bf16.mxu0 0
  %327 = vmatpush1.bf16.xpose.msra.mxu0 %v310
  %328 = vmatprep.subr.bf16.mxu0 0
  %329 = vmatpush2.bf16.xpose.msra.mxu0 0
  %330 = vmatprep.subr.bf16.mxu0 0
  %331 = vmatpush2.bf16.xpose.msra.mxu0 0
  %332 = vmatprep.subr.bf16.mxu0 0
  %333 = vmatpush2.bf16.xpose.msra.mxu0 0
  %334 = vmatprep.subr.bf16.mxu0 0
  %335 = vmatpush2.bf16.xpose.msra.mxu0 0
  %336 = vmatprep.subr.bf16.mxu0 0
  %337 = vmatpush2.bf16.xpose.msra.mxu0 0
  %338 = vmatprep.subr.bf16.mxu0 0
  %339 = vmatpush2.bf16.xpose.msra.mxu0 0
  %340 = vmatprep.subr.bf16.mxu0 0
  %341 = vmatpush2.bf16.xpose.msra.mxu0 0
  %342 = vmatprep.subr.bf16.mxu0 0
  %343 = vmatpush2.bf16.xpose.msra.mxu0 0
  %344 = vmatprep.mubr.bf16.mxu0 0
  %345 = vmatmul.mubr.bf16.gmra.mxu0 %v307
  %v346 = vpop.f32.mrf.mxu0
  %v347 = vadd.f32 0.0, %v346
  %v348 = vpop.f32.mrf.mxu0
  %v349 = vpop.f32.mrf.mxu0
  %v350 = vpop.f32.mrf.mxu0
  %351 = vdwg.mxu0
  %v353 = vsel %vm305, %v300, 0
  %v356 = vsel %vm305, %v302, 0
  %358 = vmatprep.subr.bf16.mxu0 0
  %359 = vmatpush1.bf16.xpose.msra.mxu0 0
  %360 = vmatprep.subr.bf16.mxu0 0
  %361 = vmatpush1.bf16.xpose.msra.mxu0 0
  %362 = vmatprep.subr.bf16.mxu0 0
  %363 = vmatpush1.bf16.xpose.msra.mxu0 0
  %364 = vmatprep.subr.bf16.mxu0 0
  %365 = vmatpush1.bf16.xpose.msra.mxu0 0
  %366 = vmatprep.subr.bf16.mxu0 0
  %367 = vmatpush1.bf16.xpose.msra.mxu0 0
  %368 = vmatprep.subr.bf16.mxu0 0
  %369 = vmatpush1.bf16.xpose.msra.mxu0 0
  %370 = vmatprep.subr.bf16.mxu0 0
  %371 = vmatpush1.bf16.xpose.msra.mxu0 0
  %372 = vmatprep.subr.bf16.mxu0 0
  %373 = vmatpush1.bf16.xpose.msra.mxu0 %v356
  %374 = vmatprep.subr.bf16.mxu0 0
  %375 = vmatpush2.bf16.xpose.msra.mxu0 0
  %376 = vmatprep.subr.bf16.mxu0 0
  %377 = vmatpush2.bf16.xpose.msra.mxu0 0
  %378 = vmatprep.subr.bf16.mxu0 0
  %379 = vmatpush2.bf16.xpose.msra.mxu0 0
  %380 = vmatprep.subr.bf16.mxu0 0
  %381 = vmatpush2.bf16.xpose.msra.mxu0 0
  %382 = vmatprep.subr.bf16.mxu0 0
  %383 = vmatpush2.bf16.xpose.msra.mxu0 0
  %384 = vmatprep.subr.bf16.mxu0 0
  %385 = vmatpush2.bf16.xpose.msra.mxu0 0
  %386 = vmatprep.subr.bf16.mxu0 0
  %387 = vmatpush2.bf16.xpose.msra.mxu0 0
  %388 = vmatprep.subr.bf16.mxu0 0
  %389 = vmatpush2.bf16.xpose.msra.mxu0 0
  %390 = vmatprep.mubr.bf16.mxu0 0
  %391 = vmatmul.mubr.bf16.gmra.mxu0 %v353
  %v392 = vpop.f32.mrf.mxu0
  %v393 = vadd.f32 0.0, %v392
  %v394 = vpop.f32.mrf.mxu0
  %v395 = vpop.f32.mrf.mxu0
  %v396 = vpop.f32.mrf.mxu0
  %397 = vdwg.mxu0
  %v398 = vsel %vm305, %v347, -inf
  %399 = vmax.xlane.f32.xlu0 %v398
  %v400 = vpop.xlane.xlu0 %399
  %v401 = vsel %vm305, %v393, -inf
  %402 = vmax.xlane.f32.xlu0 %v401
  %v403 = vpop.xlane.xlu0 %402
  %v404 = vsub.f32 %v347, %v400
  %v405 = vsub.f32 %v393, %v403
  %v406 = vmul.f32 %v404, 1.442695
  %v407 = vpow.pop %v406
  %v408 = vmul.f32 %v405, 1.442695
  %v409 = vpow.pop %v408
  %v410 = vsel %vm305, %v407, 0.0
  %411 = vadd.xlane.f32.xlu0 %v410
  %v412 = vpop.xlane.xlu0 %411
  %v413 = vsel %vm305, %v409, 0.0
  %414 = vadd.xlane.f32.xlu0 %v413
  %v415 = vpop.xlane.xlu0 %414
  %v416 = vrcp.pop %v412
  %v417 = vrcp.pop %v415
  %v418 = vmul.f32 %v407, %v416
  %v419 = vmul.f32 %v409, %v417
  %v420 = vpack.c.bf16 %v418, %v418
  %v421 = vpack.c.bf16 %v419, %v419
  %v423 = vsel %vm305, %v420, 0
  %vm425 = vcmask 1043456
  %v427 = vsel %vm425, %v303, 0
  %429 = vmatprep.subr.bf16.mxu0 0
  %430 = vmatpush1.bf16.msra.mxu0 0
  %431 = vmatprep.subr.bf16.mxu0 0
  %432 = vmatpush1.bf16.msra.mxu0 0
  %433 = vmatprep.subr.bf16.mxu0 0
  %434 = vmatpush1.bf16.msra.mxu0 0
  %435 = vmatprep.subr.bf16.mxu0 0
  %436 = vmatpush1.bf16.msra.mxu0 0
  %437 = vmatprep.subr.bf16.mxu0 0
  %438 = vmatpush1.bf16.msra.mxu0 0
  %439 = vmatprep.subr.bf16.mxu0 0
  %440 = vmatpush1.bf16.msra.mxu0 0
  %441 = vmatprep.subr.bf16.mxu0 0
  %442 = vmatpush1.bf16.msra.mxu0 0
  %443 = vmatprep.subr.bf16.mxu0 0
  %444 = vmatpush1.bf16.msra.mxu0 %v427
  %445 = vmatprep.subr.bf16.mxu0 0
  %446 = vmatpush2.bf16.msra.mxu0 0
  %447 = vmatprep.subr.bf16.mxu0 0
  %448 = vmatpush2.bf16.msra.mxu0 0
  %449 = vmatprep.subr.bf16.mxu0 0
  %450 = vmatpush2.bf16.msra.mxu0 0
  %451 = vmatprep.subr.bf16.mxu0 0
  %452 = vmatpush2.bf16.msra.mxu0 0
  %453 = vmatprep.subr.bf16.mxu0 0
  %454 = vmatpush2.bf16.msra.mxu0 0
  %455 = vmatprep.subr.bf16.mxu0 0
  %456 = vmatpush2.bf16.msra.mxu0 0
  %457 = vmatprep.subr.bf16.mxu0 0
  %458 = vmatpush2.bf16.msra.mxu0 0
  %459 = vmatprep.subr.bf16.mxu0 0
  %460 = vmatpush2.bf16.msra.mxu0 0
  %461 = vmatprep.mubr.bf16.mxu0 0
  %462 = vmatmul.mubr.bf16.gmra.mxu0 %v423
  %v463 = vpop.f32.mrf.mxu0
  %v464 = vadd.f32 0.0, %v463
  %v465 = vpop.f32.mrf.mxu0
  %v466 = vpop.f32.mrf.mxu0
  %v467 = vpop.f32.mrf.mxu0
  %468 = vdwg.mxu0
  %v470 = vsel %vm305, %v421, 0
  %v473 = vsel %vm425, %v304, 0
  %475 = vmatprep.subr.bf16.mxu0 0
  %476 = vmatpush1.bf16.msra.mxu0 0
  %477 = vmatprep.subr.bf16.mxu0 0
  %478 = vmatpush1.bf16.msra.mxu0 0
  %479 = vmatprep.subr.bf16.mxu0 0
  %480 = vmatpush1.bf16.msra.mxu0 0
  %481 = vmatprep.subr.bf16.mxu0 0
  %482 = vmatpush1.bf16.msra.mxu0 0
  %483 = vmatprep.subr.bf16.mxu0 0
  %484 = vmatpush1.bf16.msra.mxu0 0
  %485 = vmatprep.subr.bf16.mxu0 0
  %486 = vmatpush1.bf16.msra.mxu0 0
  %487 = vmatprep.subr.bf16.mxu0 0
  %488 = vmatpush1.bf16.msra.mxu0 0
  %489 = vmatprep.subr.bf16.mxu0 0
  %490 = vmatpush1.bf16.msra.mxu0 %v473
  %491 = vmatprep.subr.bf16.mxu0 0
  %492 = vmatpush2.bf16.msra.mxu0 0
  %493 = vmatprep.subr.bf16.mxu0 0
  %494 = vmatpush2.bf16.msra.mxu0 0
  %495 = vmatprep.subr.bf16.mxu0 0
  %496 = vmatpush2.bf16.msra.mxu0 0
  %497 = vmatprep.subr.bf16.mxu0 0
  %498 = vmatpush2.bf16.msra.mxu0 0
  %499 = vmatprep.subr.bf16.mxu0 0
  %500 = vmatpush2.bf16.msra.mxu0 0
  %501 = vmatprep.subr.bf16.mxu0 0
  %502 = vmatpush2.bf16.msra.mxu0 0
  %503 = vmatprep.subr.bf16.mxu0 0
  %504 = vmatpush2.bf16.msra.mxu0 0
  %505 = vmatprep.subr.bf16.mxu0 0
  %506 = vmatpush2.bf16.msra.mxu0 0
  %507 = vmatprep.mubr.bf16.mxu0 0
  %508 = vmatmul.mubr.bf16.gmra.mxu0 %v470
  %v509 = vpop.f32.mrf.mxu0
  %v510 = vadd.f32 0.0, %v509
  %v511 = vpop.f32.mrf.mxu0
  %v512 = vpop.f32.mrf.mxu0
  %v513 = vpop.f32.mrf.mxu0
  %514 = vdwg.mxu0
  %v515 = vpack.c.bf16 %v510, %v464
  %v516 = vld [vmem:[%s7] sm:$0xf]
  %s517 = scalar_lea.vmem %s4, 16
  %v518 = vld [vmem:[%s517] sm:$0xf]
  %v519 = vld [vmem:[%s517 + $0x4] sm:$0xf]
  %v520 = vld [vmem:[%s517 + $0x8] sm:$0xf]
  %v521 = vld [vmem:[%s517 + $0xc] sm:$0xf]
  %v523 = vlaneseq
  %v524 = vshrl.u32 %v523, 7
  %v525 = vsub.s32 0, %v524
  %v526 = vrot.slane %v63, %v525
  %v532 = vunpack.c.l.b16 %v518
  %v533 = vunpack.c.l.b16 %v519
  %v534 = vunpack.c.l.b16 %v520
  %v535 = vunpack.c.l.b16 %v521
  %v536 = vpack.c.b16 %v533, %v532
  %v537 = vpack.c.b16 %v535, %v534
  %540 = vmatprep.subr.bf16.mxu0 0
  %541 = vmatpush1.bf16.msra.mxu0 0
  %542 = vmatprep.subr.bf16.mxu0 0
  %543 = vmatpush1.bf16.msra.mxu0 0
  %544 = vmatprep.subr.bf16.mxu0 0
  %545 = vmatpush1.bf16.msra.mxu0 0
  %546 = vmatprep.subr.bf16.mxu0 0
  %547 = vmatpush1.bf16.msra.mxu0 0
  %548 = vmatprep.subr.bf16.mxu0 0
  %549 = vmatpush1.bf16.msra.mxu0 0
  %550 = vmatprep.subr.bf16.mxu0 0
  %551 = vmatpush1.bf16.msra.mxu0 0
  %552 = vmatprep.subr.bf16.mxu0 0
  %553 = vmatpush1.bf16.msra.mxu0 %v537
  %554 = vmatprep.subr.bf16.mxu0 0
  %555 = vmatpush1.bf16.msra.mxu0 %v536
  %556 = vmatprep.subr.bf16.mxu0 0
  %557 = vmatpush2.bf16.msra.mxu0 0
  %558 = vmatprep.subr.bf16.mxu0 0
  %559 = vmatpush2.bf16.msra.mxu0 0
  %560 = vmatprep.subr.bf16.mxu0 0
  %561 = vmatpush2.bf16.msra.mxu0 0
  %562 = vmatprep.subr.bf16.mxu0 0
  %563 = vmatpush2.bf16.msra.mxu0 0
  %564 = vmatprep.subr.bf16.mxu0 0
  %565 = vmatpush2.bf16.msra.mxu0 0
  %566 = vmatprep.subr.bf16.mxu0 0
  %567 = vmatpush2.bf16.msra.mxu0 0
  %568 = vmatprep.subr.bf16.mxu0 0
  %569 = vmatpush2.bf16.msra.mxu0 0
  %570 = vmatprep.subr.bf16.mxu0 0
  %571 = vmatpush2.bf16.msra.mxu0 0
  %572 = vmatprep.mubr.bf16.mxu0 0
  %573 = vmatmul.mubr.bf16.gmra.mxu0 %v127
  %v574 = vpop.f32.mrf.mxu0
  %v575 = vadd.f32 %v526, %v574
  %v576 = vpop.f32.mrf.mxu0
  %v577 = vpop.f32.mrf.mxu0
  %v578 = vadd.f32 %v526, %v577
  %v579 = vpop.f32.mrf.mxu0
  %580 = vdwg.mxu0
  %s581 = scalar_lea.vmem %s5, 16
  %v582 = vld [vmem:[%s581] sm:$0xf]
  %v583 = vld [vmem:[%s581 + $0x4] sm:$0xf]
  %v584 = vld [vmem:[%s581 + $0x8] sm:$0xf]
  %v585 = vld [vmem:[%s581 + $0xc] sm:$0xf]
  %v587 = vlaneseq
  %v588 = vshrl.u32 %v587, 7
  %v589 = vsub.s32 0, %v588
  %v590 = vrot.slane %v67, %v589
  %v596 = vunpack.c.l.b16 %v582
  %v597 = vunpack.c.l.b16 %v583
  %v598 = vunpack.c.l.b16 %v584
  %v599 = vunpack.c.l.b16 %v585
  %v600 = vpack.c.b16 %v597, %v596
  %v601 = vpack.c.b16 %v599, %v598
  %604 = vmatprep.subr.bf16.mxu0 0
  %605 = vmatpush1.bf16.msra.mxu0 0
  %606 = vmatprep.subr.bf16.mxu0 0
  %607 = vmatpush1.bf16.msra.mxu0 0
  %608 = vmatprep.subr.bf16.mxu0 0
  %609 = vmatpush1.bf16.msra.mxu0 0
  %610 = vmatprep.subr.bf16.mxu0 0
  %611 = vmatpush1.bf16.msra.mxu0 0
  %612 = vmatprep.subr.bf16.mxu0 0
  %613 = vmatpush1.bf16.msra.mxu0 0
  %614 = vmatprep.subr.bf16.mxu0 0
  %615 = vmatpush1.bf16.msra.mxu0 0
  %616 = vmatprep.subr.bf16.mxu0 0
  %617 = vmatpush1.bf16.msra.mxu0 %v601
  %618 = vmatprep.subr.bf16.mxu0 0
  %619 = vmatpush1.bf16.msra.mxu0 %v600
  %620 = vmatprep.subr.bf16.mxu0 0
  %621 = vmatpush2.bf16.msra.mxu0 0
  %622 = vmatprep.subr.bf16.mxu0 0
  %623 = vmatpush2.bf16.msra.mxu0 0
  %624 = vmatprep.subr.bf16.mxu0 0
  %625 = vmatpush2.bf16.msra.mxu0 0
  %626 = vmatprep.subr.bf16.mxu0 0
  %627 = vmatpush2.bf16.msra.mxu0 0
  %628 = vmatprep.subr.bf16.mxu0 0
  %629 = vmatpush2.bf16.msra.mxu0 0
  %630 = vmatprep.subr.bf16.mxu0 0
  %631 = vmatpush2.bf16.msra.mxu0 0
  %632 = vmatprep.subr.bf16.mxu0 0
  %633 = vmatpush2.bf16.msra.mxu0 0
  %634 = vmatprep.subr.bf16.mxu0 0
  %635 = vmatpush2.bf16.msra.mxu0 0
  %636 = vmatprep.mubr.bf16.mxu0 0
  %637 = vmatmul.mubr.bf16.gmra.mxu0 %v127
  %v638 = vpop.f32.mrf.mxu0
  %v639 = vadd.f32 %v590, %v638
  %v640 = vpop.f32.mrf.mxu0
  %v641 = vpop.f32.mrf.mxu0
  %v642 = vadd.f32 %v590, %v641
  %v643 = vpop.f32.mrf.mxu0
  %644 = vdwg.mxu0
  %s645 = scalar_lea.vmem %s6, 16
  %v646 = vld [vmem:[%s645] sm:$0xf]
  %v647 = vld [vmem:[%s645 + $0x4] sm:$0xf]
  %v648 = vld [vmem:[%s645 + $0x8] sm:$0xf]
  %v649 = vld [vmem:[%s645 + $0xc] sm:$0xf]
  %v651 = vlaneseq
  %v652 = vshrl.u32 %v651, 7
  %v653 = vsub.s32 0, %v652
  %v654 = vrot.slane %v71, %v653
  %v660 = vunpack.c.l.b16 %v646
  %v661 = vunpack.c.l.b16 %v647
  %v662 = vunpack.c.l.b16 %v648
  %v663 = vunpack.c.l.b16 %v649
  %v664 = vpack.c.b16 %v661, %v660
  %v665 = vpack.c.b16 %v663, %v662
  %668 = vmatprep.subr.bf16.mxu0 0
  %669 = vmatpush1.bf16.msra.mxu0 0
  %670 = vmatprep.subr.bf16.mxu0 0
  %671 = vmatpush1.bf16.msra.mxu0 0
  %672 = vmatprep.subr.bf16.mxu0 0
  %673 = vmatpush1.bf16.msra.mxu0 0
  %674 = vmatprep.subr.bf16.mxu0 0
  %675 = vmatpush1.bf16.msra.mxu0 0
  %676 = vmatprep.subr.bf16.mxu0 0
  %677 = vmatpush1.bf16.msra.mxu0 0
  %678 = vmatprep.subr.bf16.mxu0 0
  %679 = vmatpush1.bf16.msra.mxu0 0
  %680 = vmatprep.subr.bf16.mxu0 0
  %681 = vmatpush1.bf16.msra.mxu0 %v665
  %682 = vmatprep.subr.bf16.mxu0 0
  %683 = vmatpush1.bf16.msra.mxu0 %v664
  %684 = vmatprep.subr.bf16.mxu0 0
  %685 = vmatpush2.bf16.msra.mxu0 0
  %686 = vmatprep.subr.bf16.mxu0 0
  %687 = vmatpush2.bf16.msra.mxu0 0
  %688 = vmatprep.subr.bf16.mxu0 0
  %689 = vmatpush2.bf16.msra.mxu0 0
  %690 = vmatprep.subr.bf16.mxu0 0
  %691 = vmatpush2.bf16.msra.mxu0 0
  %692 = vmatprep.subr.bf16.mxu0 0
  %693 = vmatpush2.bf16.msra.mxu0 0
  %694 = vmatprep.subr.bf16.mxu0 0
  %695 = vmatpush2.bf16.msra.mxu0 0
  %696 = vmatprep.subr.bf16.mxu0 0
  %697 = vmatpush2.bf16.msra.mxu0 0
  %698 = vmatprep.subr.bf16.mxu0 0
  %699 = vmatpush2.bf16.msra.mxu0 0
  %700 = vmatprep.mubr.bf16.mxu0 0
  %701 = vmatmul.mubr.bf16.gmra.mxu0 %v256
  %v702 = vpop.f32.mrf.mxu0
  %v703 = vadd.f32 %v654, %v702
  %v704 = vpop.f32.mrf.mxu0
  %v705 = vpop.f32.mrf.mxu0
  %v706 = vadd.f32 %v654, %v705
  %v707 = vpop.f32.mrf.mxu0
  %708 = vdwg.mxu0
  %v709 = vpack.c.bf16 %v575, %v575
  %v710 = vpack.c.bf16 %v578, %v578
  %v711 = vpack.c.bf16 %v639, %v639
  %v712 = vpack.c.bf16 %v642, %v642
  %v713 = vpack.c.bf16 %v703, %v703
  %v714 = vpack.c.bf16 %v706, %v706
  %v716 = vsel %vm305, %v709, 0
  %v719 = vsel %vm305, %v711, 0
  %721 = vmatprep.subr.bf16.mxu0 0
  %722 = vmatpush1.bf16.xpose.msra.mxu0 0
  %723 = vmatprep.subr.bf16.mxu0 0
  %724 = vmatpush1.bf16.xpose.msra.mxu0 0
  %725 = vmatprep.subr.bf16.mxu0 0
  %726 = vmatpush1.bf16.xpose.msra.mxu0 0
  %727 = vmatprep.subr.bf16.mxu0 0
  %728 = vmatpush1.bf16.xpose.msra.mxu0 0
  %729 = vmatprep.subr.bf16.mxu0 0
  %730 = vmatpush1.bf16.xpose.msra.mxu0 0
  %731 = vmatprep.subr.bf16.mxu0 0
  %732 = vmatpush1.bf16.xpose.msra.mxu0 0
  %733 = vmatprep.subr.bf16.mxu0 0
  %734 = vmatpush1.bf16.xpose.msra.mxu0 0
  %735 = vmatprep.subr.bf16.mxu0 0
  %736 = vmatpush1.bf16.xpose.msra.mxu0 %v719
  %737 = vmatprep.subr.bf16.mxu0 0
  %738 = vmatpush2.bf16.xpose.msra.mxu0 0
  %739 = vmatprep.subr.bf16.mxu0 0
  %740 = vmatpush2.bf16.xpose.msra.mxu0 0
  %741 = vmatprep.subr.bf16.mxu0 0
  %742 = vmatpush2.bf16.xpose.msra.mxu0 0
  %743 = vmatprep.subr.bf16.mxu0 0
  %744 = vmatpush2.bf16.xpose.msra.mxu0 0
  %745 = vmatprep.subr.bf16.mxu0 0
  %746 = vmatpush2.bf16.xpose.msra.mxu0 0
  %747 = vmatprep.subr.bf16.mxu0 0
  %748 = vmatpush2.bf16.xpose.msra.mxu0 0
  %749 = vmatprep.subr.bf16.mxu0 0
  %750 = vmatpush2.bf16.xpose.msra.mxu0 0
  %751 = vmatprep.subr.bf16.mxu0 0
  %752 = vmatpush2.bf16.xpose.msra.mxu0 0
  %753 = vmatprep.mubr.bf16.mxu0 0
  %754 = vmatmul.mubr.bf16.gmra.mxu0 %v716
  %v755 = vpop.f32.mrf.mxu0
  %v756 = vadd.f32 0.0, %v755
  %v757 = vpop.f32.mrf.mxu0
  %v758 = vpop.f32.mrf.mxu0
  %v759 = vpop.f32.mrf.mxu0
  %760 = vdwg.mxu0
  %v762 = vsel %vm305, %v710, 0
  %v765 = vsel %vm305, %v712, 0
  %767 = vmatprep.subr.bf16.mxu0 0
  %768 = vmatpush1.bf16.xpose.msra.mxu0 0
  %769 = vmatprep.subr.bf16.mxu0 0
  %770 = vmatpush1.bf16.xpose.msra.mxu0 0
  %771 = vmatprep.subr.bf16.mxu0 0
  %772 = vmatpush1.bf16.xpose.msra.mxu0 0
  %773 = vmatprep.subr.bf16.mxu0 0
  %774 = vmatpush1.bf16.xpose.msra.mxu0 0
  %775 = vmatprep.subr.bf16.mxu0 0
  %776 = vmatpush1.bf16.xpose.msra.mxu0 0
  %777 = vmatprep.subr.bf16.mxu0 0
  %778 = vmatpush1.bf16.xpose.msra.mxu0 0
  %779 = vmatprep.subr.bf16.mxu0 0
  %780 = vmatpush1.bf16.xpose.msra.mxu0 0
  %781 = vmatprep.subr.bf16.mxu0 0
  %782 = vmatpush1.bf16.xpose.msra.mxu0 %v765
  %783 = vmatprep.subr.bf16.mxu0 0
  %784 = vmatpush2.bf16.xpose.msra.mxu0 0
  %785 = vmatprep.subr.bf16.mxu0 0
  %786 = vmatpush2.bf16.xpose.msra.mxu0 0
  %787 = vmatprep.subr.bf16.mxu0 0
  %788 = vmatpush2.bf16.xpose.msra.mxu0 0
  %789 = vmatprep.subr.bf16.mxu0 0
  %790 = vmatpush2.bf16.xpose.msra.mxu0 0
  %791 = vmatprep.subr.bf16.mxu0 0
  %792 = vmatpush2.bf16.xpose.msra.mxu0 0
  %793 = vmatprep.subr.bf16.mxu0 0
  %794 = vmatpush2.bf16.xpose.msra.mxu0 0
  %795 = vmatprep.subr.bf16.mxu0 0
  %796 = vmatpush2.bf16.xpose.msra.mxu0 0
  %797 = vmatprep.subr.bf16.mxu0 0
  %798 = vmatpush2.bf16.xpose.msra.mxu0 0
  %799 = vmatprep.mubr.bf16.mxu0 0
  %800 = vmatmul.mubr.bf16.gmra.mxu0 %v762
  %v801 = vpop.f32.mrf.mxu0
  %v802 = vadd.f32 0.0, %v801
  %v803 = vpop.f32.mrf.mxu0
  %v804 = vpop.f32.mrf.mxu0
  %v805 = vpop.f32.mrf.mxu0
  %806 = vdwg.mxu0
  %v807 = vsel %vm305, %v756, -inf
  %808 = vmax.xlane.f32.xlu0 %v807
  %v809 = vpop.xlane.xlu0 %808
  %v810 = vsel %vm305, %v802, -inf
  %811 = vmax.xlane.f32.xlu0 %v810
  %v812 = vpop.xlane.xlu0 %811
  %v813 = vsub.f32 %v756, %v809
  %v814 = vsub.f32 %v802, %v812
  %v815 = vmul.f32 %v813, 1.442695
  %v816 = vpow.pop %v815
  %v817 = vmul.f32 %v814, 1.442695
  %v818 = vpow.pop %v817
  %v819 = vsel %vm305, %v816, 0.0
  %820 = vadd.xlane.f32.xlu0 %v819
  %v821 = vpop.xlane.xlu0 %820
  %v822 = vsel %vm305, %v818, 0.0
  %823 = vadd.xlane.f32.xlu0 %v822
  %v824 = vpop.xlane.xlu0 %823
  %v825 = vrcp.pop %v821
  %v826 = vrcp.pop %v824
  %v827 = vmul.f32 %v816, %v825
  %v828 = vmul.f32 %v818, %v826
  %v829 = vpack.c.bf16 %v827, %v827
  %v830 = vpack.c.bf16 %v828, %v828
  %v832 = vsel %vm305, %v829, 0
  %v835 = vsel %vm425, %v713, 0
  %837 = vmatprep.subr.bf16.mxu0 0
  %838 = vmatpush1.bf16.msra.mxu0 0
  %839 = vmatprep.subr.bf16.mxu0 0
  %840 = vmatpush1.bf16.msra.mxu0 0
  %841 = vmatprep.subr.bf16.mxu0 0
  %842 = vmatpush1.bf16.msra.mxu0 0
  %843 = vmatprep.subr.bf16.mxu0 0
  %844 = vmatpush1.bf16.msra.mxu0 0
  %845 = vmatprep.subr.bf16.mxu0 0
  %846 = vmatpush1.bf16.msra.mxu0 0
  %847 = vmatprep.subr.bf16.mxu0 0
  %848 = vmatpush1.bf16.msra.mxu0 0
  %849 = vmatprep.subr.bf16.mxu0 0
  %850 = vmatpush1.bf16.msra.mxu0 0
  %851 = vmatprep.subr.bf16.mxu0 0
  %852 = vmatpush1.bf16.msra.mxu0 %v835
  %853 = vmatprep.subr.bf16.mxu0 0
  %854 = vmatpush2.bf16.msra.mxu0 0
  %855 = vmatprep.subr.bf16.mxu0 0
  %856 = vmatpush2.bf16.msra.mxu0 0
  %857 = vmatprep.subr.bf16.mxu0 0
  %858 = vmatpush2.bf16.msra.mxu0 0
  %859 = vmatprep.subr.bf16.mxu0 0
  %860 = vmatpush2.bf16.msra.mxu0 0
  %861 = vmatprep.subr.bf16.mxu0 0
  %862 = vmatpush2.bf16.msra.mxu0 0
  %863 = vmatprep.subr.bf16.mxu0 0
  %864 = vmatpush2.bf16.msra.mxu0 0
  %865 = vmatprep.subr.bf16.mxu0 0
  %866 = vmatpush2.bf16.msra.mxu0 0
  %867 = vmatprep.subr.bf16.mxu0 0
  %868 = vmatpush2.bf16.msra.mxu0 0
  %869 = vmatprep.mubr.bf16.mxu0 0
  %870 = vmatmul.mubr.bf16.gmra.mxu0 %v832
  %v871 = vpop.f32.mrf.mxu0
  %v872 = vadd.f32 0.0, %v871
  %v873 = vpop.f32.mrf.mxu0
  %v874 = vpop.f32.mrf.mxu0
  %v875 = vpop.f32.mrf.mxu0
  %876 = vdwg.mxu0
  %v878 = vsel %vm305, %v830, 0
  %v881 = vsel %vm425, %v714, 0
  %883 = vmatprep.subr.bf16.mxu0 0
  %884 = vmatpush1.bf16.msra.mxu0 0
  %885 = vmatprep.subr.bf16.mxu0 0
  %886 = vmatpush1.bf16.msra.mxu0 0
  %887 = vmatprep.subr.bf16.mxu0 0
  %888 = vmatpush1.bf16.msra.mxu0 0
  %889 = vmatprep.subr.bf16.mxu0 0
  %890 = vmatpush1.bf16.msra.mxu0 0
  %891 = vmatprep.subr.bf16.mxu0 0
  %892 = vmatpush1.bf16.msra.mxu0 0
  %893 = vmatprep.subr.bf16.mxu0 0
  %894 = vmatpush1.bf16.msra.mxu0 0
  %895 = vmatprep.subr.bf16.mxu0 0
  %896 = vmatpush1.bf16.msra.mxu0 0
  %897 = vmatprep.subr.bf16.mxu0 0
  %898 = vmatpush1.bf16.msra.mxu0 %v881
  %899 = vmatprep.subr.bf16.mxu0 0
  %900 = vmatpush2.bf16.msra.mxu0 0
  %901 = vmatprep.subr.bf16.mxu0 0
  %902 = vmatpush2.bf16.msra.mxu0 0
  %903 = vmatprep.subr.bf16.mxu0 0
  %904 = vmatpush2.bf16.msra.mxu0 0
  %905 = vmatprep.subr.bf16.mxu0 0
  %906 = vmatpush2.bf16.msra.mxu0 0
  %907 = vmatprep.subr.bf16.mxu0 0
  %908 = vmatpush2.bf16.msra.mxu0 0
  %909 = vmatprep.subr.bf16.mxu0 0
  %910 = vmatpush2.bf16.msra.mxu0 0
  %911 = vmatprep.subr.bf16.mxu0 0
  %912 = vmatpush2.bf16.msra.mxu0 0
  %913 = vmatprep.subr.bf16.mxu0 0
  %914 = vmatpush2.bf16.msra.mxu0 0
  %915 = vmatprep.mubr.bf16.mxu0 0
  %916 = vmatmul.mubr.bf16.gmra.mxu0 %v878
  %v917 = vpop.f32.mrf.mxu0
  %v918 = vadd.f32 0.0, %v917
  %v919 = vpop.f32.mrf.mxu0
  %v920 = vpop.f32.mrf.mxu0
  %v921 = vpop.f32.mrf.mxu0
  %922 = vdwg.mxu0
  %v923 = vpack.c.bf16 %v918, %v872
  %s924 = scalar_lea.vmem %s7, 4
  %v925 = vld [vmem:[%s924] sm:$0xf]
  %v927 = vsel %vm305, %v923, 0
  %v930 = vsel %vm425, %v925, 0
  %932 = vmatprep.subr.bf16.mxu0 0
  %933 = vmatpush1.bf16.msra.mxu0 0
  %934 = vmatprep.subr.bf16.mxu0 0
  %935 = vmatpush1.bf16.msra.mxu0 0
  %936 = vmatprep.subr.bf16.mxu0 0
  %937 = vmatpush1.bf16.msra.mxu0 0
  %938 = vmatprep.subr.bf16.mxu0 0
  %939 = vmatpush1.bf16.msra.mxu0 0
  %940 = vmatprep.subr.bf16.mxu0 0
  %941 = vmatpush1.bf16.msra.mxu0 0
  %942 = vmatprep.subr.bf16.mxu0 0
  %943 = vmatpush1.bf16.msra.mxu0 0
  %944 = vmatprep.subr.bf16.mxu0 0
  %945 = vmatpush1.bf16.msra.mxu0 0
  %946 = vmatprep.subr.bf16.mxu0 0
  %947 = vmatpush1.bf16.msra.mxu0 %v930
  %948 = vmatprep.subr.bf16.mxu0 0
  %949 = vmatpush2.bf16.msra.mxu0 0
  %950 = vmatprep.subr.bf16.mxu0 0
  %951 = vmatpush2.bf16.msra.mxu0 0
  %952 = vmatprep.subr.bf16.mxu0 0
  %953 = vmatpush2.bf16.msra.mxu0 0
  %954 = vmatprep.subr.bf16.mxu0 0
  %955 = vmatpush2.bf16.msra.mxu0 0
  %956 = vmatprep.subr.bf16.mxu0 0
  %957 = vmatpush2.bf16.msra.mxu0 0
  %958 = vmatprep.subr.bf16.mxu0 0
  %959 = vmatpush2.bf16.msra.mxu0 0
  %960 = vmatprep.subr.bf16.mxu0 0
  %961 = vmatpush2.bf16.msra.mxu0 0
  %962 = vmatprep.subr.bf16.mxu0 0
  %963 = vmatpush2.bf16.msra.mxu0 0
  %964 = vmatprep.mubr.bf16.mxu0 0
  %965 = vmatmul.mubr.bf16.gmra.mxu0 %v927
  %v966 = vpop.f32.mrf.mxu0
  %v967 = vadd.f32 0.0, %v966
  %v968 = vpop.f32.mrf.mxu0
  %v969 = vpop.f32.mrf.mxu0
  %v970 = vadd.f32 0.0, %v969
  %v971 = vpop.f32.mrf.mxu0
  %972 = vdwg.mxu0
  %v974 = vsel %vm305, %v515, 0
  %v977 = vsel %vm425, %v516, 0
  %979 = vmatprep.subr.bf16.mxu0 0
  %980 = vmatpush1.bf16.msra.mxu0 0
  %981 = vmatprep.subr.bf16.mxu0 0
  %982 = vmatpush1.bf16.msra.mxu0 0
  %983 = vmatprep.subr.bf16.mxu0 0
  %984 = vmatpush1.bf16.msra.mxu0 0
  %985 = vmatprep.subr.bf16.mxu0 0
  %986 = vmatpush1.bf16.msra.mxu0 0
  %987 = vmatprep.subr.bf16.mxu0 0
  %988 = vmatpush1.bf16.msra.mxu0 0
  %989 = vmatprep.subr.bf16.mxu0 0
  %990 = vmatpush1.bf16.msra.mxu0 0
  %991 = vmatprep.subr.bf16.mxu0 0
  %992 = vmatpush1.bf16.msra.mxu0 0
  %993 = vmatprep.subr.bf16.mxu0 0
  %994 = vmatpush1.bf16.msra.mxu0 %v977
  %995 = vmatprep.subr.bf16.mxu0 0
  %996 = vmatpush2.bf16.msra.mxu0 0
  %997 = vmatprep.subr.bf16.mxu0 0
  %998 = vmatpush2.bf16.msra.mxu0 0
  %999 = vmatprep.subr.bf16.mxu0 0
  %1000 = vmatpush2.bf16.msra.mxu0 0
  %1001 = vmatprep.subr.bf16.mxu0 0
  %1002 = vmatpush2.bf16.msra.mxu0 0
  %1003 = vmatprep.subr.bf16.mxu0 0
  %1004 = vmatpush2.bf16.msra.mxu0 0
  %1005 = vmatprep.subr.bf16.mxu0 0
  %1006 = vmatpush2.bf16.msra.mxu0 0
  %1007 = vmatprep.subr.bf16.mxu0 0
  %1008 = vmatpush2.bf16.msra.mxu0 0
  %1009 = vmatprep.subr.bf16.mxu0 0
  %1010 = vmatpush2.bf16.msra.mxu0 0
  %1011 = vmatprep.mubr.bf16.mxu0 0
  %1012 = vmatmul.mubr.bf16.gmra.mxu0 %v974
  %v1013 = vpop.f32.mrf.mxu0
  %v1014 = vadd.f32 %v967, %v1013
  %v1015 = vpop.f32.mrf.mxu0
  %v1016 = vpop.f32.mrf.mxu0
  %v1017 = vadd.f32 %v970, %v1016
  %v1018 = vpop.f32.mrf.mxu0
  %1019 = vdwg.mxu0
  %s1020 = scalar_lea.vmem %s4, 32
  %v1021 = vld [vmem:[%s1020] sm:$0xf]
  %v1022 = vld [vmem:[%s1020 + $0x4] sm:$0xf]
  %v1023 = vld [vmem:[%s1020 + $0x8] sm:$0xf]
  %v1024 = vld [vmem:[%s1020 + $0xc] sm:$0xf]
  %v1026 = vlaneseq
  %v1027 = vshrl.u32 %v1026, 7
  %v1028 = vsub.s32 0, %v1027
  %v1029 = vrot.slane %v64, %v1028
  %v1035 = vunpack.c.l.b16 %v1021
  %v1036 = vunpack.c.l.b16 %v1022
  %v1037 = vunpack.c.l.b16 %v1023
  %v1038 = vunpack.c.l.b16 %v1024
  %v1039 = vpack.c.b16 %v1036, %v1035
  %v1040 = vpack.c.b16 %v1038, %v1037
  %1043 = vmatprep.subr.bf16.mxu0 0
  %1044 = vmatpush1.bf16.msra.mxu0 0
  %1045 = vmatprep.subr.bf16.mxu0 0
  %1046 = vmatpush1.bf16.msra.mxu0 0
  %1047 = vmatprep.subr.bf16.mxu0 0
  %1048 = vmatpush1.bf16.msra.mxu0 0
  %1049 = vmatprep.subr.bf16.mxu0 0
  %1050 = vmatpush1.bf16.msra.mxu0 0
  %1051 = vmatprep.subr.bf16.mxu0 0
  %1052 = vmatpush1.bf16.msra.mxu0 0
  %1053 = vmatprep.subr.bf16.mxu0 0
  %1054 = vmatpush1.bf16.msra.mxu0 0
  %1055 = vmatprep.subr.bf16.mxu0 0
  %1056 = vmatpush1.bf16.msra.mxu0 %v1040
  %1057 = vmatprep.subr.bf16.mxu0 0
  %1058 = vmatpush1.bf16.msra.mxu0 %v1039
  %1059 = vmatprep.subr.bf16.mxu0 0
  %1060 = vmatpush2.bf16.msra.mxu0 0
  %1061 = vmatprep.subr.bf16.mxu0 0
  %1062 = vmatpush2.bf16.msra.mxu0 0
  %1063 = vmatprep.subr.bf16.mxu0 0
  %1064 = vmatpush2.bf16.msra.mxu0 0
  %1065 = vmatprep.subr.bf16.mxu0 0
  %1066 = vmatpush2.bf16.msra.mxu0 0
  %1067 = vmatprep.subr.bf16.mxu0 0
  %1068 = vmatpush2.bf16.msra.mxu0 0
  %1069 = vmatprep.subr.bf16.mxu0 0
  %1070 = vmatpush2.bf16.msra.mxu0 0
  %1071 = vmatprep.subr.bf16.mxu0 0
  %1072 = vmatpush2.bf16.msra.mxu0 0
  %1073 = vmatprep.subr.bf16.mxu0 0
  %1074 = vmatpush2.bf16.msra.mxu0 0
  %1075 = vmatprep.mubr.bf16.mxu0 0
  %1076 = vmatmul.mubr.bf16.gmra.mxu0 %v127
  %v1077 = vpop.f32.mrf.mxu0
  %v1078 = vadd.f32 %v1029, %v1077
  %v1079 = vpop.f32.mrf.mxu0
  %v1080 = vpop.f32.mrf.mxu0
  %v1081 = vadd.f32 %v1029, %v1080
  %v1082 = vpop.f32.mrf.mxu0
  %1083 = vdwg.mxu0
  %s1084 = scalar_lea.vmem %s5, 32
  %v1085 = vld [vmem:[%s1084] sm:$0xf]
  %v1086 = vld [vmem:[%s1084 + $0x4] sm:$0xf]
  %v1087 = vld [vmem:[%s1084 + $0x8] sm:$0xf]
  %v1088 = vld [vmem:[%s1084 + $0xc] sm:$0xf]
  %v1090 = vlaneseq
  %v1091 = vshrl.u32 %v1090, 7
  %v1092 = vsub.s32 0, %v1091
  %v1093 = vrot.slane %v68, %v1092
  %v1099 = vunpack.c.l.b16 %v1085
  %v1100 = vunpack.c.l.b16 %v1086
  %v1101 = vunpack.c.l.b16 %v1087
  %v1102 = vunpack.c.l.b16 %v1088
  %v1103 = vpack.c.b16 %v1100, %v1099
  %v1104 = vpack.c.b16 %v1102, %v1101
  %1107 = vmatprep.subr.bf16.mxu0 0
  %1108 = vmatpush1.bf16.msra.mxu0 0
  %1109 = vmatprep.subr.bf16.mxu0 0
  %1110 = vmatpush1.bf16.msra.mxu0 0
  %1111 = vmatprep.subr.bf16.mxu0 0
  %1112 = vmatpush1.bf16.msra.mxu0 0
  %1113 = vmatprep.subr.bf16.mxu0 0
  %1114 = vmatpush1.bf16.msra.mxu0 0
  %1115 = vmatprep.subr.bf16.mxu0 0
  %1116 = vmatpush1.bf16.msra.mxu0 0
  %1117 = vmatprep.subr.bf16.mxu0 0
  %1118 = vmatpush1.bf16.msra.mxu0 0
  %1119 = vmatprep.subr.bf16.mxu0 0
  %1120 = vmatpush1.bf16.msra.mxu0 %v1104
  %1121 = vmatprep.subr.bf16.mxu0 0
  %1122 = vmatpush1.bf16.msra.mxu0 %v1103
  %1123 = vmatprep.subr.bf16.mxu0 0
  %1124 = vmatpush2.bf16.msra.mxu0 0
  %1125 = vmatprep.subr.bf16.mxu0 0
  %1126 = vmatpush2.bf16.msra.mxu0 0
  %1127 = vmatprep.subr.bf16.mxu0 0
  %1128 = vmatpush2.bf16.msra.mxu0 0
  %1129 = vmatprep.subr.bf16.mxu0 0
  %1130 = vmatpush2.bf16.msra.mxu0 0
  %1131 = vmatprep.subr.bf16.mxu0 0
  %1132 = vmatpush2.bf16.msra.mxu0 0
  %1133 = vmatprep.subr.bf16.mxu0 0
  %1134 = vmatpush2.bf16.msra.mxu0 0
  %1135 = vmatprep.subr.bf16.mxu0 0
  %1136 = vmatpush2.bf16.msra.mxu0 0
  %1137 = vmatprep.subr.bf16.mxu0 0
  %1138 = vmatpush2.bf16.msra.mxu0 0
  %1139 = vmatprep.mubr.bf16.mxu0 0
  %1140 = vmatmul.mubr.bf16.gmra.mxu0 %v127
  %v1141 = vpop.f32.mrf.mxu0
  %v1142 = vadd.f32 %v1093, %v1141
  %v1143 = vpop.f32.mrf.mxu0
  %v1144 = vpop.f32.mrf.mxu0
  %v1145 = vadd.f32 %v1093, %v1144
  %v1146 = vpop.f32.mrf.mxu0
  %1147 = vdwg.mxu0
  %s1148 = scalar_lea.vmem %s6, 32
  %v1149 = vld [vmem:[%s1148] sm:$0xf]
  %v1150 = vld [vmem:[%s1148 + $0x4] sm:$0xf]
  %v1151 = vld [vmem:[%s1148 + $0x8] sm:$0xf]
  %v1152 = vld [vmem:[%s1148 + $0xc] sm:$0xf]
  %v1154 = vlaneseq
  %v1155 = vshrl.u32 %v1154, 7
  %v1156 = vsub.s32 0, %v1155
  %v1157 = vrot.slane %v72, %v1156
  %v1163 = vunpack.c.l.b16 %v1149
  %v1164 = vunpack.c.l.b16 %v1150
  %v1165 = vunpack.c.l.b16 %v1151
  %v1166 = vunpack.c.l.b16 %v1152
  %v1167 = vpack.c.b16 %v1164, %v1163
  %v1168 = vpack.c.b16 %v1166, %v1165
  %1171 = vmatprep.subr.bf16.mxu0 0
  %1172 = vmatpush1.bf16.msra.mxu0 0
  %1173 = vmatprep.subr.bf16.mxu0 0
  %1174 = vmatpush1.bf16.msra.mxu0 0
  %1175 = vmatprep.subr.bf16.mxu0 0
  %1176 = vmatpush1.bf16.msra.mxu0 0
  %1177 = vmatprep.subr.bf16.mxu0 0
  %1178 = vmatpush1.bf16.msra.mxu0 0
  %1179 = vmatprep.subr.bf16.mxu0 0
  %1180 = vmatpush1.bf16.msra.mxu0 0
  %1181 = vmatprep.subr.bf16.mxu0 0
  %1182 = vmatpush1.bf16.msra.mxu0 0
  %1183 = vmatprep.subr.bf16.mxu0 0
  %1184 = vmatpush1.bf16.msra.mxu0 %v1168
  %1185 = vmatprep.subr.bf16.mxu0 0
  %1186 = vmatpush1.bf16.msra.mxu0 %v1167
  %1187 = vmatprep.subr.bf16.mxu0 0
  %1188 = vmatpush2.bf16.msra.mxu0 0
  %1189 = vmatprep.subr.bf16.mxu0 0
  %1190 = vmatpush2.bf16.msra.mxu0 0
  %1191 = vmatprep.subr.bf16.mxu0 0
  %1192 = vmatpush2.bf16.msra.mxu0 0
  %1193 = vmatprep.subr.bf16.mxu0 0
  %1194 = vmatpush2.bf16.msra.mxu0 0
  %1195 = vmatprep.subr.bf16.mxu0 0
  %1196 = vmatpush2.bf16.msra.mxu0 0
  %1197 = vmatprep.subr.bf16.mxu0 0
  %1198 = vmatpush2.bf16.msra.mxu0 0
  %1199 = vmatprep.subr.bf16.mxu0 0
  %1200 = vmatpush2.bf16.msra.mxu0 0
  %1201 = vmatprep.subr.bf16.mxu0 0
  %1202 = vmatpush2.bf16.msra.mxu0 0
  %1203 = vmatprep.mubr.bf16.mxu0 0
  %1204 = vmatmul.mubr.bf16.gmra.mxu0 %v256
  %v1205 = vpop.f32.mrf.mxu0
  %v1206 = vadd.f32 %v1157, %v1205
  %v1207 = vpop.f32.mrf.mxu0
  %v1208 = vpop.f32.mrf.mxu0
  %v1209 = vadd.f32 %v1157, %v1208
  %v1210 = vpop.f32.mrf.mxu0
  %1211 = vdwg.mxu0
  %v1212 = vpack.c.bf16 %v1078, %v1078
  %v1213 = vpack.c.bf16 %v1081, %v1081
  %v1214 = vpack.c.bf16 %v1142, %v1142
  %v1215 = vpack.c.bf16 %v1145, %v1145
  %v1216 = vpack.c.bf16 %v1206, %v1206
  %v1217 = vpack.c.bf16 %v1209, %v1209
  %v1219 = vsel %vm305, %v1212, 0
  %v1222 = vsel %vm305, %v1214, 0
  %1224 = vmatprep.subr.bf16.mxu0 0
  %1225 = vmatpush1.bf16.xpose.msra.mxu0 0
  %1226 = vmatprep.subr.bf16.mxu0 0
  %1227 = vmatpush1.bf16.xpose.msra.mxu0 0
  %1228 = vmatprep.subr.bf16.mxu0 0
  %1229 = vmatpush1.bf16.xpose.msra.mxu0 0
  %1230 = vmatprep.subr.bf16.mxu0 0
  %1231 = vmatpush1.bf16.xpose.msra.mxu0 0
  %1232 = vmatprep.subr.bf16.mxu0 0
  %1233 = vmatpush1.bf16.xpose.msra.mxu0 0
  %1234 = vmatprep.subr.bf16.mxu0 0
  %1235 = vmatpush1.bf16.xpose.msra.mxu0 0
  %1236 = vmatprep.subr.bf16.mxu0 0
  %1237 = vmatpush1.bf16.xpose.msra.mxu0 0
  %1238 = vmatprep.subr.bf16.mxu0 0
  %1239 = vmatpush1.bf16.xpose.msra.mxu0 %v1222
  %1240 = vmatprep.subr.bf16.mxu0 0
  %1241 = vmatpush2.bf16.xpose.msra.mxu0 0
  %1242 = vmatprep.subr.bf16.mxu0 0
  %1243 = vmatpush2.bf16.xpose.msra.mxu0 0
  %1244 = vmatprep.subr.bf16.mxu0 0
  %1245 = vmatpush2.bf16.xpose.msra.mxu0 0
  %1246 = vmatprep.subr.bf16.mxu0 0
  %1247 = vmatpush2.bf16.xpose.msra.mxu0 0
  %1248 = vmatprep.subr.bf16.mxu0 0
  %1249 = vmatpush2.bf16.xpose.msra.mxu0 0
  %1250 = vmatprep.subr.bf16.mxu0 0
  %1251 = vmatpush2.bf16.xpose.msra.mxu0 0
  %1252 = vmatprep.subr.bf16.mxu0 0
  %1253 = vmatpush2.bf16.xpose.msra.mxu0 0
  %1254 = vmatprep.subr.bf16.mxu0 0
  %1255 = vmatpush2.bf16.xpose.msra.mxu0 0
  %1256 = vmatprep.mubr.bf16.mxu0 0
  %1257 = vmatmul.mubr.bf16.gmra.mxu0 %v1219
  %v1258 = vpop.f32.mrf.mxu0
  %v1259 = vadd.f32 0.0, %v1258
  %v1260 = vpop.f32.mrf.mxu0
  %v1261 = vpop.f32.mrf.mxu0
  %v1262 = vpop.f32.mrf.mxu0
  %1263 = vdwg.mxu0
  %v1265 = vsel %vm305, %v1213, 0
  %v1268 = vsel %vm305, %v1215, 0
  %1270 = vmatprep.subr.bf16.mxu0 0
  %1271 = vmatpush1.bf16.xpose.msra.mxu0 0
  %1272 = vmatprep.subr.bf16.mxu0 0
  %1273 = vmatpush1.bf16.xpose.msra.mxu0 0
  %1274 = vmatprep.subr.bf16.mxu0 0
  %1275 = vmatpush1.bf16.xpose.msra.mxu0 0
  %1276 = vmatprep.subr.bf16.mxu0 0
  %1277 = vmatpush1.bf16.xpose.msra.mxu0 0
  %1278 = vmatprep.subr.bf16.mxu0 0
  %1279 = vmatpush1.bf16.xpose.msra.mxu0 0
  %1280 = vmatprep.subr.bf16.mxu0 0
  %1281 = vmatpush1.bf16.xpose.msra.mxu0 0
  %1282 = vmatprep.subr.bf16.mxu0 0
  %1283 = vmatpush1.bf16.xpose.msra.mxu0 0
  %1284 = vmatprep.subr.bf16.mxu0 0
  %1285 = vmatpush1.bf16.xpose.msra.mxu0 %v1268
  %1286 = vmatprep.subr.bf16.mxu0 0
  %1287 = vmatpush2.bf16.xpose.msra.mxu0 0
  %1288 = vmatprep.subr.bf16.mxu0 0
  %1289 = vmatpush2.bf16.xpose.msra.mxu0 0
  %1290 = vmatprep.subr.bf16.mxu0 0
  %1291 = vmatpush2.bf16.xpose.msra.mxu0 0
  %1292 = vmatprep.subr.bf16.mxu0 0
  %1293 = vmatpush2.bf16.xpose.msra.mxu0 0
  %1294 = vmatprep.subr.bf16.mxu0 0
  %1295 = vmatpush2.bf16.xpose.msra.mxu0 0
  %1296 = vmatprep.subr.bf16.mxu0 0
  %1297 = vmatpush2.bf16.xpose.msra.mxu0 0
  %1298 = vmatprep.subr.bf16.mxu0 0
  %1299 = vmatpush2.bf16.xpose.msra.mxu0 0
  %1300 = vmatprep.subr.bf16.mxu0 0
  %1301 = vmatpush2.bf16.xpose.msra.mxu0 0
  %1302 = vmatprep.mubr.bf16.mxu0 0
  %1303 = vmatmul.mubr.bf16.gmra.mxu0 %v1265
  %v1304 = vpop.f32.mrf.mxu0
  %v1305 = vadd.f32 0.0, %v1304
  %v1306 = vpop.f32.mrf.mxu0
  %v1307 = vpop.f32.mrf.mxu0
  %v1308 = vpop.f32.mrf.mxu0
  %1309 = vdwg.mxu0
  %v1310 = vsel %vm305, %v1259, -inf
  %1311 = vmax.xlane.f32.xlu0 %v1310
  %v1312 = vpop.xlane.xlu0 %1311
  %v1313 = vsel %vm305, %v1305, -inf
  %1314 = vmax.xlane.f32.xlu0 %v1313
  %v1315 = vpop.xlane.xlu0 %1314
  %v1316 = vsub.f32 %v1259, %v1312
  %v1317 = vsub.f32 %v1305, %v1315
  %v1318 = vmul.f32 %v1316, 1.442695
  %v1319 = vpow.pop %v1318
  %v1320 = vmul.f32 %v1317, 1.442695
  %v1321 = vpow.pop %v1320
  %v1322 = vsel %vm305, %v1319, 0.0
  %1323 = vadd.xlane.f32.xlu0 %v1322
  %v1324 = vpop.xlane.xlu0 %1323
  %v1325 = vsel %vm305, %v1321, 0.0
  %1326 = vadd.xlane.f32.xlu0 %v1325
  %v1327 = vpop.xlane.xlu0 %1326
  %v1328 = vrcp.pop %v1324
  %v1329 = vrcp.pop %v1327
  %v1330 = vmul.f32 %v1319, %v1328
  %v1331 = vmul.f32 %v1321, %v1329
  %v1332 = vpack.c.bf16 %v1330, %v1330
  %v1333 = vpack.c.bf16 %v1331, %v1331
  %v1335 = vsel %vm305, %v1332, 0
  %v1338 = vsel %vm425, %v1216, 0
  %1340 = vmatprep.subr.bf16.mxu0 0
  %1341 = vmatpush1.bf16.msra.mxu0 0
  %1342 = vmatprep.subr.bf16.mxu0 0
  %1343 = vmatpush1.bf16.msra.mxu0 0
  %1344 = vmatprep.subr.bf16.mxu0 0
  %1345 = vmatpush1.bf16.msra.mxu0 0
  %1346 = vmatprep.subr.bf16.mxu0 0
  %1347 = vmatpush1.bf16.msra.mxu0 0
  %1348 = vmatprep.subr.bf16.mxu0 0
  %1349 = vmatpush1.bf16.msra.mxu0 0
  %1350 = vmatprep.subr.bf16.mxu0 0
  %1351 = vmatpush1.bf16.msra.mxu0 0
  %1352 = vmatprep.subr.bf16.mxu0 0
  %1353 = vmatpush1.bf16.msra.mxu0 0
  %1354 = vmatprep.subr.bf16.mxu0 0
  %1355 = vmatpush1.bf16.msra.mxu0 %v1338
  %1356 = vmatprep.subr.bf16.mxu0 0
  %1357 = vmatpush2.bf16.msra.mxu0 0
  %1358 = vmatprep.subr.bf16.mxu0 0
  %1359 = vmatpush2.bf16.msra.mxu0 0
  %1360 = vmatprep.subr.bf16.mxu0 0
  %1361 = vmatpush2.bf16.msra.mxu0 0
  %1362 = vmatprep.subr.bf16.mxu0 0
  %1363 = vmatpush2.bf16.msra.mxu0 0
  %1364 = vmatprep.subr.bf16.mxu0 0
  %1365 = vmatpush2.bf16.msra.mxu0 0
  %1366 = vmatprep.subr.bf16.mxu0 0
  %1367 = vmatpush2.bf16.msra.mxu0 0
  %1368 = vmatprep.subr.bf16.mxu0 0
  %1369 = vmatpush2.bf16.msra.mxu0 0
  %1370 = vmatprep.subr.bf16.mxu0 0
  %1371 = vmatpush2.bf16.msra.mxu0 0
  %1372 = vmatprep.mubr.bf16.mxu0 0
  %1373 = vmatmul.mubr.bf16.gmra.mxu0 %v1335
  %v1374 = vpop.f32.mrf.mxu0
  %v1375 = vadd.f32 0.0, %v1374
  %v1376 = vpop.f32.mrf.mxu0
  %v1377 = vpop.f32.mrf.mxu0
  %v1378 = vpop.f32.mrf.mxu0
  %1379 = vdwg.mxu0
  %v1381 = vsel %vm305, %v1333, 0
  %v1384 = vsel %vm425, %v1217, 0
  %1386 = vmatprep.subr.bf16.mxu0 0
  %1387 = vmatpush1.bf16.msra.mxu0 0
  %1388 = vmatprep.subr.bf16.mxu0 0
  %1389 = vmatpush1.bf16.msra.mxu0 0
  %1390 = vmatprep.subr.bf16.mxu0 0
  %1391 = vmatpush1.bf16.msra.mxu0 0
  %1392 = vmatprep.subr.bf16.mxu0 0
  %1393 = vmatpush1.bf16.msra.mxu0 0
  %1394 = vmatprep.subr.bf16.mxu0 0
  %1395 = vmatpush1.bf16.msra.mxu0 0
  %1396 = vmatprep.subr.bf16.mxu0 0
  %1397 = vmatpush1.bf16.msra.mxu0 0
  %1398 = vmatprep.subr.bf16.mxu0 0
  %1399 = vmatpush1.bf16.msra.mxu0 0
  %1400 = vmatprep.subr.bf16.mxu0 0
  %1401 = vmatpush1.bf16.msra.mxu0 %v1384
  %1402 = vmatprep.subr.bf16.mxu0 0
  %1403 = vmatpush2.bf16.msra.mxu0 0
  %1404 = vmatprep.subr.bf16.mxu0 0
  %1405 = vmatpush2.bf16.msra.mxu0 0
  %1406 = vmatprep.subr.bf16.mxu0 0
  %1407 = vmatpush2.bf16.msra.mxu0 0
  %1408 = vmatprep.subr.bf16.mxu0 0
  %1409 = vmatpush2.bf16.msra.mxu0 0
  %1410 = vmatprep.subr.bf16.mxu0 0
  %1411 = vmatpush2.bf16.msra.mxu0 0
  %1412 = vmatprep.subr.bf16.mxu0 0
  %1413 = vmatpush2.bf16.msra.mxu0 0
  %1414 = vmatprep.subr.bf16.mxu0 0
  %1415 = vmatpush2.bf16.msra.mxu0 0
  %1416 = vmatprep.subr.bf16.mxu0 0
  %1417 = vmatpush2.bf16.msra.mxu0 0
  %1418 = vmatprep.mubr.bf16.mxu0 0
  %1419 = vmatmul.mubr.bf16.gmra.mxu0 %v1381
  %v1420 = vpop.f32.mrf.mxu0
  %v1421 = vadd.f32 0.0, %v1420
  %v1422 = vpop.f32.mrf.mxu0
  %v1423 = vpop.f32.mrf.mxu0
  %v1424 = vpop.f32.mrf.mxu0
  %1425 = vdwg.mxu0
  %v1426 = vpack.c.bf16 %v1421, %v1375
  %s1427 = scalar_lea.vmem %s7, 8
  %v1428 = vld [vmem:[%s1427] sm:$0xf]
  %v1430 = vsel %vm305, %v1426, 0
  %v1433 = vsel %vm425, %v1428, 0
  %1435 = vmatprep.subr.bf16.mxu0 0
  %1436 = vmatpush1.bf16.msra.mxu0 0
  %1437 = vmatprep.subr.bf16.mxu0 0
  %1438 = vmatpush1.bf16.msra.mxu0 0
  %1439 = vmatprep.subr.bf16.mxu0 0
  %1440 = vmatpush1.bf16.msra.mxu0 0
  %1441 = vmatprep.subr.bf16.mxu0 0
  %1442 = vmatpush1.bf16.msra.mxu0 0
  %1443 = vmatprep.subr.bf16.mxu0 0
  %1444 = vmatpush1.bf16.msra.mxu0 0
  %1445 = vmatprep.subr.bf16.mxu0 0
  %1446 = vmatpush1.bf16.msra.mxu0 0
  %1447 = vmatprep.subr.bf16.mxu0 0
  %1448 = vmatpush1.bf16.msra.mxu0 0
  %1449 = vmatprep.subr.bf16.mxu0 0
  %1450 = vmatpush1.bf16.msra.mxu0 %v1433
  %1451 = vmatprep.subr.bf16.mxu0 0
  %1452 = vmatpush2.bf16.msra.mxu0 0
  %1453 = vmatprep.subr.bf16.mxu0 0
  %1454 = vmatpush2.bf16.msra.mxu0 0
  %1455 = vmatprep.subr.bf16.mxu0 0
  %1456 = vmatpush2.bf16.msra.mxu0 0
  %1457 = vmatprep.subr.bf16.mxu0 0
  %1458 = vmatpush2.bf16.msra.mxu0 0
  %1459 = vmatprep.subr.bf16.mxu0 0
  %1460 = vmatpush2.bf16.msra.mxu0 0
  %1461 = vmatprep.subr.bf16.mxu0 0
  %1462 = vmatpush2.bf16.msra.mxu0 0
  %1463 = vmatprep.subr.bf16.mxu0 0
  %1464 = vmatpush2.bf16.msra.mxu0 0
  %1465 = vmatprep.subr.bf16.mxu0 0
  %1466 = vmatpush2.bf16.msra.mxu0 0
  %1467 = vmatprep.mubr.bf16.mxu0 0
  %1468 = vmatmul.mubr.bf16.gmra.mxu0 %v1430
  %v1469 = vpop.f32.mrf.mxu0
  %v1470 = vadd.f32 0.0, %v1469
  %v1471 = vpop.f32.mrf.mxu0
  %v1472 = vpop.f32.mrf.mxu0
  %v1473 = vadd.f32 0.0, %v1472
  %v1474 = vpop.f32.mrf.mxu0
  %1475 = vdwg.mxu0
  %v1476 = vadd.f32 %v1014, %v1470
  %v1477 = vadd.f32 %v1017, %v1473
  %s1478 = scalar_lea.vmem %s4, 48
  %v1479 = vld [vmem:[%s1478] sm:$0xf]
  %v1480 = vld [vmem:[%s1478 + $0x4] sm:$0xf]
  %v1481 = vld [vmem:[%s1478 + $0x8] sm:$0xf]
  %v1482 = vld [vmem:[%s1478 + $0xc] sm:$0xf]
  %v1484 = vlaneseq
  %v1485 = vshrl.u32 %v1484, 7
  %v1486 = vsub.s32 0, %v1485
  %v1487 = vrot.slane %v65, %v1486
  %v1493 = vunpack.c.l.b16 %v1479
  %v1494 = vunpack.c.l.b16 %v1480
  %v1495 = vunpack.c.l.b16 %v1481
  %v1496 = vunpack.c.l.b16 %v1482
  %v1497 = vpack.c.b16 %v1494, %v1493
  %v1498 = vpack.c.b16 %v1496, %v1495
  %1501 = vmatprep.subr.bf16.mxu0 0
  %1502 = vmatpush1.bf16.msra.mxu0 0
  %1503 = vmatprep.subr.bf16.mxu0 0
  %1504 = vmatpush1.bf16.msra.mxu0 0
  %1505 = vmatprep.subr.bf16.mxu0 0
  %1506 = vmatpush1.bf16.msra.mxu0 0
  %1507 = vmatprep.subr.bf16.mxu0 0
  %1508 = vmatpush1.bf16.msra.mxu0 0
  %1509 = vmatprep.subr.bf16.mxu0 0
  %1510 = vmatpush1.bf16.msra.mxu0 0
  %1511 = vmatprep.subr.bf16.mxu0 0
  %1512 = vmatpush1.bf16.msra.mxu0 0
  %1513 = vmatprep.subr.bf16.mxu0 0
  %1514 = vmatpush1.bf16.msra.mxu0 %v1498
  %1515 = vmatprep.subr.bf16.mxu0 0
  %1516 = vmatpush1.bf16.msra.mxu0 %v1497
  %1517 = vmatprep.subr.bf16.mxu0 0
  %1518 = vmatpush2.bf16.msra.mxu0 0
  %1519 = vmatprep.subr.bf16.mxu0 0
  %1520 = vmatpush2.bf16.msra.mxu0 0
  %1521 = vmatprep.subr.bf16.mxu0 0
  %1522 = vmatpush2.bf16.msra.mxu0 0
  %1523 = vmatprep.subr.bf16.mxu0 0
  %1524 = vmatpush2.bf16.msra.mxu0 0
  %1525 = vmatprep.subr.bf16.mxu0 0
  %1526 = vmatpush2.bf16.msra.mxu0 0
  %1527 = vmatprep.subr.bf16.mxu0 0
  %1528 = vmatpush2.bf16.msra.mxu0 0
  %1529 = vmatprep.subr.bf16.mxu0 0
  %1530 = vmatpush2.bf16.msra.mxu0 0
  %1531 = vmatprep.subr.bf16.mxu0 0
  %1532 = vmatpush2.bf16.msra.mxu0 0
  %1533 = vmatprep.mubr.bf16.mxu0 0
  %1534 = vmatmul.mubr.bf16.gmra.mxu0 %v127
  %v1535 = vpop.f32.mrf.mxu0
  %v1536 = vadd.f32 %v1487, %v1535
  %v1537 = vpop.f32.mrf.mxu0
  %v1538 = vpop.f32.mrf.mxu0
  %v1539 = vadd.f32 %v1487, %v1538
  %v1540 = vpop.f32.mrf.mxu0
  %1541 = vdwg.mxu0
  %s1542 = scalar_lea.vmem %s5, 48
  %v1543 = vld [vmem:[%s1542] sm:$0xf]
  %v1544 = vld [vmem:[%s1542 + $0x4] sm:$0xf]
  %v1545 = vld [vmem:[%s1542 + $0x8] sm:$0xf]
  %v1546 = vld [vmem:[%s1542 + $0xc] sm:$0xf]
  %v1548 = vlaneseq
  %v1549 = vshrl.u32 %v1548, 7
  %v1550 = vsub.s32 0, %v1549
  %v1551 = vrot.slane %v69, %v1550
  %v1557 = vunpack.c.l.b16 %v1543
  %v1558 = vunpack.c.l.b16 %v1544
  %v1559 = vunpack.c.l.b16 %v1545
  %v1560 = vunpack.c.l.b16 %v1546
  %v1561 = vpack.c.b16 %v1558, %v1557
  %v1562 = vpack.c.b16 %v1560, %v1559
  %1565 = vmatprep.subr.bf16.mxu0 0
  %1566 = vmatpush1.bf16.msra.mxu0 0
  %1567 = vmatprep.subr.bf16.mxu0 0
  %1568 = vmatpush1.bf16.msra.mxu0 0
  %1569 = vmatprep.subr.bf16.mxu0 0
  %1570 = vmatpush1.bf16.msra.mxu0 0
  %1571 = vmatprep.subr.bf16.mxu0 0
  %1572 = vmatpush1.bf16.msra.mxu0 0
  %1573 = vmatprep.subr.bf16.mxu0 0
  %1574 = vmatpush1.bf16.msra.mxu0 0
  %1575 = vmatprep.subr.bf16.mxu0 0
  %1576 = vmatpush1.bf16.msra.mxu0 0
  %1577 = vmatprep.subr.bf16.mxu0 0
  %1578 = vmatpush1.bf16.msra.mxu0 %v1562
  %1579 = vmatprep.subr.bf16.mxu0 0
  %1580 = vmatpush1.bf16.msra.mxu0 %v1561
  %1581 = vmatprep.subr.bf16.mxu0 0
  %1582 = vmatpush2.bf16.msra.mxu0 0
  %1583 = vmatprep.subr.bf16.mxu0 0
  %1584 = vmatpush2.bf16.msra.mxu0 0
  %1585 = vmatprep.subr.bf16.mxu0 0
  %1586 = vmatpush2.bf16.msra.mxu0 0
  %1587 = vmatprep.subr.bf16.mxu0 0
  %1588 = vmatpush2.bf16.msra.mxu0 0
  %1589 = vmatprep.subr.bf16.mxu0 0
  %1590 = vmatpush2.bf16.msra.mxu0 0
  %1591 = vmatprep.subr.bf16.mxu0 0
  %1592 = vmatpush2.bf16.msra.mxu0 0
  %1593 = vmatprep.subr.bf16.mxu0 0
  %1594 = vmatpush2.bf16.msra.mxu0 0
  %1595 = vmatprep.subr.bf16.mxu0 0
  %1596 = vmatpush2.bf16.msra.mxu0 0
  %1597 = vmatprep.mubr.bf16.mxu0 0
  %1598 = vmatmul.mubr.bf16.gmra.mxu0 %v127
  %v1599 = vpop.f32.mrf.mxu0
  %v1600 = vadd.f32 %v1551, %v1599
  %v1601 = vpop.f32.mrf.mxu0
  %v1602 = vpop.f32.mrf.mxu0
  %v1603 = vadd.f32 %v1551, %v1602
  %v1604 = vpop.f32.mrf.mxu0
  %1605 = vdwg.mxu0
  %s1606 = scalar_lea.vmem %s6, 48
  %v1607 = vld [vmem:[%s1606] sm:$0xf]
  %v1608 = vld [vmem:[%s1606 + $0x4] sm:$0xf]
  %v1609 = vld [vmem:[%s1606 + $0x8] sm:$0xf]
  %v1610 = vld [vmem:[%s1606 + $0xc] sm:$0xf]
  %v1612 = vlaneseq
  %v1613 = vshrl.u32 %v1612, 7
  %v1614 = vsub.s32 0, %v1613
  %v1615 = vrot.slane %v73, %v1614
  %v1621 = vunpack.c.l.b16 %v1607
  %v1622 = vunpack.c.l.b16 %v1608
  %v1623 = vunpack.c.l.b16 %v1609
  %v1624 = vunpack.c.l.b16 %v1610
  %v1625 = vpack.c.b16 %v1622, %v1621
  %v1626 = vpack.c.b16 %v1624, %v1623
  %1629 = vmatprep.subr.bf16.mxu0 0
  %1630 = vmatpush1.bf16.msra.mxu0 0
  %1631 = vmatprep.subr.bf16.mxu0 0
  %1632 = vmatpush1.bf16.msra.mxu0 0
  %1633 = vmatprep.subr.bf16.mxu0 0
  %1634 = vmatpush1.bf16.msra.mxu0 0
  %1635 = vmatprep.subr.bf16.mxu0 0
  %1636 = vmatpush1.bf16.msra.mxu0 0
  %1637 = vmatprep.subr.bf16.mxu0 0
  %1638 = vmatpush1.bf16.msra.mxu0 0
  %1639 = vmatprep.subr.bf16.mxu0 0
  %1640 = vmatpush1.bf16.msra.mxu0 0
  %1641 = vmatprep.subr.bf16.mxu0 0
  %1642 = vmatpush1.bf16.msra.mxu0 %v1626
  %1643 = vmatprep.subr.bf16.mxu0 0
  %1644 = vmatpush1.bf16.msra.mxu0 %v1625
  %1645 = vmatprep.subr.bf16.mxu0 0
  %1646 = vmatpush2.bf16.msra.mxu0 0
  %1647 = vmatprep.subr.bf16.mxu0 0
  %1648 = vmatpush2.bf16.msra.mxu0 0
  %1649 = vmatprep.subr.bf16.mxu0 0
  %1650 = vmatpush2.bf16.msra.mxu0 0
  %1651 = vmatprep.subr.bf16.mxu0 0
  %1652 = vmatpush2.bf16.msra.mxu0 0
  %1653 = vmatprep.subr.bf16.mxu0 0
  %1654 = vmatpush2.bf16.msra.mxu0 0
  %1655 = vmatprep.subr.bf16.mxu0 0
  %1656 = vmatpush2.bf16.msra.mxu0 0
  %1657 = vmatprep.subr.bf16.mxu0 0
  %1658 = vmatpush2.bf16.msra.mxu0 0
  %1659 = vmatprep.subr.bf16.mxu0 0
  %1660 = vmatpush2.bf16.msra.mxu0 0
  %1661 = vmatprep.mubr.bf16.mxu0 0
  %1662 = vmatmul.mubr.bf16.gmra.mxu0 %v256
  %v1663 = vpop.f32.mrf.mxu0
  %v1664 = vadd.f32 %v1615, %v1663
  %v1665 = vpop.f32.mrf.mxu0
  %v1666 = vpop.f32.mrf.mxu0
  %v1667 = vadd.f32 %v1615, %v1666
  %v1668 = vpop.f32.mrf.mxu0
  %1669 = vdwg.mxu0
  %v1670 = vpack.c.bf16 %v1536, %v1536
  %v1671 = vpack.c.bf16 %v1539, %v1539
  %v1672 = vpack.c.bf16 %v1600, %v1600
  %v1673 = vpack.c.bf16 %v1603, %v1603
  %v1674 = vpack.c.bf16 %v1664, %v1664
  %v1675 = vpack.c.bf16 %v1667, %v1667
  %v1677 = vsel %vm305, %v1670, 0
  %v1680 = vsel %vm305, %v1672, 0
  %1682 = vmatprep.subr.bf16.mxu0 0
  %1683 = vmatpush1.bf16.xpose.msra.mxu0 0
  %1684 = vmatprep.subr.bf16.mxu0 0
  %1685 = vmatpush1.bf16.xpose.msra.mxu0 0
  %1686 = vmatprep.subr.bf16.mxu0 0
  %1687 = vmatpush1.bf16.xpose.msra.mxu0 0
  %1688 = vmatprep.subr.bf16.mxu0 0
  %1689 = vmatpush1.bf16.xpose.msra.mxu0 0
  %1690 = vmatprep.subr.bf16.mxu0 0
  %1691 = vmatpush1.bf16.xpose.msra.mxu0 0
  %1692 = vmatprep.subr.bf16.mxu0 0
  %1693 = vmatpush1.bf16.xpose.msra.mxu0 0
  %1694 = vmatprep.subr.bf16.mxu0 0
  %1695 = vmatpush1.bf16.xpose.msra.mxu0 0
  %1696 = vmatprep.subr.bf16.mxu0 0
  %1697 = vmatpush1.bf16.xpose.msra.mxu0 %v1680
  %1698 = vmatprep.subr.bf16.mxu0 0
  %1699 = vmatpush2.bf16.xpose.msra.mxu0 0
  %1700 = vmatprep.subr.bf16.mxu0 0
  %1701 = vmatpush2.bf16.xpose.msra.mxu0 0
  %1702 = vmatprep.subr.bf16.mxu0 0
  %1703 = vmatpush2.bf16.xpose.msra.mxu0 0
  %1704 = vmatprep.subr.bf16.mxu0 0
  %1705 = vmatpush2.bf16.xpose.msra.mxu0 0
  %1706 = vmatprep.subr.bf16.mxu0 0
  %1707 = vmatpush2.bf16.xpose.msra.mxu0 0
  %1708 = vmatprep.subr.bf16.mxu0 0
  %1709 = vmatpush2.bf16.xpose.msra.mxu0 0
  %1710 = vmatprep.subr.bf16.mxu0 0
  %1711 = vmatpush2.bf16.xpose.msra.mxu0 0
  %1712 = vmatprep.subr.bf16.mxu0 0
  %1713 = vmatpush2.bf16.xpose.msra.mxu0 0
  %1714 = vmatprep.mubr.bf16.mxu0 0
  %1715 = vmatmul.mubr.bf16.gmra.mxu0 %v1677
  %v1716 = vpop.f32.mrf.mxu0
  %v1717 = vadd.f32 0.0, %v1716
  %v1718 = vpop.f32.mrf.mxu0
  %v1719 = vpop.f32.mrf.mxu0
  %v1720 = vpop.f32.mrf.mxu0
  %1721 = vdwg.mxu0
  %v1723 = vsel %vm305, %v1671, 0
  %v1726 = vsel %vm305, %v1673, 0
  %1728 = vmatprep.subr.bf16.mxu0 0
  %1729 = vmatpush1.bf16.xpose.msra.mxu0 0
  %1730 = vmatprep.subr.bf16.mxu0 0
  %1731 = vmatpush1.bf16.xpose.msra.mxu0 0
  %1732 = vmatprep.subr.bf16.mxu0 0
  %1733 = vmatpush1.bf16.xpose.msra.mxu0 0
  %1734 = vmatprep.subr.bf16.mxu0 0
  %1735 = vmatpush1.bf16.xpose.msra.mxu0 0
  %1736 = vmatprep.subr.bf16.mxu0 0
  %1737 = vmatpush1.bf16.xpose.msra.mxu0 0
  %1738 = vmatprep.subr.bf16.mxu0 0
  %1739 = vmatpush1.bf16.xpose.msra.mxu0 0
  %1740 = vmatprep.subr.bf16.mxu0 0
  %1741 = vmatpush1.bf16.xpose.msra.mxu0 0
  %1742 = vmatprep.subr.bf16.mxu0 0
  %1743 = vmatpush1.bf16.xpose.msra.mxu0 %v1726
  %1744 = vmatprep.subr.bf16.mxu0 0
  %1745 = vmatpush2.bf16.xpose.msra.mxu0 0
  %1746 = vmatprep.subr.bf16.mxu0 0
  %1747 = vmatpush2.bf16.xpose.msra.mxu0 0
  %1748 = vmatprep.subr.bf16.mxu0 0
  %1749 = vmatpush2.bf16.xpose.msra.mxu0 0
  %1750 = vmatprep.subr.bf16.mxu0 0
  %1751 = vmatpush2.bf16.xpose.msra.mxu0 0
  %1752 = vmatprep.subr.bf16.mxu0 0
  %1753 = vmatpush2.bf16.xpose.msra.mxu0 0
  %1754 = vmatprep.subr.bf16.mxu0 0
  %1755 = vmatpush2.bf16.xpose.msra.mxu0 0
  %1756 = vmatprep.subr.bf16.mxu0 0
  %1757 = vmatpush2.bf16.xpose.msra.mxu0 0
  %1758 = vmatprep.subr.bf16.mxu0 0
  %1759 = vmatpush2.bf16.xpose.msra.mxu0 0
  %1760 = vmatprep.mubr.bf16.mxu0 0
  %1761 = vmatmul.mubr.bf16.gmra.mxu0 %v1723
  %v1762 = vpop.f32.mrf.mxu0
  %v1763 = vadd.f32 0.0, %v1762
  %v1764 = vpop.f32.mrf.mxu0
  %v1765 = vpop.f32.mrf.mxu0
  %v1766 = vpop.f32.mrf.mxu0
  %1767 = vdwg.mxu0
  %v1768 = vsel %vm305, %v1717, -inf
  %1769 = vmax.xlane.f32.xlu0 %v1768
  %v1770 = vpop.xlane.xlu0 %1769
  %v1771 = vsel %vm305, %v1763, -inf
  %1772 = vmax.xlane.f32.xlu0 %v1771
  %v1773 = vpop.xlane.xlu0 %1772
  %v1774 = vsub.f32 %v1717, %v1770
  %v1775 = vsub.f32 %v1763, %v1773
  %v1776 = vmul.f32 %v1774, 1.442695
  %v1777 = vpow.pop %v1776
  %v1778 = vmul.f32 %v1775, 1.442695
  %v1779 = vpow.pop %v1778
  %v1780 = vsel %vm305, %v1777, 0.0
  %1781 = vadd.xlane.f32.xlu0 %v1780
  %v1782 = vpop.xlane.xlu0 %1781
  %v1783 = vsel %vm305, %v1779, 0.0
  %1784 = vadd.xlane.f32.xlu0 %v1783
  %v1785 = vpop.xlane.xlu0 %1784
  %v1786 = vrcp.pop %v1782
  %v1787 = vrcp.pop %v1785
  %v1788 = vmul.f32 %v1777, %v1786
  %v1789 = vmul.f32 %v1779, %v1787
  %v1790 = vpack.c.bf16 %v1788, %v1788
  %v1791 = vpack.c.bf16 %v1789, %v1789
  %v1793 = vsel %vm305, %v1790, 0
  %v1796 = vsel %vm425, %v1674, 0
  %1798 = vmatprep.subr.bf16.mxu0 0
  %1799 = vmatpush1.bf16.msra.mxu0 0
  %1800 = vmatprep.subr.bf16.mxu0 0
  %1801 = vmatpush1.bf16.msra.mxu0 0
  %1802 = vmatprep.subr.bf16.mxu0 0
  %1803 = vmatpush1.bf16.msra.mxu0 0
  %1804 = vmatprep.subr.bf16.mxu0 0
  %1805 = vmatpush1.bf16.msra.mxu0 0
  %1806 = vmatprep.subr.bf16.mxu0 0
  %1807 = vmatpush1.bf16.msra.mxu0 0
  %1808 = vmatprep.subr.bf16.mxu0 0
  %1809 = vmatpush1.bf16.msra.mxu0 0
  %1810 = vmatprep.subr.bf16.mxu0 0
  %1811 = vmatpush1.bf16.msra.mxu0 0
  %1812 = vmatprep.subr.bf16.mxu0 0
  %1813 = vmatpush1.bf16.msra.mxu0 %v1796
  %1814 = vmatprep.subr.bf16.mxu0 0
  %1815 = vmatpush2.bf16.msra.mxu0 0
  %1816 = vmatprep.subr.bf16.mxu0 0
  %1817 = vmatpush2.bf16.msra.mxu0 0
  %1818 = vmatprep.subr.bf16.mxu0 0
  %1819 = vmatpush2.bf16.msra.mxu0 0
  %1820 = vmatprep.subr.bf16.mxu0 0
  %1821 = vmatpush2.bf16.msra.mxu0 0
  %1822 = vmatprep.subr.bf16.mxu0 0
  %1823 = vmatpush2.bf16.msra.mxu0 0
  %1824 = vmatprep.subr.bf16.mxu0 0
  %1825 = vmatpush2.bf16.msra.mxu0 0
  %1826 = vmatprep.subr.bf16.mxu0 0
  %1827 = vmatpush2.bf16.msra.mxu0 0
  %1828 = vmatprep.subr.bf16.mxu0 0
  %1829 = vmatpush2.bf16.msra.mxu0 0
  %1830 = vmatprep.mubr.bf16.mxu0 0
  %1831 = vmatmul.mubr.bf16.gmra.mxu0 %v1793
  %v1832 = vpop.f32.mrf.mxu0
  %v1833 = vadd.f32 0.0, %v1832
  %v1834 = vpop.f32.mrf.mxu0
  %v1835 = vpop.f32.mrf.mxu0
  %v1836 = vpop.f32.mrf.mxu0
  %1837 = vdwg.mxu0
  %v1839 = vsel %vm305, %v1791, 0
  %v1842 = vsel %vm425, %v1675, 0
  %1844 = vmatprep.subr.bf16.mxu0 0
  %1845 = vmatpush1.bf16.msra.mxu0 0
  %1846 = vmatprep.subr.bf16.mxu0 0
  %1847 = vmatpush1.bf16.msra.mxu0 0
  %1848 = vmatprep.subr.bf16.mxu0 0
  %1849 = vmatpush1.bf16.msra.mxu0 0
  %1850 = vmatprep.subr.bf16.mxu0 0
  %1851 = vmatpush1.bf16.msra.mxu0 0
  %1852 = vmatprep.subr.bf16.mxu0 0
  %1853 = vmatpush1.bf16.msra.mxu0 0
  %1854 = vmatprep.subr.bf16.mxu0 0
  %1855 = vmatpush1.bf16.msra.mxu0 0
  %1856 = vmatprep.subr.bf16.mxu0 0
  %1857 = vmatpush1.bf16.msra.mxu0 0
  %1858 = vmatprep.subr.bf16.mxu0 0
  %1859 = vmatpush1.bf16.msra.mxu0 %v1842
  %1860 = vmatprep.subr.bf16.mxu0 0
  %1861 = vmatpush2.bf16.msra.mxu0 0
  %1862 = vmatprep.subr.bf16.mxu0 0
  %1863 = vmatpush2.bf16.msra.mxu0 0
  %1864 = vmatprep.subr.bf16.mxu0 0
  %1865 = vmatpush2.bf16.msra.mxu0 0
  %1866 = vmatprep.subr.bf16.mxu0 0
  %1867 = vmatpush2.bf16.msra.mxu0 0
  %1868 = vmatprep.subr.bf16.mxu0 0
  %1869 = vmatpush2.bf16.msra.mxu0 0
  %1870 = vmatprep.subr.bf16.mxu0 0
  %1871 = vmatpush2.bf16.msra.mxu0 0
  %1872 = vmatprep.subr.bf16.mxu0 0
  %1873 = vmatpush2.bf16.msra.mxu0 0
  %1874 = vmatprep.subr.bf16.mxu0 0
  %1875 = vmatpush2.bf16.msra.mxu0 0
  %1876 = vmatprep.mubr.bf16.mxu0 0
  %1877 = vmatmul.mubr.bf16.gmra.mxu0 %v1839
  %v1878 = vpop.f32.mrf.mxu0
  %v1879 = vadd.f32 0.0, %v1878
  %v1880 = vpop.f32.mrf.mxu0
  %v1881 = vpop.f32.mrf.mxu0
  %v1882 = vpop.f32.mrf.mxu0
  %1883 = vdwg.mxu0
  %v1884 = vpack.c.bf16 %v1879, %v1833
  %s1885 = scalar_lea.vmem %s7, 12
  %v1886 = vld [vmem:[%s1885] sm:$0xf]
  %v1888 = vsel %vm305, %v1884, 0
  %v1891 = vsel %vm425, %v1886, 0
  %1893 = vmatprep.subr.bf16.mxu0 0
  %1894 = vmatpush1.bf16.msra.mxu0 0
  %1895 = vmatprep.subr.bf16.mxu0 0
  %1896 = vmatpush1.bf16.msra.mxu0 0
  %1897 = vmatprep.subr.bf16.mxu0 0
  %1898 = vmatpush1.bf16.msra.mxu0 0
  %1899 = vmatprep.subr.bf16.mxu0 0
  %1900 = vmatpush1.bf16.msra.mxu0 0
  %1901 = vmatprep.subr.bf16.mxu0 0
  %1902 = vmatpush1.bf16.msra.mxu0 0
  %1903 = vmatprep.subr.bf16.mxu0 0
  %1904 = vmatpush1.bf16.msra.mxu0 0
  %1905 = vmatprep.subr.bf16.mxu0 0
  %1906 = vmatpush1.bf16.msra.mxu0 0
  %1907 = vmatprep.subr.bf16.mxu0 0
  %1908 = vmatpush1.bf16.msra.mxu0 %v1891
  %1909 = vmatprep.subr.bf16.mxu0 0
  %1910 = vmatpush2.bf16.msra.mxu0 0
  %1911 = vmatprep.subr.bf16.mxu0 0
  %1912 = vmatpush2.bf16.msra.mxu0 0
  %1913 = vmatprep.subr.bf16.mxu0 0
  %1914 = vmatpush2.bf16.msra.mxu0 0
  %1915 = vmatprep.subr.bf16.mxu0 0
  %1916 = vmatpush2.bf16.msra.mxu0 0
  %1917 = vmatprep.subr.bf16.mxu0 0
  %1918 = vmatpush2.bf16.msra.mxu0 0
  %1919 = vmatprep.subr.bf16.mxu0 0
  %1920 = vmatpush2.bf16.msra.mxu0 0
  %1921 = vmatprep.subr.bf16.mxu0 0
  %1922 = vmatpush2.bf16.msra.mxu0 0
  %1923 = vmatprep.subr.bf16.mxu0 0
  %1924 = vmatpush2.bf16.msra.mxu0 0
  %1925 = vmatprep.mubr.bf16.mxu0 0
  %1926 = vmatmul.mubr.bf16.gmra.mxu0 %v1888
  %v1927 = vpop.f32.mrf.mxu0
  %v1928 = vadd.f32 0.0, %v1927
  %v1929 = vpop.f32.mrf.mxu0
  %v1930 = vpop.f32.mrf.mxu0
  %v1931 = vadd.f32 0.0, %v1930
  %v1932 = vpop.f32.mrf.mxu0
  %1933 = vdwg.mxu0
  %v1934 = vadd.f32 %v1476, %v1928
  %v1935 = vadd.f32 %v1477, %v1931
  %v1936 = vlaneseq
  %v1937 = vshrl.u32 %v1936, 7
  %v1938 = vsub.s32 0, %v1937
  %v1939 = vrot.slane %v60, %v1938
  %v1940 = vadd.f32 %v1934, %v1939
  %v1941 = vadd.f32 %v1935, %v1939
  %v1942 = vadd.f32 %v87, %v1940
  %v1943 = vadd.f32 %v88, %v1941
  %v1944 = vsel %vm125, %v1942, 0.0
  %1945 = vadd.xlane.f32.xlu0 %v1944
  %v1946 = vpop.xlane.xlu0 %1945
  %v1947 = vsel %vm125, %v1943, 0.0
  %1948 = vadd.xlane.f32.xlu0 %v1947
  %v1949 = vpop.xlane.xlu0 %1948
  %v1950 = vrcp.pop 32.0
  %v1951 = vmul.f32 %v1946, %v1950
  %v1952 = vmul.f32 %v1949, %v1950
  %v1953 = vsub.f32 %v1942, %v1951
  %v1954 = vsub.f32 %v1943, %v1952
  %v1955 = vmul.f32 %v1953, %v1953
  %v1956 = vmul.f32 %v1954, %v1954
  %v1957 = vsel %vm125, %v1955, 0.0
  %1958 = vadd.xlane.f32.xlu0 %v1957
  %v1959 = vpop.xlane.xlu0 %1958
  %v1960 = vsel %vm125, %v1956, 0.0
  %1961 = vadd.xlane.f32.xlu0 %v1960
  %v1962 = vpop.xlane.xlu0 %1961
  %v1963 = vmul.f32 %v1959, %v1950
  %v1964 = vmul.f32 %v1962, %v1950
  %v1965 = vadd.f32 %v1963, 1e-05
  %v1966 = vadd.f32 %v1964, 1e-05
  %v1967 = vrsqrt.pop %v1965
  %v1968 = vrsqrt.pop %v1966
  %v1969 = vmul.f32 %v1953, %v1967
  %v1970 = vmul.f32 %v1954, %v1968
  %v1971 = vlaneseq
  %v1972 = vshrl.u32 %v1971, 7
  %v1973 = vsub.s32 3, %v1972
  %v1974 = vrot.slane %v60, %v1973
  %v1975 = vmul.f32 %v1969, %v1974
  %v1976 = vmul.f32 %v1970, %v1974
  %v1977 = vlaneseq
  %v1978 = vshrl.u32 %v1977, 7
  %v1979 = vsub.s32 4, %v1978
  %v1980 = vrot.slane %v60, %v1979
  %v1981 = vadd.f32 %v1975, %v1980
  %v1982 = vadd.f32 %v1976, %v1980
  %v1983 = vadd.f32 %v1981, %v89
  %v1984 = vadd.f32 %v1982, %v90
  %v1985 = vadd.f32 %v91, %v95
  %v1986 = vadd.f32 %v92, %v96
  %v1987 = vadd.f32 %v93, %v97
  %v1988 = vadd.f32 %v94, %v98
  %v1989 = vpack.c.bf16 %v1984, %v1983
  %v1990 = vpack.c.bf16 %v1986, %v1985
  %v1991 = vpack.c.bf16 %v1988, %v1987
  %v1992 = vpack.c.bf16 %v92, %v91
  %v1993 = vpack.c.bf16 %v94, %v93
  %v1994 = vld [vmem:[%s9] sm:$0xf]
  %v1995 = vld [vmem:[%s9 + $0x4] sm:$0xf]
  %v1996 = vld [vmem:[%s9 + $0x8] sm:$0xf]
  %v1997 = vld [vmem:[%s9 + $0xc] sm:$0xf]
  %v1999 = vlaneseq
  %v2000 = vshrl.u32 %v1999, 7
  %v2001 = vsub.s32 0, %v2000
  %v2002 = vrot.slane %v74, %v2001
  %v2008 = vunpack.c.l.b16 %v1994
  %v2009 = vunpack.c.l.b16 %v1995
  %v2010 = vunpack.c.l.b16 %v1996
  %v2011 = vunpack.c.l.b16 %v1997
  %v2012 = vpack.c.b16 %v2009, %v2008
  %v2013 = vpack.c.b16 %v2011, %v2010
  %v2017 = vsel %vm125, %v1989, 0
  %2019 = vmatprep.subr.bf16.mxu0 0
  %2020 = vmatpush1.bf16.msra.mxu0 0
  %2021 = vmatprep.subr.bf16.mxu0 0
  %2022 = vmatpush1.bf16.msra.mxu0 0
  %2023 = vmatprep.subr.bf16.mxu0 0
  %2024 = vmatpush1.bf16.msra.mxu0 0
  %2025 = vmatprep.subr.bf16.mxu0 0
  %2026 = vmatpush1.bf16.msra.mxu0 0
  %2027 = vmatprep.subr.bf16.mxu0 0
  %2028 = vmatpush1.bf16.msra.mxu0 0
  %2029 = vmatprep.subr.bf16.mxu0 0
  %2030 = vmatpush1.bf16.msra.mxu0 0
  %2031 = vmatprep.subr.bf16.mxu0 0
  %2032 = vmatpush1.bf16.msra.mxu0 %v2013
  %2033 = vmatprep.subr.bf16.mxu0 0
  %2034 = vmatpush1.bf16.msra.mxu0 %v2012
  %2035 = vmatprep.subr.bf16.mxu0 0
  %2036 = vmatpush2.bf16.msra.mxu0 0
  %2037 = vmatprep.subr.bf16.mxu0 0
  %2038 = vmatpush2.bf16.msra.mxu0 0
  %2039 = vmatprep.subr.bf16.mxu0 0
  %2040 = vmatpush2.bf16.msra.mxu0 0
  %2041 = vmatprep.subr.bf16.mxu0 0
  %2042 = vmatpush2.bf16.msra.mxu0 0
  %2043 = vmatprep.subr.bf16.mxu0 0
  %2044 = vmatpush2.bf16.msra.mxu0 0
  %2045 = vmatprep.subr.bf16.mxu0 0
  %2046 = vmatpush2.bf16.msra.mxu0 0
  %2047 = vmatprep.subr.bf16.mxu0 0
  %2048 = vmatpush2.bf16.msra.mxu0 0
  %2049 = vmatprep.subr.bf16.mxu0 0
  %2050 = vmatpush2.bf16.msra.mxu0 0
  %2051 = vmatprep.mubr.bf16.mxu0 0
  %2052 = vmatmul.mubr.bf16.gmra.mxu0 %v2017
  %v2053 = vpop.f32.mrf.mxu0
  %v2054 = vadd.f32 %v2002, %v2053
  %v2055 = vpop.f32.mrf.mxu0
  %v2056 = vpop.f32.mrf.mxu0
  %v2057 = vadd.f32 %v2002, %v2056
  %v2058 = vpop.f32.mrf.mxu0
  %2059 = vdwg.mxu0
  %v2060 = vld [vmem:[%s10] sm:$0xf]
  %v2061 = vld [vmem:[%s10 + $0x4] sm:$0xf]
  %v2062 = vld [vmem:[%s10 + $0x8] sm:$0xf]
  %v2063 = vld [vmem:[%s10 + $0xc] sm:$0xf]
  %v2065 = vlaneseq
  %v2066 = vshrl.u32 %v2065, 7
  %v2067 = vsub.s32 0, %v2066
  %v2068 = vrot.slane %v78, %v2067
  %v2074 = vunpack.c.l.b16 %v2060
  %v2075 = vunpack.c.l.b16 %v2061
  %v2076 = vunpack.c.l.b16 %v2062
  %v2077 = vunpack.c.l.b16 %v2063
  %v2078 = vpack.c.b16 %v2075, %v2074
  %v2079 = vpack.c.b16 %v2077, %v2076
  %v2083 = vsel %vm125, %v1990, 0
  %v2086 = vsel %vm125, %v1991, 0
  %2088 = vmatprep.subr.bf16.mxu0 0
  %2089 = vmatpush1.bf16.msra.mxu0 0
  %2090 = vmatprep.subr.bf16.mxu0 0
  %2091 = vmatpush1.bf16.msra.mxu0 0
  %2092 = vmatprep.subr.bf16.mxu0 0
  %2093 = vmatpush1.bf16.msra.mxu0 0
  %2094 = vmatprep.subr.bf16.mxu0 0
  %2095 = vmatpush1.bf16.msra.mxu0 0
  %2096 = vmatprep.subr.bf16.mxu0 0
  %2097 = vmatpush1.bf16.msra.mxu0 0
  %2098 = vmatprep.subr.bf16.mxu0 0
  %2099 = vmatpush1.bf16.msra.mxu0 0
  %2100 = vmatprep.subr.bf16.mxu0 0
  %2101 = vmatpush1.bf16.msra.mxu0 %v2079
  %2102 = vmatprep.subr.bf16.mxu0 0
  %2103 = vmatpush1.bf16.msra.mxu0 %v2078
  %2104 = vmatprep.subr.bf16.mxu0 0
  %2105 = vmatpush2.bf16.msra.mxu0 0
  %2106 = vmatprep.subr.bf16.mxu0 0
  %2107 = vmatpush2.bf16.msra.mxu0 0
  %2108 = vmatprep.subr.bf16.mxu0 0
  %2109 = vmatpush2.bf16.msra.mxu0 0
  %2110 = vmatprep.subr.bf16.mxu0 0
  %2111 = vmatpush2.bf16.msra.mxu0 0
  %2112 = vmatprep.subr.bf16.mxu0 0
  %2113 = vmatpush2.bf16.msra.mxu0 0
  %2114 = vmatprep.subr.bf16.mxu0 0
  %2115 = vmatpush2.bf16.msra.mxu0 0
  %2116 = vmatprep.subr.bf16.mxu0 0
  %2117 = vmatpush2.bf16.msra.mxu0 0
  %2118 = vmatprep.subr.bf16.mxu0 0
  %2119 = vmatpush2.bf16.msra.mxu0 0
  %2120 = vmatprep.mubr.bf16.mxu0 0
  %2121 = vmatmul.mubr.bf16.gmra.mxu0 %v2083
  %v2122 = vpop.f32.mrf.mxu0
  %v2123 = vadd.f32 %v2068, %v2122
  %v2124 = vpop.f32.mrf.mxu0
  %v2125 = vpop.f32.mrf.mxu0
  %v2126 = vadd.f32 %v2068, %v2125
  %v2127 = vpop.f32.mrf.mxu0
  %2128 = vmatprep.mubr.bf16.mxu0 0
  %2129 = vmatmul.mubr.bf16.gmra.mxu0 %v2086
  %v2130 = vpop.f32.mrf.mxu0
  %v2131 = vadd.f32 %v2068, %v2130
  %v2132 = vpop.f32.mrf.mxu0
  %v2133 = vpop.f32.mrf.mxu0
  %v2134 = vadd.f32 %v2068, %v2133
  %v2135 = vpop.f32.mrf.mxu0
  %2136 = vdwg.mxu0
  %v2137 = vld [vmem:[%s11] sm:$0xf]
  %v2138 = vld [vmem:[%s11 + $0x4] sm:$0xf]
  %v2139 = vld [vmem:[%s11 + $0x8] sm:$0xf]
  %v2140 = vld [vmem:[%s11 + $0xc] sm:$0xf]
  %v2142 = vlaneseq
  %v2143 = vshrl.u32 %v2142, 7
  %v2144 = vsub.s32 0, %v2143
  %v2145 = vrot.slane %v82, %v2144
  %v2151 = vunpack.c.l.b16 %v2137
  %v2152 = vunpack.c.l.b16 %v2138
  %v2153 = vunpack.c.l.b16 %v2139
  %v2154 = vunpack.c.l.b16 %v2140
  %v2155 = vpack.c.b16 %v2152, %v2151
  %v2156 = vpack.c.b16 %v2154, %v2153
  %v2160 = vsel %vm125, %v1992, 0
  %v2163 = vsel %vm125, %v1993, 0
  %2165 = vmatprep.subr.bf16.mxu0 0
  %2166 = vmatpush1.bf16.msra.mxu0 0
  %2167 = vmatprep.subr.bf16.mxu0 0
  %2168 = vmatpush1.bf16.msra.mxu0 0
  %2169 = vmatprep.subr.bf16.mxu0 0
  %2170 = vmatpush1.bf16.msra.mxu0 0
  %2171 = vmatprep.subr.bf16.mxu0 0
  %2172 = vmatpush1.bf16.msra.mxu0 0
  %2173 = vmatprep.subr.bf16.mxu0 0
  %2174 = vmatpush1.bf16.msra.mxu0 0
  %2175 = vmatprep.subr.bf16.mxu0 0
  %2176 = vmatpush1.bf16.msra.mxu0 0
  %2177 = vmatprep.subr.bf16.mxu0 0
  %2178 = vmatpush1.bf16.msra.mxu0 %v2156
  %2179 = vmatprep.subr.bf16.mxu0 0
  %2180 = vmatpush1.bf16.msra.mxu0 %v2155
  %2181 = vmatprep.subr.bf16.mxu0 0
  %2182 = vmatpush2.bf16.msra.mxu0 0
  %2183 = vmatprep.subr.bf16.mxu0 0
  %2184 = vmatpush2.bf16.msra.mxu0 0
  %2185 = vmatprep.subr.bf16.mxu0 0
  %2186 = vmatpush2.bf16.msra.mxu0 0
  %2187 = vmatprep.subr.bf16.mxu0 0
  %2188 = vmatpush2.bf16.msra.mxu0 0
  %2189 = vmatprep.subr.bf16.mxu0 0
  %2190 = vmatpush2.bf16.msra.mxu0 0
  %2191 = vmatprep.subr.bf16.mxu0 0
  %2192 = vmatpush2.bf16.msra.mxu0 0
  %2193 = vmatprep.subr.bf16.mxu0 0
  %2194 = vmatpush2.bf16.msra.mxu0 0
  %2195 = vmatprep.subr.bf16.mxu0 0
  %2196 = vmatpush2.bf16.msra.mxu0 0
  %2197 = vmatprep.mubr.bf16.mxu0 0
  %2198 = vmatmul.mubr.bf16.gmra.mxu0 %v2160
  %v2199 = vpop.f32.mrf.mxu0
  %v2200 = vadd.f32 %v2145, %v2199
  %v2201 = vpop.f32.mrf.mxu0
  %v2202 = vpop.f32.mrf.mxu0
  %v2203 = vadd.f32 %v2145, %v2202
  %v2204 = vpop.f32.mrf.mxu0
  %2205 = vmatprep.mubr.bf16.mxu0 0
  %2206 = vmatmul.mubr.bf16.gmra.mxu0 %v2163
  %v2207 = vpop.f32.mrf.mxu0
  %v2208 = vadd.f32 %v2145, %v2207
  %v2209 = vpop.f32.mrf.mxu0
  %v2210 = vpop.f32.mrf.mxu0
  %v2211 = vadd.f32 %v2145, %v2210
  %v2212 = vpop.f32.mrf.mxu0
  %2213 = vdwg.mxu0
  %v2214 = vpack.c.bf16 %v2054, %v2054
  %v2215 = vpack.c.bf16 %v2057, %v2057
  %v2216 = vpack.c.bf16 %v2126, %v2123
  %v2217 = vpack.c.bf16 %v2134, %v2131
  %v2218 = vpack.c.bf16 %v2203, %v2200
  %v2219 = vpack.c.bf16 %v2211, %v2208
  %v2221 = vsel %vm305, %v2214, 0
  %v2224 = vsel %vm305, %v2216, 0
  %2226 = vmatprep.subr.bf16.mxu0 0
  %2227 = vmatpush1.bf16.xpose.msra.mxu0 0
  %2228 = vmatprep.subr.bf16.mxu0 0
  %2229 = vmatpush1.bf16.xpose.msra.mxu0 0
  %2230 = vmatprep.subr.bf16.mxu0 0
  %2231 = vmatpush1.bf16.xpose.msra.mxu0 0
  %2232 = vmatprep.subr.bf16.mxu0 0
  %2233 = vmatpush1.bf16.xpose.msra.mxu0 0
  %2234 = vmatprep.subr.bf16.mxu0 0
  %2235 = vmatpush1.bf16.xpose.msra.mxu0 0
  %2236 = vmatprep.subr.bf16.mxu0 0
  %2237 = vmatpush1.bf16.xpose.msra.mxu0 0
  %2238 = vmatprep.subr.bf16.mxu0 0
  %2239 = vmatpush1.bf16.xpose.msra.mxu0 0
  %2240 = vmatprep.subr.bf16.mxu0 0
  %2241 = vmatpush1.bf16.xpose.msra.mxu0 %v2224
  %2242 = vmatprep.subr.bf16.mxu0 0
  %2243 = vmatpush2.bf16.xpose.msra.mxu0 0
  %2244 = vmatprep.subr.bf16.mxu0 0
  %2245 = vmatpush2.bf16.xpose.msra.mxu0 0
  %2246 = vmatprep.subr.bf16.mxu0 0
  %2247 = vmatpush2.bf16.xpose.msra.mxu0 0
  %2248 = vmatprep.subr.bf16.mxu0 0
  %2249 = vmatpush2.bf16.xpose.msra.mxu0 0
  %2250 = vmatprep.subr.bf16.mxu0 0
  %2251 = vmatpush2.bf16.xpose.msra.mxu0 0
  %2252 = vmatprep.subr.bf16.mxu0 0
  %2253 = vmatpush2.bf16.xpose.msra.mxu0 0
  %2254 = vmatprep.subr.bf16.mxu0 0
  %2255 = vmatpush2.bf16.xpose.msra.mxu0 0
  %2256 = vmatprep.subr.bf16.mxu0 0
  %2257 = vmatpush2.bf16.xpose.msra.mxu0 0
  %2258 = vmatprep.mubr.bf16.mxu0 0
  %2259 = vmatmul.mubr.bf16.gmra.mxu0 %v2221
  %v2260 = vpop.f32.mrf.mxu0
  %v2261 = vadd.f32 0.0, %v2260
  %v2262 = vpop.f32.mrf.mxu0
  %v2263 = vpop.f32.mrf.mxu0
  %v2264 = vpop.f32.mrf.mxu0
  %2265 = vdwg.mxu0
  %v2267 = vsel %vm305, %v2215, 0
  %v2270 = vsel %vm305, %v2217, 0
  %2272 = vmatprep.subr.bf16.mxu0 0
  %2273 = vmatpush1.bf16.xpose.msra.mxu0 0
  %2274 = vmatprep.subr.bf16.mxu0 0
  %2275 = vmatpush1.bf16.xpose.msra.mxu0 0
  %2276 = vmatprep.subr.bf16.mxu0 0
  %2277 = vmatpush1.bf16.xpose.msra.mxu0 0
  %2278 = vmatprep.subr.bf16.mxu0 0
  %2279 = vmatpush1.bf16.xpose.msra.mxu0 0
  %2280 = vmatprep.subr.bf16.mxu0 0
  %2281 = vmatpush1.bf16.xpose.msra.mxu0 0
  %2282 = vmatprep.subr.bf16.mxu0 0
  %2283 = vmatpush1.bf16.xpose.msra.mxu0 0
  %2284 = vmatprep.subr.bf16.mxu0 0
  %2285 = vmatpush1.bf16.xpose.msra.mxu0 0
  %2286 = vmatprep.subr.bf16.mxu0 0
  %2287 = vmatpush1.bf16.xpose.msra.mxu0 %v2270
  %2288 = vmatprep.subr.bf16.mxu0 0
  %2289 = vmatpush2.bf16.xpose.msra.mxu0 0
  %2290 = vmatprep.subr.bf16.mxu0 0
  %2291 = vmatpush2.bf16.xpose.msra.mxu0 0
  %2292 = vmatprep.subr.bf16.mxu0 0
  %2293 = vmatpush2.bf16.xpose.msra.mxu0 0
  %2294 = vmatprep.subr.bf16.mxu0 0
  %2295 = vmatpush2.bf16.xpose.msra.mxu0 0
  %2296 = vmatprep.subr.bf16.mxu0 0
  %2297 = vmatpush2.bf16.xpose.msra.mxu0 0
  %2298 = vmatprep.subr.bf16.mxu0 0
  %2299 = vmatpush2.bf16.xpose.msra.mxu0 0
  %2300 = vmatprep.subr.bf16.mxu0 0
  %2301 = vmatpush2.bf16.xpose.msra.mxu0 0
  %2302 = vmatprep.subr.bf16.mxu0 0
  %2303 = vmatpush2.bf16.xpose.msra.mxu0 0
  %2304 = vmatprep.mubr.bf16.mxu0 0
  %2305 = vmatmul.mubr.bf16.gmra.mxu0 %v2267
  %v2306 = vpop.f32.mrf.mxu0
  %v2307 = vadd.f32 0.0, %v2306
  %v2308 = vpop.f32.mrf.mxu0
  %v2309 = vpop.f32.mrf.mxu0
  %v2310 = vpop.f32.mrf.mxu0
  %2311 = vdwg.mxu0
  %vm2312 = vcmask 130048
  %v2313 = vsel %vm2312, %v2261, -inf
  %2314 = vmax.xlane.f32.xlu0 %v2313
  %v2315 = vpop.xlane.xlu0 %2314
  %v2316 = vsel %vm2312, %v2307, -inf
  %2317 = vmax.xlane.f32.xlu0 %v2316
  %v2318 = vpop.xlane.xlu0 %2317
  %v2319 = vsub.f32 %v2261, %v2315
  %v2320 = vsub.f32 %v2307, %v2318
  %v2321 = vmul.f32 %v2319, 1.442695
  %v2322 = vpow.pop %v2321
  %v2323 = vmul.f32 %v2320, 1.442695
  %v2324 = vpow.pop %v2323
  %v2325 = vsel %vm2312, %v2322, 0.0
  %2326 = vadd.xlane.f32.xlu0 %v2325
  %v2327 = vpop.xlane.xlu0 %2326
  %v2328 = vsel %vm2312, %v2324, 0.0
  %2329 = vadd.xlane.f32.xlu0 %v2328
  %v2330 = vpop.xlane.xlu0 %2329
  %v2331 = vrcp.pop %v2327
  %v2332 = vrcp.pop %v2330
  %v2333 = vmul.f32 %v2322, %v2331
  %v2334 = vmul.f32 %v2324, %v2332
  %v2335 = vpack.c.bf16 %v2333, %v2333
  %v2336 = vpack.c.bf16 %v2334, %v2334
  %v2338 = vsel %vm2312, %v2335, 0
  %2340 = vmatprep.subr.bf16.mxu0 0
  %2341 = vmatpush1.bf16.msra.mxu0 0
  %2342 = vmatprep.subr.bf16.mxu0 0
  %2343 = vmatpush1.bf16.msra.mxu0 0
  %2344 = vmatprep.subr.bf16.mxu0 0
  %2345 = vmatpush1.bf16.msra.mxu0 0
  %2346 = vmatprep.subr.bf16.mxu0 0
  %2347 = vmatpush1.bf16.msra.mxu0 0
  %2348 = vmatprep.subr.bf16.mxu0 0
  %2349 = vmatpush1.bf16.msra.mxu0 0
  %2350 = vmatprep.subr.bf16.mxu0 0
  %2351 = vmatpush1.bf16.msra.mxu0 0
  %2352 = vmatprep.subr.bf16.mxu0 0
  %2353 = vmatpush1.bf16.msra.mxu0 0
  %2354 = vmatprep.subr.bf16.mxu0 0
  %2355 = vmatpush1.bf16.msra.mxu0 %v2218
  %2356 = vmatprep.subr.bf16.mxu0 0
  %2357 = vmatpush2.bf16.msra.mxu0 0
  %2358 = vmatprep.subr.bf16.mxu0 0
  %2359 = vmatpush2.bf16.msra.mxu0 0
  %2360 = vmatprep.subr.bf16.mxu0 0
  %2361 = vmatpush2.bf16.msra.mxu0 0
  %2362 = vmatprep.subr.bf16.mxu0 0
  %2363 = vmatpush2.bf16.msra.mxu0 0
  %2364 = vmatprep.subr.bf16.mxu0 0
  %2365 = vmatpush2.bf16.msra.mxu0 0
  %2366 = vmatprep.subr.bf16.mxu0 0
  %2367 = vmatpush2.bf16.msra.mxu0 0
  %2368 = vmatprep.subr.bf16.mxu0 0
  %2369 = vmatpush2.bf16.msra.mxu0 0
  %2370 = vmatprep.subr.bf16.mxu0 0
  %2371 = vmatpush2.bf16.msra.mxu0 0
  %2372 = vmatprep.mubr.bf16.mxu0 0
  %2373 = vmatmul.mubr.bf16.gmra.mxu0 %v2338
  %v2374 = vpop.f32.mrf.mxu0
  %v2375 = vadd.f32 0.0, %v2374
  %v2376 = vpop.f32.mrf.mxu0
  %v2377 = vpop.f32.mrf.mxu0
  %v2378 = vpop.f32.mrf.mxu0
  %2379 = vdwg.mxu0
  %v2381 = vsel %vm2312, %v2336, 0
  %2383 = vmatprep.subr.bf16.mxu0 0
  %2384 = vmatpush1.bf16.msra.mxu0 0
  %2385 = vmatprep.subr.bf16.mxu0 0
  %2386 = vmatpush1.bf16.msra.mxu0 0
  %2387 = vmatprep.subr.bf16.mxu0 0
  %2388 = vmatpush1.bf16.msra.mxu0 0
  %2389 = vmatprep.subr.bf16.mxu0 0
  %2390 = vmatpush1.bf16.msra.mxu0 0
  %2391 = vmatprep.subr.bf16.mxu0 0
  %2392 = vmatpush1.bf16.msra.mxu0 0
  %2393 = vmatprep.subr.bf16.mxu0 0
  %2394 = vmatpush1.bf16.msra.mxu0 0
  %2395 = vmatprep.subr.bf16.mxu0 0
  %2396 = vmatpush1.bf16.msra.mxu0 0
  %2397 = vmatprep.subr.bf16.mxu0 0
  %2398 = vmatpush1.bf16.msra.mxu0 %v2219
  %2399 = vmatprep.subr.bf16.mxu0 0
  %2400 = vmatpush2.bf16.msra.mxu0 0
  %2401 = vmatprep.subr.bf16.mxu0 0
  %2402 = vmatpush2.bf16.msra.mxu0 0
  %2403 = vmatprep.subr.bf16.mxu0 0
  %2404 = vmatpush2.bf16.msra.mxu0 0
  %2405 = vmatprep.subr.bf16.mxu0 0
  %2406 = vmatpush2.bf16.msra.mxu0 0
  %2407 = vmatprep.subr.bf16.mxu0 0
  %2408 = vmatpush2.bf16.msra.mxu0 0
  %2409 = vmatprep.subr.bf16.mxu0 0
  %2410 = vmatpush2.bf16.msra.mxu0 0
  %2411 = vmatprep.subr.bf16.mxu0 0
  %2412 = vmatpush2.bf16.msra.mxu0 0
  %2413 = vmatprep.subr.bf16.mxu0 0
  %2414 = vmatpush2.bf16.msra.mxu0 0
  %2415 = vmatprep.mubr.bf16.mxu0 0
  %2416 = vmatmul.mubr.bf16.gmra.mxu0 %v2381
  %v2417 = vpop.f32.mrf.mxu0
  %v2418 = vadd.f32 0.0, %v2417
  %v2419 = vpop.f32.mrf.mxu0
  %v2420 = vpop.f32.mrf.mxu0
  %v2421 = vpop.f32.mrf.mxu0
  %2422 = vdwg.mxu0
  %v2423 = vpack.c.bf16 %v2418, %v2375
  %v2424 = vld [vmem:[%s12] sm:$0xf]
  %s2425 = scalar_lea.vmem %s9, 16
  %v2426 = vld [vmem:[%s2425] sm:$0xf]
  %v2427 = vld [vmem:[%s2425 + $0x4] sm:$0xf]
  %v2428 = vld [vmem:[%s2425 + $0x8] sm:$0xf]
  %v2429 = vld [vmem:[%s2425 + $0xc] sm:$0xf]
  %v2431 = vlaneseq
  %v2432 = vshrl.u32 %v2431, 7
  %v2433 = vsub.s32 0, %v2432
  %v2434 = vrot.slane %v75, %v2433
  %v2440 = vunpack.c.l.b16 %v2426
  %v2441 = vunpack.c.l.b16 %v2427
  %v2442 = vunpack.c.l.b16 %v2428
  %v2443 = vunpack.c.l.b16 %v2429
  %v2444 = vpack.c.b16 %v2441, %v2440
  %v2445 = vpack.c.b16 %v2443, %v2442
  %2448 = vmatprep.subr.bf16.mxu0 0
  %2449 = vmatpush1.bf16.msra.mxu0 0
  %2450 = vmatprep.subr.bf16.mxu0 0
  %2451 = vmatpush1.bf16.msra.mxu0 0
  %2452 = vmatprep.subr.bf16.mxu0 0
  %2453 = vmatpush1.bf16.msra.mxu0 0
  %2454 = vmatprep.subr.bf16.mxu0 0
  %2455 = vmatpush1.bf16.msra.mxu0 0
  %2456 = vmatprep.subr.bf16.mxu0 0
  %2457 = vmatpush1.bf16.msra.mxu0 0
  %2458 = vmatprep.subr.bf16.mxu0 0
  %2459 = vmatpush1.bf16.msra.mxu0 0
  %2460 = vmatprep.subr.bf16.mxu0 0
  %2461 = vmatpush1.bf16.msra.mxu0 %v2445
  %2462 = vmatprep.subr.bf16.mxu0 0
  %2463 = vmatpush1.bf16.msra.mxu0 %v2444
  %2464 = vmatprep.subr.bf16.mxu0 0
  %2465 = vmatpush2.bf16.msra.mxu0 0
  %2466 = vmatprep.subr.bf16.mxu0 0
  %2467 = vmatpush2.bf16.msra.mxu0 0
  %2468 = vmatprep.subr.bf16.mxu0 0
  %2469 = vmatpush2.bf16.msra.mxu0 0
  %2470 = vmatprep.subr.bf16.mxu0 0
  %2471 = vmatpush2.bf16.msra.mxu0 0
  %2472 = vmatprep.subr.bf16.mxu0 0
  %2473 = vmatpush2.bf16.msra.mxu0 0
  %2474 = vmatprep.subr.bf16.mxu0 0
  %2475 = vmatpush2.bf16.msra.mxu0 0
  %2476 = vmatprep.subr.bf16.mxu0 0
  %2477 = vmatpush2.bf16.msra.mxu0 0
  %2478 = vmatprep.subr.bf16.mxu0 0
  %2479 = vmatpush2.bf16.msra.mxu0 0
  %2480 = vmatprep.mubr.bf16.mxu0 0
  %2481 = vmatmul.mubr.bf16.gmra.mxu0 %v2017
  %v2482 = vpop.f32.mrf.mxu0
  %v2483 = vadd.f32 %v2434, %v2482
  %v2484 = vpop.f32.mrf.mxu0
  %v2485 = vpop.f32.mrf.mxu0
  %v2486 = vadd.f32 %v2434, %v2485
  %v2487 = vpop.f32.mrf.mxu0
  %2488 = vdwg.mxu0
  %s2489 = scalar_lea.vmem %s10, 16
  %v2490 = vld [vmem:[%s2489] sm:$0xf]
  %v2491 = vld [vmem:[%s2489 + $0x4] sm:$0xf]
  %v2492 = vld [vmem:[%s2489 + $0x8] sm:$0xf]
  %v2493 = vld [vmem:[%s2489 + $0xc] sm:$0xf]
  %v2495 = vlaneseq
  %v2496 = vshrl.u32 %v2495, 7
  %v2497 = vsub.s32 0, %v2496
  %v2498 = vrot.slane %v79, %v2497
  %v2504 = vunpack.c.l.b16 %v2490
  %v2505 = vunpack.c.l.b16 %v2491
  %v2506 = vunpack.c.l.b16 %v2492
  %v2507 = vunpack.c.l.b16 %v2493
  %v2508 = vpack.c.b16 %v2505, %v2504
  %v2509 = vpack.c.b16 %v2507, %v2506
  %2512 = vmatprep.subr.bf16.mxu0 0
  %2513 = vmatpush1.bf16.msra.mxu0 0
  %2514 = vmatprep.subr.bf16.mxu0 0
  %2515 = vmatpush1.bf16.msra.mxu0 0
  %2516 = vmatprep.subr.bf16.mxu0 0
  %2517 = vmatpush1.bf16.msra.mxu0 0
  %2518 = vmatprep.subr.bf16.mxu0 0
  %2519 = vmatpush1.bf16.msra.mxu0 0
  %2520 = vmatprep.subr.bf16.mxu0 0
  %2521 = vmatpush1.bf16.msra.mxu0 0
  %2522 = vmatprep.subr.bf16.mxu0 0
  %2523 = vmatpush1.bf16.msra.mxu0 0
  %2524 = vmatprep.subr.bf16.mxu0 0
  %2525 = vmatpush1.bf16.msra.mxu0 %v2509
  %2526 = vmatprep.subr.bf16.mxu0 0
  %2527 = vmatpush1.bf16.msra.mxu0 %v2508
  %2528 = vmatprep.subr.bf16.mxu0 0
  %2529 = vmatpush2.bf16.msra.mxu0 0
  %2530 = vmatprep.subr.bf16.mxu0 0
  %2531 = vmatpush2.bf16.msra.mxu0 0
  %2532 = vmatprep.subr.bf16.mxu0 0
  %2533 = vmatpush2.bf16.msra.mxu0 0
  %2534 = vmatprep.subr.bf16.mxu0 0
  %2535 = vmatpush2.bf16.msra.mxu0 0
  %2536 = vmatprep.subr.bf16.mxu0 0
  %2537 = vmatpush2.bf16.msra.mxu0 0
  %2538 = vmatprep.subr.bf16.mxu0 0
  %2539 = vmatpush2.bf16.msra.mxu0 0
  %2540 = vmatprep.subr.bf16.mxu0 0
  %2541 = vmatpush2.bf16.msra.mxu0 0
  %2542 = vmatprep.subr.bf16.mxu0 0
  %2543 = vmatpush2.bf16.msra.mxu0 0
  %2544 = vmatprep.mubr.bf16.mxu0 0
  %2545 = vmatmul.mubr.bf16.gmra.mxu0 %v2083
  %v2546 = vpop.f32.mrf.mxu0
  %v2547 = vadd.f32 %v2498, %v2546
  %v2548 = vpop.f32.mrf.mxu0
  %v2549 = vpop.f32.mrf.mxu0
  %v2550 = vadd.f32 %v2498, %v2549
  %v2551 = vpop.f32.mrf.mxu0
  %2552 = vmatprep.mubr.bf16.mxu0 0
  %2553 = vmatmul.mubr.bf16.gmra.mxu0 %v2086
  %v2554 = vpop.f32.mrf.mxu0
  %v2555 = vadd.f32 %v2498, %v2554
  %v2556 = vpop.f32.mrf.mxu0
  %v2557 = vpop.f32.mrf.mxu0
  %v2558 = vadd.f32 %v2498, %v2557
  %v2559 = vpop.f32.mrf.mxu0
  %2560 = vdwg.mxu0
  %s2561 = scalar_lea.vmem %s11, 16
  %v2562 = vld [vmem:[%s2561] sm:$0xf]
  %v2563 = vld [vmem:[%s2561 + $0x4] sm:$0xf]
  %v2564 = vld [vmem:[%s2561 + $0x8] sm:$0xf]
  %v2565 = vld [vmem:[%s2561 + $0xc] sm:$0xf]
  %v2567 = vlaneseq
  %v2568 = vshrl.u32 %v2567, 7
  %v2569 = vsub.s32 0, %v2568
  %v2570 = vrot.slane %v83, %v2569
  %v2576 = vunpack.c.l.b16 %v2562
  %v2577 = vunpack.c.l.b16 %v2563
  %v2578 = vunpack.c.l.b16 %v2564
  %v2579 = vunpack.c.l.b16 %v2565
  %v2580 = vpack.c.b16 %v2577, %v2576
  %v2581 = vpack.c.b16 %v2579, %v2578
  %2584 = vmatprep.subr.bf16.mxu0 0
  %2585 = vmatpush1.bf16.msra.mxu0 0
  %2586 = vmatprep.subr.bf16.mxu0 0
  %2587 = vmatpush1.bf16.msra.mxu0 0
  %2588 = vmatprep.subr.bf16.mxu0 0
  %2589 = vmatpush1.bf16.msra.mxu0 0
  %2590 = vmatprep.subr.bf16.mxu0 0
  %2591 = vmatpush1.bf16.msra.mxu0 0
  %2592 = vmatprep.subr.bf16.mxu0 0
  %2593 = vmatpush1.bf16.msra.mxu0 0
  %2594 = vmatprep.subr.bf16.mxu0 0
  %2595 = vmatpush1.bf16.msra.mxu0 0
  %2596 = vmatprep.subr.bf16.mxu0 0
  %2597 = vmatpush1.bf16.msra.mxu0 %v2581
  %2598 = vmatprep.subr.bf16.mxu0 0
  %2599 = vmatpush1.bf16.msra.mxu0 %v2580
  %2600 = vmatprep.subr.bf16.mxu0 0
  %2601 = vmatpush2.bf16.msra.mxu0 0
  %2602 = vmatprep.subr.bf16.mxu0 0
  %2603 = vmatpush2.bf16.msra.mxu0 0
  %2604 = vmatprep.subr.bf16.mxu0 0
  %2605 = vmatpush2.bf16.msra.mxu0 0
  %2606 = vmatprep.subr.bf16.mxu0 0
  %2607 = vmatpush2.bf16.msra.mxu0 0
  %2608 = vmatprep.subr.bf16.mxu0 0
  %2609 = vmatpush2.bf16.msra.mxu0 0
  %2610 = vmatprep.subr.bf16.mxu0 0
  %2611 = vmatpush2.bf16.msra.mxu0 0
  %2612 = vmatprep.subr.bf16.mxu0 0
  %2613 = vmatpush2.bf16.msra.mxu0 0
  %2614 = vmatprep.subr.bf16.mxu0 0
  %2615 = vmatpush2.bf16.msra.mxu0 0
  %2616 = vmatprep.mubr.bf16.mxu0 0
  %2617 = vmatmul.mubr.bf16.gmra.mxu0 %v2160
  %v2618 = vpop.f32.mrf.mxu0
  %v2619 = vadd.f32 %v2570, %v2618
  %v2620 = vpop.f32.mrf.mxu0
  %v2621 = vpop.f32.mrf.mxu0
  %v2622 = vadd.f32 %v2570, %v2621
  %v2623 = vpop.f32.mrf.mxu0
  %2624 = vmatprep.mubr.bf16.mxu0 0
  %2625 = vmatmul.mubr.bf16.gmra.mxu0 %v2163
  %v2626 = vpop.f32.mrf.mxu0
  %v2627 = vadd.f32 %v2570, %v2626
  %v2628 = vpop.f32.mrf.mxu0
  %v2629 = vpop.f32.mrf.mxu0
  %v2630 = vadd.f32 %v2570, %v2629
  %v2631 = vpop.f32.mrf.mxu0
  %2632 = vdwg.mxu0
  %v2633 = vpack.c.bf16 %v2483, %v2483
  %v2634 = vpack.c.bf16 %v2486, %v2486
  %v2635 = vpack.c.bf16 %v2550, %v2547
  %v2636 = vpack.c.bf16 %v2558, %v2555
  %v2637 = vpack.c.bf16 %v2622, %v2619
  %v2638 = vpack.c.bf16 %v2630, %v2627
  %v2640 = vsel %vm305, %v2633, 0
  %v2643 = vsel %vm305, %v2635, 0
  %2645 = vmatprep.subr.bf16.mxu0 0
  %2646 = vmatpush1.bf16.xpose.msra.mxu0 0
  %2647 = vmatprep.subr.bf16.mxu0 0
  %2648 = vmatpush1.bf16.xpose.msra.mxu0 0
  %2649 = vmatprep.subr.bf16.mxu0 0
  %2650 = vmatpush1.bf16.xpose.msra.mxu0 0
  %2651 = vmatprep.subr.bf16.mxu0 0
  %2652 = vmatpush1.bf16.xpose.msra.mxu0 0
  %2653 = vmatprep.subr.bf16.mxu0 0
  %2654 = vmatpush1.bf16.xpose.msra.mxu0 0
  %2655 = vmatprep.subr.bf16.mxu0 0
  %2656 = vmatpush1.bf16.xpose.msra.mxu0 0
  %2657 = vmatprep.subr.bf16.mxu0 0
  %2658 = vmatpush1.bf16.xpose.msra.mxu0 0
  %2659 = vmatprep.subr.bf16.mxu0 0
  %2660 = vmatpush1.bf16.xpose.msra.mxu0 %v2643
  %2661 = vmatprep.subr.bf16.mxu0 0
  %2662 = vmatpush2.bf16.xpose.msra.mxu0 0
  %2663 = vmatprep.subr.bf16.mxu0 0
  %2664 = vmatpush2.bf16.xpose.msra.mxu0 0
  %2665 = vmatprep.subr.bf16.mxu0 0
  %2666 = vmatpush2.bf16.xpose.msra.mxu0 0
  %2667 = vmatprep.subr.bf16.mxu0 0
  %2668 = vmatpush2.bf16.xpose.msra.mxu0 0
  %2669 = vmatprep.subr.bf16.mxu0 0
  %2670 = vmatpush2.bf16.xpose.msra.mxu0 0
  %2671 = vmatprep.subr.bf16.mxu0 0
  %2672 = vmatpush2.bf16.xpose.msra.mxu0 0
  %2673 = vmatprep.subr.bf16.mxu0 0
  %2674 = vmatpush2.bf16.xpose.msra.mxu0 0
  %2675 = vmatprep.subr.bf16.mxu0 0
  %2676 = vmatpush2.bf16.xpose.msra.mxu0 0
  %2677 = vmatprep.mubr.bf16.mxu0 0
  %2678 = vmatmul.mubr.bf16.gmra.mxu0 %v2640
  %v2679 = vpop.f32.mrf.mxu0
  %v2680 = vadd.f32 0.0, %v2679
  %v2681 = vpop.f32.mrf.mxu0
  %v2682 = vpop.f32.mrf.mxu0
  %v2683 = vpop.f32.mrf.mxu0
  %2684 = vdwg.mxu0
  %v2686 = vsel %vm305, %v2634, 0
  %v2689 = vsel %vm305, %v2636, 0
  %2691 = vmatprep.subr.bf16.mxu0 0
  %2692 = vmatpush1.bf16.xpose.msra.mxu0 0
  %2693 = vmatprep.subr.bf16.mxu0 0
  %2694 = vmatpush1.bf16.xpose.msra.mxu0 0
  %2695 = vmatprep.subr.bf16.mxu0 0
  %2696 = vmatpush1.bf16.xpose.msra.mxu0 0
  %2697 = vmatprep.subr.bf16.mxu0 0
  %2698 = vmatpush1.bf16.xpose.msra.mxu0 0
  %2699 = vmatprep.subr.bf16.mxu0 0
  %2700 = vmatpush1.bf16.xpose.msra.mxu0 0
  %2701 = vmatprep.subr.bf16.mxu0 0
  %2702 = vmatpush1.bf16.xpose.msra.mxu0 0
  %2703 = vmatprep.subr.bf16.mxu0 0
  %2704 = vmatpush1.bf16.xpose.msra.mxu0 0
  %2705 = vmatprep.subr.bf16.mxu0 0
  %2706 = vmatpush1.bf16.xpose.msra.mxu0 %v2689
  %2707 = vmatprep.subr.bf16.mxu0 0
  %2708 = vmatpush2.bf16.xpose.msra.mxu0 0
  %2709 = vmatprep.subr.bf16.mxu0 0
  %2710 = vmatpush2.bf16.xpose.msra.mxu0 0
  %2711 = vmatprep.subr.bf16.mxu0 0
  %2712 = vmatpush2.bf16.xpose.msra.mxu0 0
  %2713 = vmatprep.subr.bf16.mxu0 0
  %2714 = vmatpush2.bf16.xpose.msra.mxu0 0
  %2715 = vmatprep.subr.bf16.mxu0 0
  %2716 = vmatpush2.bf16.xpose.msra.mxu0 0
  %2717 = vmatprep.subr.bf16.mxu0 0
  %2718 = vmatpush2.bf16.xpose.msra.mxu0 0
  %2719 = vmatprep.subr.bf16.mxu0 0
  %2720 = vmatpush2.bf16.xpose.msra.mxu0 0
  %2721 = vmatprep.subr.bf16.mxu0 0
  %2722 = vmatpush2.bf16.xpose.msra.mxu0 0
  %2723 = vmatprep.mubr.bf16.mxu0 0
  %2724 = vmatmul.mubr.bf16.gmra.mxu0 %v2686
  %v2725 = vpop.f32.mrf.mxu0
  %v2726 = vadd.f32 0.0, %v2725
  %v2727 = vpop.f32.mrf.mxu0
  %v2728 = vpop.f32.mrf.mxu0
  %v2729 = vpop.f32.mrf.mxu0
  %2730 = vdwg.mxu0
  %v2731 = vsel %vm2312, %v2680, -inf
  %2732 = vmax.xlane.f32.xlu0 %v2731
  %v2733 = vpop.xlane.xlu0 %2732
  %v2734 = vsel %vm2312, %v2726, -inf
  %2735 = vmax.xlane.f32.xlu0 %v2734
  %v2736 = vpop.xlane.xlu0 %2735
  %v2737 = vsub.f32 %v2680, %v2733
  %v2738 = vsub.f32 %v2726, %v2736
  %v2739 = vmul.f32 %v2737, 1.442695
  %v2740 = vpow.pop %v2739
  %v2741 = vmul.f32 %v2738, 1.442695
  %v2742 = vpow.pop %v2741
  %v2743 = vsel %vm2312, %v2740, 0.0
  %2744 = vadd.xlane.f32.xlu0 %v2743
  %v2745 = vpop.xlane.xlu0 %2744
  %v2746 = vsel %vm2312, %v2742, 0.0
  %2747 = vadd.xlane.f32.xlu0 %v2746
  %v2748 = vpop.xlane.xlu0 %2747
  %v2749 = vrcp.pop %v2745
  %v2750 = vrcp.pop %v2748
  %v2751 = vmul.f32 %v2740, %v2749
  %v2752 = vmul.f32 %v2742, %v2750
  %v2753 = vpack.c.bf16 %v2751, %v2751
  %v2754 = vpack.c.bf16 %v2752, %v2752
  %v2756 = vsel %vm2312, %v2753, 0
  %2758 = vmatprep.subr.bf16.mxu0 0
  %2759 = vmatpush1.bf16.msra.mxu0 0
  %2760 = vmatprep.subr.bf16.mxu0 0
  %2761 = vmatpush1.bf16.msra.mxu0 0
  %2762 = vmatprep.subr.bf16.mxu0 0
  %2763 = vmatpush1.bf16.msra.mxu0 0
  %2764 = vmatprep.subr.bf16.mxu0 0
  %2765 = vmatpush1.bf16.msra.mxu0 0
  %2766 = vmatprep.subr.bf16.mxu0 0
  %2767 = vmatpush1.bf16.msra.mxu0 0
  %2768 = vmatprep.subr.bf16.mxu0 0
  %2769 = vmatpush1.bf16.msra.mxu0 0
  %2770 = vmatprep.subr.bf16.mxu0 0
  %2771 = vmatpush1.bf16.msra.mxu0 0
  %2772 = vmatprep.subr.bf16.mxu0 0
  %2773 = vmatpush1.bf16.msra.mxu0 %v2637
  %2774 = vmatprep.subr.bf16.mxu0 0
  %2775 = vmatpush2.bf16.msra.mxu0 0
  %2776 = vmatprep.subr.bf16.mxu0 0
  %2777 = vmatpush2.bf16.msra.mxu0 0
  %2778 = vmatprep.subr.bf16.mxu0 0
  %2779 = vmatpush2.bf16.msra.mxu0 0
  %2780 = vmatprep.subr.bf16.mxu0 0
  %2781 = vmatpush2.bf16.msra.mxu0 0
  %2782 = vmatprep.subr.bf16.mxu0 0
  %2783 = vmatpush2.bf16.msra.mxu0 0
  %2784 = vmatprep.subr.bf16.mxu0 0
  %2785 = vmatpush2.bf16.msra.mxu0 0
  %2786 = vmatprep.subr.bf16.mxu0 0
  %2787 = vmatpush2.bf16.msra.mxu0 0
  %2788 = vmatprep.subr.bf16.mxu0 0
  %2789 = vmatpush2.bf16.msra.mxu0 0
  %2790 = vmatprep.mubr.bf16.mxu0 0
  %2791 = vmatmul.mubr.bf16.gmra.mxu0 %v2756
  %v2792 = vpop.f32.mrf.mxu0
  %v2793 = vadd.f32 0.0, %v2792
  %v2794 = vpop.f32.mrf.mxu0
  %v2795 = vpop.f32.mrf.mxu0
  %v2796 = vpop.f32.mrf.mxu0
  %2797 = vdwg.mxu0
  %v2799 = vsel %vm2312, %v2754, 0
  %2801 = vmatprep.subr.bf16.mxu0 0
  %2802 = vmatpush1.bf16.msra.mxu0 0
  %2803 = vmatprep.subr.bf16.mxu0 0
  %2804 = vmatpush1.bf16.msra.mxu0 0
  %2805 = vmatprep.subr.bf16.mxu0 0
  %2806 = vmatpush1.bf16.msra.mxu0 0
  %2807 = vmatprep.subr.bf16.mxu0 0
  %2808 = vmatpush1.bf16.msra.mxu0 0
  %2809 = vmatprep.subr.bf16.mxu0 0
  %2810 = vmatpush1.bf16.msra.mxu0 0
  %2811 = vmatprep.subr.bf16.mxu0 0
  %2812 = vmatpush1.bf16.msra.mxu0 0
  %2813 = vmatprep.subr.bf16.mxu0 0
  %2814 = vmatpush1.bf16.msra.mxu0 0
  %2815 = vmatprep.subr.bf16.mxu0 0
  %2816 = vmatpush1.bf16.msra.mxu0 %v2638
  %2817 = vmatprep.subr.bf16.mxu0 0
  %2818 = vmatpush2.bf16.msra.mxu0 0
  %2819 = vmatprep.subr.bf16.mxu0 0
  %2820 = vmatpush2.bf16.msra.mxu0 0
  %2821 = vmatprep.subr.bf16.mxu0 0
  %2822 = vmatpush2.bf16.msra.mxu0 0
  %2823 = vmatprep.subr.bf16.mxu0 0
  %2824 = vmatpush2.bf16.msra.mxu0 0
  %2825 = vmatprep.subr.bf16.mxu0 0
  %2826 = vmatpush2.bf16.msra.mxu0 0
  %2827 = vmatprep.subr.bf16.mxu0 0
  %2828 = vmatpush2.bf16.msra.mxu0 0
  %2829 = vmatprep.subr.bf16.mxu0 0
  %2830 = vmatpush2.bf16.msra.mxu0 0
  %2831 = vmatprep.subr.bf16.mxu0 0
  %2832 = vmatpush2.bf16.msra.mxu0 0
  %2833 = vmatprep.mubr.bf16.mxu0 0
  %2834 = vmatmul.mubr.bf16.gmra.mxu0 %v2799
  %v2835 = vpop.f32.mrf.mxu0
  %v2836 = vadd.f32 0.0, %v2835
  %v2837 = vpop.f32.mrf.mxu0
  %v2838 = vpop.f32.mrf.mxu0
  %v2839 = vpop.f32.mrf.mxu0
  %2840 = vdwg.mxu0
  %v2841 = vpack.c.bf16 %v2836, %v2793
  %s2842 = scalar_lea.vmem %s12, 4
  %v2843 = vld [vmem:[%s2842] sm:$0xf]
  %v2845 = vsel %vm305, %v2841, 0
  %v2848 = vsel %vm425, %v2843, 0
  %2850 = vmatprep.subr.bf16.mxu0 0
  %2851 = vmatpush1.bf16.msra.mxu0 0
  %2852 = vmatprep.subr.bf16.mxu0 0
  %2853 = vmatpush1.bf16.msra.mxu0 0
  %2854 = vmatprep.subr.bf16.mxu0 0
  %2855 = vmatpush1.bf16.msra.mxu0 0
  %2856 = vmatprep.subr.bf16.mxu0 0
  %2857 = vmatpush1.bf16.msra.mxu0 0
  %2858 = vmatprep.subr.bf16.mxu0 0
  %2859 = vmatpush1.bf16.msra.mxu0 0
  %2860 = vmatprep.subr.bf16.mxu0 0
  %2861 = vmatpush1.bf16.msra.mxu0 0
  %2862 = vmatprep.subr.bf16.mxu0 0
  %2863 = vmatpush1.bf16.msra.mxu0 0
  %2864 = vmatprep.subr.bf16.mxu0 0
  %2865 = vmatpush1.bf16.msra.mxu0 %v2848
  %2866 = vmatprep.subr.bf16.mxu0 0
  %2867 = vmatpush2.bf16.msra.mxu0 0
  %2868 = vmatprep.subr.bf16.mxu0 0
  %2869 = vmatpush2.bf16.msra.mxu0 0
  %2870 = vmatprep.subr.bf16.mxu0 0
  %2871 = vmatpush2.bf16.msra.mxu0 0
  %2872 = vmatprep.subr.bf16.mxu0 0
  %2873 = vmatpush2.bf16.msra.mxu0 0
  %2874 = vmatprep.subr.bf16.mxu0 0
  %2875 = vmatpush2.bf16.msra.mxu0 0
  %2876 = vmatprep.subr.bf16.mxu0 0
  %2877 = vmatpush2.bf16.msra.mxu0 0
  %2878 = vmatprep.subr.bf16.mxu0 0
  %2879 = vmatpush2.bf16.msra.mxu0 0
  %2880 = vmatprep.subr.bf16.mxu0 0
  %2881 = vmatpush2.bf16.msra.mxu0 0
  %2882 = vmatprep.mubr.bf16.mxu0 0
  %2883 = vmatmul.mubr.bf16.gmra.mxu0 %v2845
  %v2884 = vpop.f32.mrf.mxu0
  %v2885 = vadd.f32 0.0, %v2884
  %v2886 = vpop.f32.mrf.mxu0
  %v2887 = vpop.f32.mrf.mxu0
  %v2888 = vadd.f32 0.0, %v2887
  %v2889 = vpop.f32.mrf.mxu0
  %2890 = vdwg.mxu0
  %v2892 = vsel %vm305, %v2423, 0
  %v2895 = vsel %vm425, %v2424, 0
  %2897 = vmatprep.subr.bf16.mxu0 0
  %2898 = vmatpush1.bf16.msra.mxu0 0
  %2899 = vmatprep.subr.bf16.mxu0 0
  %2900 = vmatpush1.bf16.msra.mxu0 0
  %2901 = vmatprep.subr.bf16.mxu0 0
  %2902 = vmatpush1.bf16.msra.mxu0 0
  %2903 = vmatprep.subr.bf16.mxu0 0
  %2904 = vmatpush1.bf16.msra.mxu0 0
  %2905 = vmatprep.subr.bf16.mxu0 0
  %2906 = vmatpush1.bf16.msra.mxu0 0
  %2907 = vmatprep.subr.bf16.mxu0 0
  %2908 = vmatpush1.bf16.msra.mxu0 0
  %2909 = vmatprep.subr.bf16.mxu0 0
  %2910 = vmatpush1.bf16.msra.mxu0 0
  %2911 = vmatprep.subr.bf16.mxu0 0
  %2912 = vmatpush1.bf16.msra.mxu0 %v2895
  %2913 = vmatprep.subr.bf16.mxu0 0
  %2914 = vmatpush2.bf16.msra.mxu0 0
  %2915 = vmatprep.subr.bf16.mxu0 0
  %2916 = vmatpush2.bf16.msra.mxu0 0
  %2917 = vmatprep.subr.bf16.mxu0 0
  %2918 = vmatpush2.bf16.msra.mxu0 0
  %2919 = vmatprep.subr.bf16.mxu0 0
  %2920 = vmatpush2.bf16.msra.mxu0 0
  %2921 = vmatprep.subr.bf16.mxu0 0
  %2922 = vmatpush2.bf16.msra.mxu0 0
  %2923 = vmatprep.subr.bf16.mxu0 0
  %2924 = vmatpush2.bf16.msra.mxu0 0
  %2925 = vmatprep.subr.bf16.mxu0 0
  %2926 = vmatpush2.bf16.msra.mxu0 0
  %2927 = vmatprep.subr.bf16.mxu0 0
  %2928 = vmatpush2.bf16.msra.mxu0 0
  %2929 = vmatprep.mubr.bf16.mxu0 0
  %2930 = vmatmul.mubr.bf16.gmra.mxu0 %v2892
  %v2931 = vpop.f32.mrf.mxu0
  %v2932 = vadd.f32 %v2885, %v2931
  %v2933 = vpop.f32.mrf.mxu0
  %v2934 = vpop.f32.mrf.mxu0
  %v2935 = vadd.f32 %v2888, %v2934
  %v2936 = vpop.f32.mrf.mxu0
  %2937 = vdwg.mxu0
  %s2938 = scalar_lea.vmem %s9, 32
  %v2939 = vld [vmem:[%s2938] sm:$0xf]
  %v2940 = vld [vmem:[%s2938 + $0x4] sm:$0xf]
  %v2941 = vld [vmem:[%s2938 + $0x8] sm:$0xf]
  %v2942 = vld [vmem:[%s2938 + $0xc] sm:$0xf]
  %v2944 = vlaneseq
  %v2945 = vshrl.u32 %v2944, 7
  %v2946 = vsub.s32 0, %v2945
  %v2947 = vrot.slane %v76, %v2946
  %v2953 = vunpack.c.l.b16 %v2939
  %v2954 = vunpack.c.l.b16 %v2940
  %v2955 = vunpack.c.l.b16 %v2941
  %v2956 = vunpack.c.l.b16 %v2942
  %v2957 = vpack.c.b16 %v2954, %v2953
  %v2958 = vpack.c.b16 %v2956, %v2955
  %2961 = vmatprep.subr.bf16.mxu0 0
  %2962 = vmatpush1.bf16.msra.mxu0 0
  %2963 = vmatprep.subr.bf16.mxu0 0
  %2964 = vmatpush1.bf16.msra.mxu0 0
  %2965 = vmatprep.subr.bf16.mxu0 0
  %2966 = vmatpush1.bf16.msra.mxu0 0
  %2967 = vmatprep.subr.bf16.mxu0 0
  %2968 = vmatpush1.bf16.msra.mxu0 0
  %2969 = vmatprep.subr.bf16.mxu0 0
  %2970 = vmatpush1.bf16.msra.mxu0 0
  %2971 = vmatprep.subr.bf16.mxu0 0
  %2972 = vmatpush1.bf16.msra.mxu0 0
  %2973 = vmatprep.subr.bf16.mxu0 0
  %2974 = vmatpush1.bf16.msra.mxu0 %v2958
  %2975 = vmatprep.subr.bf16.mxu0 0
  %2976 = vmatpush1.bf16.msra.mxu0 %v2957
  %2977 = vmatprep.subr.bf16.mxu0 0
  %2978 = vmatpush2.bf16.msra.mxu0 0
  %2979 = vmatprep.subr.bf16.mxu0 0
  %2980 = vmatpush2.bf16.msra.mxu0 0
  %2981 = vmatprep.subr.bf16.mxu0 0
  %2982 = vmatpush2.bf16.msra.mxu0 0
  %2983 = vmatprep.subr.bf16.mxu0 0
  %2984 = vmatpush2.bf16.msra.mxu0 0
  %2985 = vmatprep.subr.bf16.mxu0 0
  %2986 = vmatpush2.bf16.msra.mxu0 0
  %2987 = vmatprep.subr.bf16.mxu0 0
  %2988 = vmatpush2.bf16.msra.mxu0 0
  %2989 = vmatprep.subr.bf16.mxu0 0
  %2990 = vmatpush2.bf16.msra.mxu0 0
  %2991 = vmatprep.subr.bf16.mxu0 0
  %2992 = vmatpush2.bf16.msra.mxu0 0
  %2993 = vmatprep.mubr.bf16.mxu0 0
  %2994 = vmatmul.mubr.bf16.gmra.mxu0 %v2017
  %v2995 = vpop.f32.mrf.mxu0
  %v2996 = vadd.f32 %v2947, %v2995
  %v2997 = vpop.f32.mrf.mxu0
  %v2998 = vpop.f32.mrf.mxu0
  %v2999 = vadd.f32 %v2947, %v2998
  %v3000 = vpop.f32.mrf.mxu0
  %3001 = vdwg.mxu0
  %s3002 = scalar_lea.vmem %s10, 32
  %v3003 = vld [vmem:[%s3002] sm:$0xf]
  %v3004 = vld [vmem:[%s3002 + $0x4] sm:$0xf]
  %v3005 = vld [vmem:[%s3002 + $0x8] sm:$0xf]
  %v3006 = vld [vmem:[%s3002 + $0xc] sm:$0xf]
  %v3008 = vlaneseq
  %v3009 = vshrl.u32 %v3008, 7
  %v3010 = vsub.s32 0, %v3009
  %v3011 = vrot.slane %v80, %v3010
  %v3017 = vunpack.c.l.b16 %v3003
  %v3018 = vunpack.c.l.b16 %v3004
  %v3019 = vunpack.c.l.b16 %v3005
  %v3020 = vunpack.c.l.b16 %v3006
  %v3021 = vpack.c.b16 %v3018, %v3017
  %v3022 = vpack.c.b16 %v3020, %v3019
  %3025 = vmatprep.subr.bf16.mxu0 0
  %3026 = vmatpush1.bf16.msra.mxu0 0
  %3027 = vmatprep.subr.bf16.mxu0 0
  %3028 = vmatpush1.bf16.msra.mxu0 0
  %3029 = vmatprep.subr.bf16.mxu0 0
  %3030 = vmatpush1.bf16.msra.mxu0 0
  %3031 = vmatprep.subr.bf16.mxu0 0
  %3032 = vmatpush1.bf16.msra.mxu0 0
  %3033 = vmatprep.subr.bf16.mxu0 0
  %3034 = vmatpush1.bf16.msra.mxu0 0
  %3035 = vmatprep.subr.bf16.mxu0 0
  %3036 = vmatpush1.bf16.msra.mxu0 0
  %3037 = vmatprep.subr.bf16.mxu0 0
  %3038 = vmatpush1.bf16.msra.mxu0 %v3022
  %3039 = vmatprep.subr.bf16.mxu0 0
  %3040 = vmatpush1.bf16.msra.mxu0 %v3021
  %3041 = vmatprep.subr.bf16.mxu0 0
  %3042 = vmatpush2.bf16.msra.mxu0 0
  %3043 = vmatprep.subr.bf16.mxu0 0
  %3044 = vmatpush2.bf16.msra.mxu0 0
  %3045 = vmatprep.subr.bf16.mxu0 0
  %3046 = vmatpush2.bf16.msra.mxu0 0
  %3047 = vmatprep.subr.bf16.mxu0 0
  %3048 = vmatpush2.bf16.msra.mxu0 0
  %3049 = vmatprep.subr.bf16.mxu0 0
  %3050 = vmatpush2.bf16.msra.mxu0 0
  %3051 = vmatprep.subr.bf16.mxu0 0
  %3052 = vmatpush2.bf16.msra.mxu0 0
  %3053 = vmatprep.subr.bf16.mxu0 0
  %3054 = vmatpush2.bf16.msra.mxu0 0
  %3055 = vmatprep.subr.bf16.mxu0 0
  %3056 = vmatpush2.bf16.msra.mxu0 0
  %3057 = vmatprep.mubr.bf16.mxu0 0
  %3058 = vmatmul.mubr.bf16.gmra.mxu0 %v2083
  %v3059 = vpop.f32.mrf.mxu0
  %v3060 = vadd.f32 %v3011, %v3059
  %v3061 = vpop.f32.mrf.mxu0
  %v3062 = vpop.f32.mrf.mxu0
  %v3063 = vadd.f32 %v3011, %v3062
  %v3064 = vpop.f32.mrf.mxu0
  %3065 = vmatprep.mubr.bf16.mxu0 0
  %3066 = vmatmul.mubr.bf16.gmra.mxu0 %v2086
  %v3067 = vpop.f32.mrf.mxu0
  %v3068 = vadd.f32 %v3011, %v3067
  %v3069 = vpop.f32.mrf.mxu0
  %v3070 = vpop.f32.mrf.mxu0
  %v3071 = vadd.f32 %v3011, %v3070
  %v3072 = vpop.f32.mrf.mxu0
  %3073 = vdwg.mxu0
  %s3074 = scalar_lea.vmem %s11, 32
  %v3075 = vld [vmem:[%s3074] sm:$0xf]
  %v3076 = vld [vmem:[%s3074 + $0x4] sm:$0xf]
  %v3077 = vld [vmem:[%s3074 + $0x8] sm:$0xf]
  %v3078 = vld [vmem:[%s3074 + $0xc] sm:$0xf]
  %v3080 = vlaneseq
  %v3081 = vshrl.u32 %v3080, 7
  %v3082 = vsub.s32 0, %v3081
  %v3083 = vrot.slane %v84, %v3082
  %v3089 = vunpack.c.l.b16 %v3075
  %v3090 = vunpack.c.l.b16 %v3076
  %v3091 = vunpack.c.l.b16 %v3077
  %v3092 = vunpack.c.l.b16 %v3078
  %v3093 = vpack.c.b16 %v3090, %v3089
  %v3094 = vpack.c.b16 %v3092, %v3091
  %3097 = vmatprep.subr.bf16.mxu0 0
  %3098 = vmatpush1.bf16.msra.mxu0 0
  %3099 = vmatprep.subr.bf16.mxu0 0
  %3100 = vmatpush1.bf16.msra.mxu0 0
  %3101 = vmatprep.subr.bf16.mxu0 0
  %3102 = vmatpush1.bf16.msra.mxu0 0
  %3103 = vmatprep.subr.bf16.mxu0 0
  %3104 = vmatpush1.bf16.msra.mxu0 0
  %3105 = vmatprep.subr.bf16.mxu0 0
  %3106 = vmatpush1.bf16.msra.mxu0 0
  %3107 = vmatprep.subr.bf16.mxu0 0
  %3108 = vmatpush1.bf16.msra.mxu0 0
  %3109 = vmatprep.subr.bf16.mxu0 0
  %3110 = vmatpush1.bf16.msra.mxu0 %v3094
  %3111 = vmatprep.subr.bf16.mxu0 0
  %3112 = vmatpush1.bf16.msra.mxu0 %v3093
  %3113 = vmatprep.subr.bf16.mxu0 0
  %3114 = vmatpush2.bf16.msra.mxu0 0
  %3115 = vmatprep.subr.bf16.mxu0 0
  %3116 = vmatpush2.bf16.msra.mxu0 0
  %3117 = vmatprep.subr.bf16.mxu0 0
  %3118 = vmatpush2.bf16.msra.mxu0 0
  %3119 = vmatprep.subr.bf16.mxu0 0
  %3120 = vmatpush2.bf16.msra.mxu0 0
  %3121 = vmatprep.subr.bf16.mxu0 0
  %3122 = vmatpush2.bf16.msra.mxu0 0
  %3123 = vmatprep.subr.bf16.mxu0 0
  %3124 = vmatpush2.bf16.msra.mxu0 0
  %3125 = vmatprep.subr.bf16.mxu0 0
  %3126 = vmatpush2.bf16.msra.mxu0 0
  %3127 = vmatprep.subr.bf16.mxu0 0
  %3128 = vmatpush2.bf16.msra.mxu0 0
  %3129 = vmatprep.mubr.bf16.mxu0 0
  %3130 = vmatmul.mubr.bf16.gmra.mxu0 %v2160
  %v3131 = vpop.f32.mrf.mxu0
  %v3132 = vadd.f32 %v3083, %v3131
  %v3133 = vpop.f32.mrf.mxu0
  %v3134 = vpop.f32.mrf.mxu0
  %v3135 = vadd.f32 %v3083, %v3134
  %v3136 = vpop.f32.mrf.mxu0
  %3137 = vmatprep.mubr.bf16.mxu0 0
  %3138 = vmatmul.mubr.bf16.gmra.mxu0 %v2163
  %v3139 = vpop.f32.mrf.mxu0
  %v3140 = vadd.f32 %v3083, %v3139
  %v3141 = vpop.f32.mrf.mxu0
  %v3142 = vpop.f32.mrf.mxu0
  %v3143 = vadd.f32 %v3083, %v3142
  %v3144 = vpop.f32.mrf.mxu0
  %3145 = vdwg.mxu0
  %v3146 = vpack.c.bf16 %v2996, %v2996
  %v3147 = vpack.c.bf16 %v2999, %v2999
  %v3148 = vpack.c.bf16 %v3063, %v3060
  %v3149 = vpack.c.bf16 %v3071, %v3068
  %v3150 = vpack.c.bf16 %v3135, %v3132
  %v3151 = vpack.c.bf16 %v3143, %v3140
  %v3153 = vsel %vm305, %v3146, 0
  %v3156 = vsel %vm305, %v3148, 0
  %3158 = vmatprep.subr.bf16.mxu0 0
  %3159 = vmatpush1.bf16.xpose.msra.mxu0 0
  %3160 = vmatprep.subr.bf16.mxu0 0
  %3161 = vmatpush1.bf16.xpose.msra.mxu0 0
  %3162 = vmatprep.subr.bf16.mxu0 0
  %3163 = vmatpush1.bf16.xpose.msra.mxu0 0
  %3164 = vmatprep.subr.bf16.mxu0 0
  %3165 = vmatpush1.bf16.xpose.msra.mxu0 0
  %3166 = vmatprep.subr.bf16.mxu0 0
  %3167 = vmatpush1.bf16.xpose.msra.mxu0 0
  %3168 = vmatprep.subr.bf16.mxu0 0
  %3169 = vmatpush1.bf16.xpose.msra.mxu0 0
  %3170 = vmatprep.subr.bf16.mxu0 0
  %3171 = vmatpush1.bf16.xpose.msra.mxu0 0
  %3172 = vmatprep.subr.bf16.mxu0 0
  %3173 = vmatpush1.bf16.xpose.msra.mxu0 %v3156
  %3174 = vmatprep.subr.bf16.mxu0 0
  %3175 = vmatpush2.bf16.xpose.msra.mxu0 0
  %3176 = vmatprep.subr.bf16.mxu0 0
  %3177 = vmatpush2.bf16.xpose.msra.mxu0 0
  %3178 = vmatprep.subr.bf16.mxu0 0
  %3179 = vmatpush2.bf16.xpose.msra.mxu0 0
  %3180 = vmatprep.subr.bf16.mxu0 0
  %3181 = vmatpush2.bf16.xpose.msra.mxu0 0
  %3182 = vmatprep.subr.bf16.mxu0 0
  %3183 = vmatpush2.bf16.xpose.msra.mxu0 0
  %3184 = vmatprep.subr.bf16.mxu0 0
  %3185 = vmatpush2.bf16.xpose.msra.mxu0 0
  %3186 = vmatprep.subr.bf16.mxu0 0
  %3187 = vmatpush2.bf16.xpose.msra.mxu0 0
  %3188 = vmatprep.subr.bf16.mxu0 0
  %3189 = vmatpush2.bf16.xpose.msra.mxu0 0
  %3190 = vmatprep.mubr.bf16.mxu0 0
  %3191 = vmatmul.mubr.bf16.gmra.mxu0 %v3153
  %v3192 = vpop.f32.mrf.mxu0
  %v3193 = vadd.f32 0.0, %v3192
  %v3194 = vpop.f32.mrf.mxu0
  %v3195 = vpop.f32.mrf.mxu0
  %v3196 = vpop.f32.mrf.mxu0
  %3197 = vdwg.mxu0
  %v3199 = vsel %vm305, %v3147, 0
  %v3202 = vsel %vm305, %v3149, 0
  %3204 = vmatprep.subr.bf16.mxu0 0
  %3205 = vmatpush1.bf16.xpose.msra.mxu0 0
  %3206 = vmatprep.subr.bf16.mxu0 0
  %3207 = vmatpush1.bf16.xpose.msra.mxu0 0
  %3208 = vmatprep.subr.bf16.mxu0 0
  %3209 = vmatpush1.bf16.xpose.msra.mxu0 0
  %3210 = vmatprep.subr.bf16.mxu0 0
  %3211 = vmatpush1.bf16.xpose.msra.mxu0 0
  %3212 = vmatprep.subr.bf16.mxu0 0
  %3213 = vmatpush1.bf16.xpose.msra.mxu0 0
  %3214 = vmatprep.subr.bf16.mxu0 0
  %3215 = vmatpush1.bf16.xpose.msra.mxu0 0
  %3216 = vmatprep.subr.bf16.mxu0 0
  %3217 = vmatpush1.bf16.xpose.msra.mxu0 0
  %3218 = vmatprep.subr.bf16.mxu0 0
  %3219 = vmatpush1.bf16.xpose.msra.mxu0 %v3202
  %3220 = vmatprep.subr.bf16.mxu0 0
  %3221 = vmatpush2.bf16.xpose.msra.mxu0 0
  %3222 = vmatprep.subr.bf16.mxu0 0
  %3223 = vmatpush2.bf16.xpose.msra.mxu0 0
  %3224 = vmatprep.subr.bf16.mxu0 0
  %3225 = vmatpush2.bf16.xpose.msra.mxu0 0
  %3226 = vmatprep.subr.bf16.mxu0 0
  %3227 = vmatpush2.bf16.xpose.msra.mxu0 0
  %3228 = vmatprep.subr.bf16.mxu0 0
  %3229 = vmatpush2.bf16.xpose.msra.mxu0 0
  %3230 = vmatprep.subr.bf16.mxu0 0
  %3231 = vmatpush2.bf16.xpose.msra.mxu0 0
  %3232 = vmatprep.subr.bf16.mxu0 0
  %3233 = vmatpush2.bf16.xpose.msra.mxu0 0
  %3234 = vmatprep.subr.bf16.mxu0 0
  %3235 = vmatpush2.bf16.xpose.msra.mxu0 0
  %3236 = vmatprep.mubr.bf16.mxu0 0
  %3237 = vmatmul.mubr.bf16.gmra.mxu0 %v3199
  %v3238 = vpop.f32.mrf.mxu0
  %v3239 = vadd.f32 0.0, %v3238
  %v3240 = vpop.f32.mrf.mxu0
  %v3241 = vpop.f32.mrf.mxu0
  %v3242 = vpop.f32.mrf.mxu0
  %3243 = vdwg.mxu0
  %v3244 = vsel %vm2312, %v3193, -inf
  %3245 = vmax.xlane.f32.xlu0 %v3244
  %v3246 = vpop.xlane.xlu0 %3245
  %v3247 = vsel %vm2312, %v3239, -inf
  %3248 = vmax.xlane.f32.xlu0 %v3247
  %v3249 = vpop.xlane.xlu0 %3248
  %v3250 = vsub.f32 %v3193, %v3246
  %v3251 = vsub.f32 %v3239, %v3249
  %v3252 = vmul.f32 %v3250, 1.442695
  %v3253 = vpow.pop %v3252
  %v3254 = vmul.f32 %v3251, 1.442695
  %v3255 = vpow.pop %v3254
  %v3256 = vsel %vm2312, %v3253, 0.0
  %3257 = vadd.xlane.f32.xlu0 %v3256
  %v3258 = vpop.xlane.xlu0 %3257
  %v3259 = vsel %vm2312, %v3255, 0.0
  %3260 = vadd.xlane.f32.xlu0 %v3259
  %v3261 = vpop.xlane.xlu0 %3260
  %v3262 = vrcp.pop %v3258
  %v3263 = vrcp.pop %v3261
  %v3264 = vmul.f32 %v3253, %v3262
  %v3265 = vmul.f32 %v3255, %v3263
  %v3266 = vpack.c.bf16 %v3264, %v3264
  %v3267 = vpack.c.bf16 %v3265, %v3265
  %v3269 = vsel %vm2312, %v3266, 0
  %3271 = vmatprep.subr.bf16.mxu0 0
  %3272 = vmatpush1.bf16.msra.mxu0 0
  %3273 = vmatprep.subr.bf16.mxu0 0
  %3274 = vmatpush1.bf16.msra.mxu0 0
  %3275 = vmatprep.subr.bf16.mxu0 0
  %3276 = vmatpush1.bf16.msra.mxu0 0
  %3277 = vmatprep.subr.bf16.mxu0 0
  %3278 = vmatpush1.bf16.msra.mxu0 0
  %3279 = vmatprep.subr.bf16.mxu0 0
  %3280 = vmatpush1.bf16.msra.mxu0 0
  %3281 = vmatprep.subr.bf16.mxu0 0
  %3282 = vmatpush1.bf16.msra.mxu0 0
  %3283 = vmatprep.subr.bf16.mxu0 0
  %3284 = vmatpush1.bf16.msra.mxu0 0
  %3285 = vmatprep.subr.bf16.mxu0 0
  %3286 = vmatpush1.bf16.msra.mxu0 %v3150
  %3287 = vmatprep.subr.bf16.mxu0 0
  %3288 = vmatpush2.bf16.msra.mxu0 0
  %3289 = vmatprep.subr.bf16.mxu0 0
  %3290 = vmatpush2.bf16.msra.mxu0 0
  %3291 = vmatprep.subr.bf16.mxu0 0
  %3292 = vmatpush2.bf16.msra.mxu0 0
  %3293 = vmatprep.subr.bf16.mxu0 0
  %3294 = vmatpush2.bf16.msra.mxu0 0
  %3295 = vmatprep.subr.bf16.mxu0 0
  %3296 = vmatpush2.bf16.msra.mxu0 0
  %3297 = vmatprep.subr.bf16.mxu0 0
  %3298 = vmatpush2.bf16.msra.mxu0 0
  %3299 = vmatprep.subr.bf16.mxu0 0
  %3300 = vmatpush2.bf16.msra.mxu0 0
  %3301 = vmatprep.subr.bf16.mxu0 0
  %3302 = vmatpush2.bf16.msra.mxu0 0
  %3303 = vmatprep.mubr.bf16.mxu0 0
  %3304 = vmatmul.mubr.bf16.gmra.mxu0 %v3269
  %v3305 = vpop.f32.mrf.mxu0
  %v3306 = vadd.f32 0.0, %v3305
  %v3307 = vpop.f32.mrf.mxu0
  %v3308 = vpop.f32.mrf.mxu0
  %v3309 = vpop.f32.mrf.mxu0
  %3310 = vdwg.mxu0
  %v3312 = vsel %vm2312, %v3267, 0
  %3314 = vmatprep.subr.bf16.mxu0 0
  %3315 = vmatpush1.bf16.msra.mxu0 0
  %3316 = vmatprep.subr.bf16.mxu0 0
  %3317 = vmatpush1.bf16.msra.mxu0 0
  %3318 = vmatprep.subr.bf16.mxu0 0
  %3319 = vmatpush1.bf16.msra.mxu0 0
  %3320 = vmatprep.subr.bf16.mxu0 0
  %3321 = vmatpush1.bf16.msra.mxu0 0
  %3322 = vmatprep.subr.bf16.mxu0 0
  %3323 = vmatpush1.bf16.msra.mxu0 0
  %3324 = vmatprep.subr.bf16.mxu0 0
  %3325 = vmatpush1.bf16.msra.mxu0 0
  %3326 = vmatprep.subr.bf16.mxu0 0
  %3327 = vmatpush1.bf16.msra.mxu0 0
  %3328 = vmatprep.subr.bf16.mxu0 0
  %3329 = vmatpush1.bf16.msra.mxu0 %v3151
  %3330 = vmatprep.subr.bf16.mxu0 0
  %3331 = vmatpush2.bf16.msra.mxu0 0
  %3332 = vmatprep.subr.bf16.mxu0 0
  %3333 = vmatpush2.bf16.msra.mxu0 0
  %3334 = vmatprep.subr.bf16.mxu0 0
  %3335 = vmatpush2.bf16.msra.mxu0 0
  %3336 = vmatprep.subr.bf16.mxu0 0
  %3337 = vmatpush2.bf16.msra.mxu0 0
  %3338 = vmatprep.subr.bf16.mxu0 0
  %3339 = vmatpush2.bf16.msra.mxu0 0
  %3340 = vmatprep.subr.bf16.mxu0 0
  %3341 = vmatpush2.bf16.msra.mxu0 0
  %3342 = vmatprep.subr.bf16.mxu0 0
  %3343 = vmatpush2.bf16.msra.mxu0 0
  %3344 = vmatprep.subr.bf16.mxu0 0
  %3345 = vmatpush2.bf16.msra.mxu0 0
  %3346 = vmatprep.mubr.bf16.mxu0 0
  %3347 = vmatmul.mubr.bf16.gmra.mxu0 %v3312
  %v3348 = vpop.f32.mrf.mxu0
  %v3349 = vadd.f32 0.0, %v3348
  %v3350 = vpop.f32.mrf.mxu0
  %v3351 = vpop.f32.mrf.mxu0
  %v3352 = vpop.f32.mrf.mxu0
  %3353 = vdwg.mxu0
  %v3354 = vpack.c.bf16 %v3349, %v3306
  %s3355 = scalar_lea.vmem %s12, 8
  %v3356 = vld [vmem:[%s3355] sm:$0xf]
  %v3358 = vsel %vm305, %v3354, 0
  %v3361 = vsel %vm425, %v3356, 0
  %3363 = vmatprep.subr.bf16.mxu0 0
  %3364 = vmatpush1.bf16.msra.mxu0 0
  %3365 = vmatprep.subr.bf16.mxu0 0
  %3366 = vmatpush1.bf16.msra.mxu0 0
  %3367 = vmatprep.subr.bf16.mxu0 0
  %3368 = vmatpush1.bf16.msra.mxu0 0
  %3369 = vmatprep.subr.bf16.mxu0 0
  %3370 = vmatpush1.bf16.msra.mxu0 0
  %3371 = vmatprep.subr.bf16.mxu0 0
  %3372 = vmatpush1.bf16.msra.mxu0 0
  %3373 = vmatprep.subr.bf16.mxu0 0
  %3374 = vmatpush1.bf16.msra.mxu0 0
  %3375 = vmatprep.subr.bf16.mxu0 0
  %3376 = vmatpush1.bf16.msra.mxu0 0
  %3377 = vmatprep.subr.bf16.mxu0 0
  %3378 = vmatpush1.bf16.msra.mxu0 %v3361
  %3379 = vmatprep.subr.bf16.mxu0 0
  %3380 = vmatpush2.bf16.msra.mxu0 0
  %3381 = vmatprep.subr.bf16.mxu0 0
  %3382 = vmatpush2.bf16.msra.mxu0 0
  %3383 = vmatprep.subr.bf16.mxu0 0
  %3384 = vmatpush2.bf16.msra.mxu0 0
  %3385 = vmatprep.subr.bf16.mxu0 0
  %3386 = vmatpush2.bf16.msra.mxu0 0
  %3387 = vmatprep.subr.bf16.mxu0 0
  %3388 = vmatpush2.bf16.msra.mxu0 0
  %3389 = vmatprep.subr.bf16.mxu0 0
  %3390 = vmatpush2.bf16.msra.mxu0 0
  %3391 = vmatprep.subr.bf16.mxu0 0
  %3392 = vmatpush2.bf16.msra.mxu0 0
  %3393 = vmatprep.subr.bf16.mxu0 0
  %3394 = vmatpush2.bf16.msra.mxu0 0
  %3395 = vmatprep.mubr.bf16.mxu0 0
  %3396 = vmatmul.mubr.bf16.gmra.mxu0 %v3358
  %v3397 = vpop.f32.mrf.mxu0
  %v3398 = vadd.f32 0.0, %v3397
  %v3399 = vpop.f32.mrf.mxu0
  %v3400 = vpop.f32.mrf.mxu0
  %v3401 = vadd.f32 0.0, %v3400
  %v3402 = vpop.f32.mrf.mxu0
  %3403 = vdwg.mxu0
  %v3404 = vadd.f32 %v2932, %v3398
  %v3405 = vadd.f32 %v2935, %v3401
  %s3406 = scalar_lea.vmem %s9, 48
  %v3407 = vld [vmem:[%s3406] sm:$0xf]
  %v3408 = vld [vmem:[%s3406 + $0x4] sm:$0xf]
  %v3409 = vld [vmem:[%s3406 + $0x8] sm:$0xf]
  %v3410 = vld [vmem:[%s3406 + $0xc] sm:$0xf]
  %v3412 = vlaneseq
  %v3413 = vshrl.u32 %v3412, 7
  %v3414 = vsub.s32 0, %v3413
  %v3415 = vrot.slane %v77, %v3414
  %v3421 = vunpack.c.l.b16 %v3407
  %v3422 = vunpack.c.l.b16 %v3408
  %v3423 = vunpack.c.l.b16 %v3409
  %v3424 = vunpack.c.l.b16 %v3410
  %v3425 = vpack.c.b16 %v3422, %v3421
  %v3426 = vpack.c.b16 %v3424, %v3423
  %3429 = vmatprep.subr.bf16.mxu0 0
  %3430 = vmatpush1.bf16.msra.mxu0 0
  %3431 = vmatprep.subr.bf16.mxu0 0
  %3432 = vmatpush1.bf16.msra.mxu0 0
  %3433 = vmatprep.subr.bf16.mxu0 0
  %3434 = vmatpush1.bf16.msra.mxu0 0
  %3435 = vmatprep.subr.bf16.mxu0 0
  %3436 = vmatpush1.bf16.msra.mxu0 0
  %3437 = vmatprep.subr.bf16.mxu0 0
  %3438 = vmatpush1.bf16.msra.mxu0 0
  %3439 = vmatprep.subr.bf16.mxu0 0
  %3440 = vmatpush1.bf16.msra.mxu0 0
  %3441 = vmatprep.subr.bf16.mxu0 0
  %3442 = vmatpush1.bf16.msra.mxu0 %v3426
  %3443 = vmatprep.subr.bf16.mxu0 0
  %3444 = vmatpush1.bf16.msra.mxu0 %v3425
  %3445 = vmatprep.subr.bf16.mxu0 0
  %3446 = vmatpush2.bf16.msra.mxu0 0
  %3447 = vmatprep.subr.bf16.mxu0 0
  %3448 = vmatpush2.bf16.msra.mxu0 0
  %3449 = vmatprep.subr.bf16.mxu0 0
  %3450 = vmatpush2.bf16.msra.mxu0 0
  %3451 = vmatprep.subr.bf16.mxu0 0
  %3452 = vmatpush2.bf16.msra.mxu0 0
  %3453 = vmatprep.subr.bf16.mxu0 0
  %3454 = vmatpush2.bf16.msra.mxu0 0
  %3455 = vmatprep.subr.bf16.mxu0 0
  %3456 = vmatpush2.bf16.msra.mxu0 0
  %3457 = vmatprep.subr.bf16.mxu0 0
  %3458 = vmatpush2.bf16.msra.mxu0 0
  %3459 = vmatprep.subr.bf16.mxu0 0
  %3460 = vmatpush2.bf16.msra.mxu0 0
  %3461 = vmatprep.mubr.bf16.mxu0 0
  %3462 = vmatmul.mubr.bf16.gmra.mxu0 %v2017
  %v3463 = vpop.f32.mrf.mxu0
  %v3464 = vadd.f32 %v3415, %v3463
  %v3465 = vpop.f32.mrf.mxu0
  %v3466 = vpop.f32.mrf.mxu0
  %v3467 = vadd.f32 %v3415, %v3466
  %v3468 = vpop.f32.mrf.mxu0
  %3469 = vdwg.mxu0
  %s3470 = scalar_lea.vmem %s10, 48
  %v3471 = vld [vmem:[%s3470] sm:$0xf]
  %v3472 = vld [vmem:[%s3470 + $0x4] sm:$0xf]
  %v3473 = vld [vmem:[%s3470 + $0x8] sm:$0xf]
  %v3474 = vld [vmem:[%s3470 + $0xc] sm:$0xf]
  %v3476 = vlaneseq
  %v3477 = vshrl.u32 %v3476, 7
  %v3478 = vsub.s32 0, %v3477
  %v3479 = vrot.slane %v81, %v3478
  %v3485 = vunpack.c.l.b16 %v3471
  %v3486 = vunpack.c.l.b16 %v3472
  %v3487 = vunpack.c.l.b16 %v3473
  %v3488 = vunpack.c.l.b16 %v3474
  %v3489 = vpack.c.b16 %v3486, %v3485
  %v3490 = vpack.c.b16 %v3488, %v3487
  %3493 = vmatprep.subr.bf16.mxu0 0
  %3494 = vmatpush1.bf16.msra.mxu0 0
  %3495 = vmatprep.subr.bf16.mxu0 0
  %3496 = vmatpush1.bf16.msra.mxu0 0
  %3497 = vmatprep.subr.bf16.mxu0 0
  %3498 = vmatpush1.bf16.msra.mxu0 0
  %3499 = vmatprep.subr.bf16.mxu0 0
  %3500 = vmatpush1.bf16.msra.mxu0 0
  %3501 = vmatprep.subr.bf16.mxu0 0
  %3502 = vmatpush1.bf16.msra.mxu0 0
  %3503 = vmatprep.subr.bf16.mxu0 0
  %3504 = vmatpush1.bf16.msra.mxu0 0
  %3505 = vmatprep.subr.bf16.mxu0 0
  %3506 = vmatpush1.bf16.msra.mxu0 %v3490
  %3507 = vmatprep.subr.bf16.mxu0 0
  %3508 = vmatpush1.bf16.msra.mxu0 %v3489
  %3509 = vmatprep.subr.bf16.mxu0 0
  %3510 = vmatpush2.bf16.msra.mxu0 0
  %3511 = vmatprep.subr.bf16.mxu0 0
  %3512 = vmatpush2.bf16.msra.mxu0 0
  %3513 = vmatprep.subr.bf16.mxu0 0
  %3514 = vmatpush2.bf16.msra.mxu0 0
  %3515 = vmatprep.subr.bf16.mxu0 0
  %3516 = vmatpush2.bf16.msra.mxu0 0
  %3517 = vmatprep.subr.bf16.mxu0 0
  %3518 = vmatpush2.bf16.msra.mxu0 0
  %3519 = vmatprep.subr.bf16.mxu0 0
  %3520 = vmatpush2.bf16.msra.mxu0 0
  %3521 = vmatprep.subr.bf16.mxu0 0
  %3522 = vmatpush2.bf16.msra.mxu0 0
  %3523 = vmatprep.subr.bf16.mxu0 0
  %3524 = vmatpush2.bf16.msra.mxu0 0
  %3525 = vmatprep.mubr.bf16.mxu0 0
  %3526 = vmatmul.mubr.bf16.gmra.mxu0 %v2083
  %v3527 = vpop.f32.mrf.mxu0
  %v3528 = vadd.f32 %v3479, %v3527
  %v3529 = vpop.f32.mrf.mxu0
  %v3530 = vpop.f32.mrf.mxu0
  %v3531 = vadd.f32 %v3479, %v3530
  %v3532 = vpop.f32.mrf.mxu0
  %3533 = vmatprep.mubr.bf16.mxu0 0
  %3534 = vmatmul.mubr.bf16.gmra.mxu0 %v2086
  %v3535 = vpop.f32.mrf.mxu0
  %v3536 = vadd.f32 %v3479, %v3535
  %v3537 = vpop.f32.mrf.mxu0
  %v3538 = vpop.f32.mrf.mxu0
  %v3539 = vadd.f32 %v3479, %v3538
  %v3540 = vpop.f32.mrf.mxu0
  %3541 = vdwg.mxu0
  %s3542 = scalar_lea.vmem %s11, 48
  %v3543 = vld [vmem:[%s3542] sm:$0xf]
  %v3544 = vld [vmem:[%s3542 + $0x4] sm:$0xf]
  %v3545 = vld [vmem:[%s3542 + $0x8] sm:$0xf]
  %v3546 = vld [vmem:[%s3542 + $0xc] sm:$0xf]
  %v3548 = vlaneseq
  %v3549 = vshrl.u32 %v3548, 7
  %v3550 = vsub.s32 0, %v3549
  %v3551 = vrot.slane %v85, %v3550
  %v3557 = vunpack.c.l.b16 %v3543
  %v3558 = vunpack.c.l.b16 %v3544
  %v3559 = vunpack.c.l.b16 %v3545
  %v3560 = vunpack.c.l.b16 %v3546
  %v3561 = vpack.c.b16 %v3558, %v3557
  %v3562 = vpack.c.b16 %v3560, %v3559
  %3565 = vmatprep.subr.bf16.mxu0 0
  %3566 = vmatpush1.bf16.msra.mxu0 0
  %3567 = vmatprep.subr.bf16.mxu0 0
  %3568 = vmatpush1.bf16.msra.mxu0 0
  %3569 = vmatprep.subr.bf16.mxu0 0
  %3570 = vmatpush1.bf16.msra.mxu0 0
  %3571 = vmatprep.subr.bf16.mxu0 0
  %3572 = vmatpush1.bf16.msra.mxu0 0
  %3573 = vmatprep.subr.bf16.mxu0 0
  %3574 = vmatpush1.bf16.msra.mxu0 0
  %3575 = vmatprep.subr.bf16.mxu0 0
  %3576 = vmatpush1.bf16.msra.mxu0 0
  %3577 = vmatprep.subr.bf16.mxu0 0
  %3578 = vmatpush1.bf16.msra.mxu0 %v3562
  %3579 = vmatprep.subr.bf16.mxu0 0
  %3580 = vmatpush1.bf16.msra.mxu0 %v3561
  %3581 = vmatprep.subr.bf16.mxu0 0
  %3582 = vmatpush2.bf16.msra.mxu0 0
  %3583 = vmatprep.subr.bf16.mxu0 0
  %3584 = vmatpush2.bf16.msra.mxu0 0
  %3585 = vmatprep.subr.bf16.mxu0 0
  %3586 = vmatpush2.bf16.msra.mxu0 0
  %3587 = vmatprep.subr.bf16.mxu0 0
  %3588 = vmatpush2.bf16.msra.mxu0 0
  %3589 = vmatprep.subr.bf16.mxu0 0
  %3590 = vmatpush2.bf16.msra.mxu0 0
  %3591 = vmatprep.subr.bf16.mxu0 0
  %3592 = vmatpush2.bf16.msra.mxu0 0
  %3593 = vmatprep.subr.bf16.mxu0 0
  %3594 = vmatpush2.bf16.msra.mxu0 0
  %3595 = vmatprep.subr.bf16.mxu0 0
  %3596 = vmatpush2.bf16.msra.mxu0 0
  %3597 = vmatprep.mubr.bf16.mxu0 0
  %3598 = vmatmul.mubr.bf16.gmra.mxu0 %v2160
  %v3599 = vpop.f32.mrf.mxu0
  %v3600 = vadd.f32 %v3551, %v3599
  %v3601 = vpop.f32.mrf.mxu0
  %v3602 = vpop.f32.mrf.mxu0
  %v3603 = vadd.f32 %v3551, %v3602
  %v3604 = vpop.f32.mrf.mxu0
  %3605 = vmatprep.mubr.bf16.mxu0 0
  %3606 = vmatmul.mubr.bf16.gmra.mxu0 %v2163
  %v3607 = vpop.f32.mrf.mxu0
  %v3608 = vadd.f32 %v3551, %v3607
  %v3609 = vpop.f32.mrf.mxu0
  %v3610 = vpop.f32.mrf.mxu0
  %v3611 = vadd.f32 %v3551, %v3610
  %v3612 = vpop.f32.mrf.mxu0
  %3613 = vdwg.mxu0
  %v3614 = vpack.c.bf16 %v3464, %v3464
  %v3615 = vpack.c.bf16 %v3467, %v3467
  %v3616 = vpack.c.bf16 %v3531, %v3528
  %v3617 = vpack.c.bf16 %v3539, %v3536
  %v3618 = vpack.c.bf16 %v3603, %v3600
  %v3619 = vpack.c.bf16 %v3611, %v3608
  %v3621 = vsel %vm305, %v3614, 0
  %v3624 = vsel %vm305, %v3616, 0
  %3626 = vmatprep.subr.bf16.mxu0 0
  %3627 = vmatpush1.bf16.xpose.msra.mxu0 0
  %3628 = vmatprep.subr.bf16.mxu0 0
  %3629 = vmatpush1.bf16.xpose.msra.mxu0 0
  %3630 = vmatprep.subr.bf16.mxu0 0
  %3631 = vmatpush1.bf16.xpose.msra.mxu0 0
  %3632 = vmatprep.subr.bf16.mxu0 0
  %3633 = vmatpush1.bf16.xpose.msra.mxu0 0
  %3634 = vmatprep.subr.bf16.mxu0 0
  %3635 = vmatpush1.bf16.xpose.msra.mxu0 0
  %3636 = vmatprep.subr.bf16.mxu0 0
  %3637 = vmatpush1.bf16.xpose.msra.mxu0 0
  %3638 = vmatprep.subr.bf16.mxu0 0
  %3639 = vmatpush1.bf16.xpose.msra.mxu0 0
  %3640 = vmatprep.subr.bf16.mxu0 0
  %3641 = vmatpush1.bf16.xpose.msra.mxu0 %v3624
  %3642 = vmatprep.subr.bf16.mxu0 0
  %3643 = vmatpush2.bf16.xpose.msra.mxu0 0
  %3644 = vmatprep.subr.bf16.mxu0 0
  %3645 = vmatpush2.bf16.xpose.msra.mxu0 0
  %3646 = vmatprep.subr.bf16.mxu0 0
  %3647 = vmatpush2.bf16.xpose.msra.mxu0 0
  %3648 = vmatprep.subr.bf16.mxu0 0
  %3649 = vmatpush2.bf16.xpose.msra.mxu0 0
  %3650 = vmatprep.subr.bf16.mxu0 0
  %3651 = vmatpush2.bf16.xpose.msra.mxu0 0
  %3652 = vmatprep.subr.bf16.mxu0 0
  %3653 = vmatpush2.bf16.xpose.msra.mxu0 0
  %3654 = vmatprep.subr.bf16.mxu0 0
  %3655 = vmatpush2.bf16.xpose.msra.mxu0 0
  %3656 = vmatprep.subr.bf16.mxu0 0
  %3657 = vmatpush2.bf16.xpose.msra.mxu0 0
  %3658 = vmatprep.mubr.bf16.mxu0 0
  %3659 = vmatmul.mubr.bf16.gmra.mxu0 %v3621
  %v3660 = vpop.f32.mrf.mxu0
  %v3661 = vadd.f32 0.0, %v3660
  %v3662 = vpop.f32.mrf.mxu0
  %v3663 = vpop.f32.mrf.mxu0
  %v3664 = vpop.f32.mrf.mxu0
  %3665 = vdwg.mxu0
  %v3667 = vsel %vm305, %v3615, 0
  %v3670 = vsel %vm305, %v3617, 0
  %3672 = vmatprep.subr.bf16.mxu0 0
  %3673 = vmatpush1.bf16.xpose.msra.mxu0 0
  %3674 = vmatprep.subr.bf16.mxu0 0
  %3675 = vmatpush1.bf16.xpose.msra.mxu0 0
  %3676 = vmatprep.subr.bf16.mxu0 0
  %3677 = vmatpush1.bf16.xpose.msra.mxu0 0
  %3678 = vmatprep.subr.bf16.mxu0 0
  %3679 = vmatpush1.bf16.xpose.msra.mxu0 0
  %3680 = vmatprep.subr.bf16.mxu0 0
  %3681 = vmatpush1.bf16.xpose.msra.mxu0 0
  %3682 = vmatprep.subr.bf16.mxu0 0
  %3683 = vmatpush1.bf16.xpose.msra.mxu0 0
  %3684 = vmatprep.subr.bf16.mxu0 0
  %3685 = vmatpush1.bf16.xpose.msra.mxu0 0
  %3686 = vmatprep.subr.bf16.mxu0 0
  %3687 = vmatpush1.bf16.xpose.msra.mxu0 %v3670
  %3688 = vmatprep.subr.bf16.mxu0 0
  %3689 = vmatpush2.bf16.xpose.msra.mxu0 0
  %3690 = vmatprep.subr.bf16.mxu0 0
  %3691 = vmatpush2.bf16.xpose.msra.mxu0 0
  %3692 = vmatprep.subr.bf16.mxu0 0
  %3693 = vmatpush2.bf16.xpose.msra.mxu0 0
  %3694 = vmatprep.subr.bf16.mxu0 0
  %3695 = vmatpush2.bf16.xpose.msra.mxu0 0
  %3696 = vmatprep.subr.bf16.mxu0 0
  %3697 = vmatpush2.bf16.xpose.msra.mxu0 0
  %3698 = vmatprep.subr.bf16.mxu0 0
  %3699 = vmatpush2.bf16.xpose.msra.mxu0 0
  %3700 = vmatprep.subr.bf16.mxu0 0
  %3701 = vmatpush2.bf16.xpose.msra.mxu0 0
  %3702 = vmatprep.subr.bf16.mxu0 0
  %3703 = vmatpush2.bf16.xpose.msra.mxu0 0
  %3704 = vmatprep.mubr.bf16.mxu0 0
  %3705 = vmatmul.mubr.bf16.gmra.mxu0 %v3667
  %v3706 = vpop.f32.mrf.mxu0
  %v3707 = vadd.f32 0.0, %v3706
  %v3708 = vpop.f32.mrf.mxu0
  %v3709 = vpop.f32.mrf.mxu0
  %v3710 = vpop.f32.mrf.mxu0
  %3711 = vdwg.mxu0
  %v3712 = vsel %vm2312, %v3661, -inf
  %3713 = vmax.xlane.f32.xlu0 %v3712
  %v3714 = vpop.xlane.xlu0 %3713
  %v3715 = vsel %vm2312, %v3707, -inf
  %3716 = vmax.xlane.f32.xlu0 %v3715
  %v3717 = vpop.xlane.xlu0 %3716
  %v3718 = vsub.f32 %v3661, %v3714
  %v3719 = vsub.f32 %v3707, %v3717
  %v3720 = vmul.f32 %v3718, 1.442695
  %v3721 = vpow.pop %v3720
  %v3722 = vmul.f32 %v3719, 1.442695
  %v3723 = vpow.pop %v3722
  %v3724 = vsel %vm2312, %v3721, 0.0
  %3725 = vadd.xlane.f32.xlu0 %v3724
  %v3726 = vpop.xlane.xlu0 %3725
  %v3727 = vsel %vm2312, %v3723, 0.0
  %3728 = vadd.xlane.f32.xlu0 %v3727
  %v3729 = vpop.xlane.xlu0 %3728
  %v3730 = vrcp.pop %v3726
  %v3731 = vrcp.pop %v3729
  %v3732 = vmul.f32 %v3721, %v3730
  %v3733 = vmul.f32 %v3723, %v3731
  %v3734 = vpack.c.bf16 %v3732, %v3732
  %v3735 = vpack.c.bf16 %v3733, %v3733
  %v3737 = vsel %vm2312, %v3734, 0
  %3739 = vmatprep.subr.bf16.mxu0 0
  %3740 = vmatpush1.bf16.msra.mxu0 0
  %3741 = vmatprep.subr.bf16.mxu0 0
  %3742 = vmatpush1.bf16.msra.mxu0 0
  %3743 = vmatprep.subr.bf16.mxu0 0
  %3744 = vmatpush1.bf16.msra.mxu0 0
  %3745 = vmatprep.subr.bf16.mxu0 0
  %3746 = vmatpush1.bf16.msra.mxu0 0
  %3747 = vmatprep.subr.bf16.mxu0 0
  %3748 = vmatpush1.bf16.msra.mxu0 0
  %3749 = vmatprep.subr.bf16.mxu0 0
  %3750 = vmatpush1.bf16.msra.mxu0 0
  %3751 = vmatprep.subr.bf16.mxu0 0
  %3752 = vmatpush1.bf16.msra.mxu0 0
  %3753 = vmatprep.subr.bf16.mxu0 0
  %3754 = vmatpush1.bf16.msra.mxu0 %v3618
  %3755 = vmatprep.subr.bf16.mxu0 0
  %3756 = vmatpush2.bf16.msra.mxu0 0
  %3757 = vmatprep.subr.bf16.mxu0 0
  %3758 = vmatpush2.bf16.msra.mxu0 0
  %3759 = vmatprep.subr.bf16.mxu0 0
  %3760 = vmatpush2.bf16.msra.mxu0 0
  %3761 = vmatprep.subr.bf16.mxu0 0
  %3762 = vmatpush2.bf16.msra.mxu0 0
  %3763 = vmatprep.subr.bf16.mxu0 0
  %3764 = vmatpush2.bf16.msra.mxu0 0
  %3765 = vmatprep.subr.bf16.mxu0 0
  %3766 = vmatpush2.bf16.msra.mxu0 0
  %3767 = vmatprep.subr.bf16.mxu0 0
  %3768 = vmatpush2.bf16.msra.mxu0 0
  %3769 = vmatprep.subr.bf16.mxu0 0
  %3770 = vmatpush2.bf16.msra.mxu0 0
  %3771 = vmatprep.mubr.bf16.mxu0 0
  %3772 = vmatmul.mubr.bf16.gmra.mxu0 %v3737
  %v3773 = vpop.f32.mrf.mxu0
  %v3774 = vadd.f32 0.0, %v3773
  %v3775 = vpop.f32.mrf.mxu0
  %v3776 = vpop.f32.mrf.mxu0
  %v3777 = vpop.f32.mrf.mxu0
  %3778 = vdwg.mxu0
  %v3780 = vsel %vm2312, %v3735, 0
  %3782 = vmatprep.subr.bf16.mxu0 0
  %3783 = vmatpush1.bf16.msra.mxu0 0
  %3784 = vmatprep.subr.bf16.mxu0 0
  %3785 = vmatpush1.bf16.msra.mxu0 0
  %3786 = vmatprep.subr.bf16.mxu0 0
  %3787 = vmatpush1.bf16.msra.mxu0 0
  %3788 = vmatprep.subr.bf16.mxu0 0
  %3789 = vmatpush1.bf16.msra.mxu0 0
  %3790 = vmatprep.subr.bf16.mxu0 0
  %3791 = vmatpush1.bf16.msra.mxu0 0
  %3792 = vmatprep.subr.bf16.mxu0 0
  %3793 = vmatpush1.bf16.msra.mxu0 0
  %3794 = vmatprep.subr.bf16.mxu0 0
  %3795 = vmatpush1.bf16.msra.mxu0 0
  %3796 = vmatprep.subr.bf16.mxu0 0
  %3797 = vmatpush1.bf16.msra.mxu0 %v3619
  %3798 = vmatprep.subr.bf16.mxu0 0
  %3799 = vmatpush2.bf16.msra.mxu0 0
  %3800 = vmatprep.subr.bf16.mxu0 0
  %3801 = vmatpush2.bf16.msra.mxu0 0
  %3802 = vmatprep.subr.bf16.mxu0 0
  %3803 = vmatpush2.bf16.msra.mxu0 0
  %3804 = vmatprep.subr.bf16.mxu0 0
  %3805 = vmatpush2.bf16.msra.mxu0 0
  %3806 = vmatprep.subr.bf16.mxu0 0
  %3807 = vmatpush2.bf16.msra.mxu0 0
  %3808 = vmatprep.subr.bf16.mxu0 0
  %3809 = vmatpush2.bf16.msra.mxu0 0
  %3810 = vmatprep.subr.bf16.mxu0 0
  %3811 = vmatpush2.bf16.msra.mxu0 0
  %3812 = vmatprep.subr.bf16.mxu0 0
  %3813 = vmatpush2.bf16.msra.mxu0 0
  %3814 = vmatprep.mubr.bf16.mxu0 0
  %3815 = vmatmul.mubr.bf16.gmra.mxu0 %v3780
  %v3816 = vpop.f32.mrf.mxu0
  %v3817 = vadd.f32 0.0, %v3816
  %v3818 = vpop.f32.mrf.mxu0
  %v3819 = vpop.f32.mrf.mxu0
  %v3820 = vpop.f32.mrf.mxu0
  %3821 = vdwg.mxu0
  %v3822 = vpack.c.bf16 %v3817, %v3774
  %s3823 = scalar_lea.vmem %s12, 12
  %v3824 = vld [vmem:[%s3823] sm:$0xf]
  %v3826 = vsel %vm305, %v3822, 0
  %v3829 = vsel %vm425, %v3824, 0
  %3831 = vmatprep.subr.bf16.mxu0 0
  %3832 = vmatpush1.bf16.msra.mxu0 0
  %3833 = vmatprep.subr.bf16.mxu0 0
  %3834 = vmatpush1.bf16.msra.mxu0 0
  %3835 = vmatprep.subr.bf16.mxu0 0
  %3836 = vmatpush1.bf16.msra.mxu0 0
  %3837 = vmatprep.subr.bf16.mxu0 0
  %3838 = vmatpush1.bf16.msra.mxu0 0
  %3839 = vmatprep.subr.bf16.mxu0 0
  %3840 = vmatpush1.bf16.msra.mxu0 0
  %3841 = vmatprep.subr.bf16.mxu0 0
  %3842 = vmatpush1.bf16.msra.mxu0 0
  %3843 = vmatprep.subr.bf16.mxu0 0
  %3844 = vmatpush1.bf16.msra.mxu0 0
  %3845 = vmatprep.subr.bf16.mxu0 0
  %3846 = vmatpush1.bf16.msra.mxu0 %v3829
  %3847 = vmatprep.subr.bf16.mxu0 0
  %3848 = vmatpush2.bf16.msra.mxu0 0
  %3849 = vmatprep.subr.bf16.mxu0 0
  %3850 = vmatpush2.bf16.msra.mxu0 0
  %3851 = vmatprep.subr.bf16.mxu0 0
  %3852 = vmatpush2.bf16.msra.mxu0 0
  %3853 = vmatprep.subr.bf16.mxu0 0
  %3854 = vmatpush2.bf16.msra.mxu0 0
  %3855 = vmatprep.subr.bf16.mxu0 0
  %3856 = vmatpush2.bf16.msra.mxu0 0
  %3857 = vmatprep.subr.bf16.mxu0 0
  %3858 = vmatpush2.bf16.msra.mxu0 0
  %3859 = vmatprep.subr.bf16.mxu0 0
  %3860 = vmatpush2.bf16.msra.mxu0 0
  %3861 = vmatprep.subr.bf16.mxu0 0
  %3862 = vmatpush2.bf16.msra.mxu0 0
  %3863 = vmatprep.mubr.bf16.mxu0 0
  %3864 = vmatmul.mubr.bf16.gmra.mxu0 %v3826
  %v3865 = vpop.f32.mrf.mxu0
  %v3866 = vadd.f32 0.0, %v3865
  %v3867 = vpop.f32.mrf.mxu0
  %v3868 = vpop.f32.mrf.mxu0
  %v3869 = vadd.f32 0.0, %v3868
  %v3870 = vpop.f32.mrf.mxu0
  %3871 = vdwg.mxu0
  %v3872 = vadd.f32 %v3404, %v3866
  %v3873 = vadd.f32 %v3405, %v3869
  %v3874 = vlaneseq
  %v3875 = vshrl.u32 %v3874, 7
  %v3876 = vsub.s32 1, %v3875
  %v3877 = vrot.slane %v60, %v3876
  %v3878 = vadd.f32 %v3872, %v3877
  %v3879 = vadd.f32 %v3873, %v3877
  %v3880 = vadd.f32 %v1981, %v3878
  %v3881 = vadd.f32 %v1982, %v3879
  %v3882 = vsel %vm125, %v3880, 0.0
  %3883 = vadd.xlane.f32.xlu0 %v3882
  %v3884 = vpop.xlane.xlu0 %3883
  %v3885 = vsel %vm125, %v3881, 0.0
  %3886 = vadd.xlane.f32.xlu0 %v3885
  %v3887 = vpop.xlane.xlu0 %3886
  %v3888 = vmul.f32 %v3884, %v1950
  %v3889 = vmul.f32 %v3887, %v1950
  %v3890 = vsub.f32 %v3880, %v3888
  %v3891 = vsub.f32 %v3881, %v3889
  %v3892 = vmul.f32 %v3890, %v3890
  %v3893 = vmul.f32 %v3891, %v3891
  %v3894 = vsel %vm125, %v3892, 0.0
  %3895 = vadd.xlane.f32.xlu0 %v3894
  %v3896 = vpop.xlane.xlu0 %3895
  %v3897 = vsel %vm125, %v3893, 0.0
  %3898 = vadd.xlane.f32.xlu0 %v3897
  %v3899 = vpop.xlane.xlu0 %3898
  %v3900 = vmul.f32 %v3896, %v1950
  %v3901 = vmul.f32 %v3899, %v1950
  %v3902 = vadd.f32 %v3900, 1e-05
  %v3903 = vadd.f32 %v3901, 1e-05
  %v3904 = vrsqrt.pop %v3902
  %v3905 = vrsqrt.pop %v3903
  %v3906 = vmul.f32 %v3890, %v3904
  %v3907 = vmul.f32 %v3891, %v3905
  %v3908 = vlaneseq
  %v3909 = vshrl.u32 %v3908, 7
  %v3910 = vsub.s32 5, %v3909
  %v3911 = vrot.slane %v60, %v3910
  %v3912 = vmul.f32 %v3906, %v3911
  %v3913 = vmul.f32 %v3907, %v3911
  %v3914 = vlaneseq
  %v3915 = vshrl.u32 %v3914, 7
  %v3916 = vsub.s32 6, %v3915
  %v3917 = vrot.slane %v60, %v3916
  %v3918 = vadd.f32 %v3912, %v3917
  %v3919 = vadd.f32 %v3913, %v3917
  %v3920 = vld [vmem:[%s14] sm:$0xf]
  %v3921 = vld [vmem:[%s14 + $0x4] sm:$0xf]
  %v3922 = vld [vmem:[%s14 + $0x8] sm:$0xf]
  %v3923 = vld [vmem:[%s14 + $0xc] sm:$0xf]
  %v3924 = vpack.c.bf16 %v3919, %v3918
  %v3926 = vlaneseq
  %v3927 = vshrl.u32 %v3926, 7
  %v3928 = vsub.s32 0, %v3927
  %v3929 = vrot.slane %v86, %v3928
  %v3935 = vunpack.c.l.b16 %v3920
  %v3936 = vunpack.c.l.b16 %v3921
  %v3937 = vunpack.c.l.b16 %v3922
  %v3938 = vunpack.c.l.b16 %v3923
  %v3939 = vpack.c.b16 %v3936, %v3935
  %v3940 = vpack.c.b16 %v3938, %v3937
  %v3944 = vsel %vm125, %v3924, 0
  %3946 = vmatprep.subr.bf16.mxu0 0
  %3947 = vmatpush1.bf16.msra.mxu0 0
  %3948 = vmatprep.subr.bf16.mxu0 0
  %3949 = vmatpush1.bf16.msra.mxu0 0
  %3950 = vmatprep.subr.bf16.mxu0 0
  %3951 = vmatpush1.bf16.msra.mxu0 0
  %3952 = vmatprep.subr.bf16.mxu0 0
  %3953 = vmatpush1.bf16.msra.mxu0 0
  %3954 = vmatprep.subr.bf16.mxu0 0
  %3955 = vmatpush1.bf16.msra.mxu0 0
  %3956 = vmatprep.subr.bf16.mxu0 0
  %3957 = vmatpush1.bf16.msra.mxu0 0
  %3958 = vmatprep.subr.bf16.mxu0 0
  %3959 = vmatpush1.bf16.msra.mxu0 %v3940
  %3960 = vmatprep.subr.bf16.mxu0 0
  %3961 = vmatpush1.bf16.msra.mxu0 %v3939
  %3962 = vmatprep.subr.bf16.mxu0 0
  %3963 = vmatpush2.bf16.msra.mxu0 0
  %3964 = vmatprep.subr.bf16.mxu0 0
  %3965 = vmatpush2.bf16.msra.mxu0 0
  %3966 = vmatprep.subr.bf16.mxu0 0
  %3967 = vmatpush2.bf16.msra.mxu0 0
  %3968 = vmatprep.subr.bf16.mxu0 0
  %3969 = vmatpush2.bf16.msra.mxu0 0
  %3970 = vmatprep.subr.bf16.mxu0 0
  %3971 = vmatpush2.bf16.msra.mxu0 0
  %3972 = vmatprep.subr.bf16.mxu0 0
  %3973 = vmatpush2.bf16.msra.mxu0 0
  %3974 = vmatprep.subr.bf16.mxu0 0
  %3975 = vmatpush2.bf16.msra.mxu0 0
  %3976 = vmatprep.subr.bf16.mxu0 0
  %3977 = vmatpush2.bf16.msra.mxu0 0
  %3978 = vmatprep.mubr.bf16.mxu0 0
  %3979 = vmatmul.mubr.bf16.gmra.mxu0 %v3944
  %v3980 = vpop.f32.mrf.mxu0
  %v3981 = vadd.f32 %v3929, %v3980
  %v3982 = vpop.f32.mrf.mxu0
  %v3983 = vpop.f32.mrf.mxu0
  %v3984 = vadd.f32 %v3929, %v3983
  %v3985 = vpop.f32.mrf.mxu0
  %3986 = vdwg.mxu0
  %v3987 = vmax.f32 %v3981, 0.0
  %v3988 = vmax.f32 %v3984, 0.0
  %v3989 = vld [vmem:[%s16] sm:$0xf]
  %v3990 = vld [vmem:[%s16 + $0x4] sm:$0xf]
  %v3991 = vld [vmem:[%s16 + $0x8] sm:$0xf]
  %v3992 = vld [vmem:[%s16 + $0xc] sm:$0xf]
  %v3993 = vld [vmem:[%s16 + $0x10] sm:$0xf]
  %v3994 = vld [vmem:[%s16 + $0x14] sm:$0xf]
  %v3995 = vld [vmem:[%s16 + $0x18] sm:$0xf]
  %v3996 = vld [vmem:[%s16 + $0x1c] sm:$0xf]
  %v3997 = vpack.c.bf16 %v3988, %v3987
  %v3998 = vlaneseq
  %v3999 = vshrl.u32 %v3998, 7
  %v4000 = vsub.s32 2, %v3999
  %v4001 = vrot.slane %v60, %v4000
  %v4010 = vunpack.c.l.b16 %v3989
  %v4011 = vunpack.c.l.b16 %v3990
  %v4012 = vunpack.c.l.b16 %v3991
  %v4013 = vunpack.c.l.b16 %v3992
  %v4014 = vunpack.c.l.b16 %v3993
  %v4015 = vunpack.c.l.b16 %v3994
  %v4016 = vunpack.c.l.b16 %v3995
  %v4017 = vunpack.c.l.b16 %v3996
  %v4018 = vpack.c.b16 %v4011, %v4010
  %v4019 = vpack.c.b16 %v4013, %v4012
  %v4020 = vpack.c.b16 %v4015, %v4014
  %v4021 = vpack.c.b16 %v4017, %v4016
  %vm4026 = vcmask 523264
  %v4028 = vsel %vm4026, %v3997, 0
  %4030 = vmatprep.subr.bf16.mxu0 0
  %4031 = vmatpush1.bf16.msra.mxu0 0
  %4032 = vmatprep.subr.bf16.mxu0 0
  %4033 = vmatpush1.bf16.msra.mxu0 0
  %4034 = vmatprep.subr.bf16.mxu0 0
  %4035 = vmatpush1.bf16.msra.mxu0 0
  %4036 = vmatprep.subr.bf16.mxu0 0
  %4037 = vmatpush1.bf16.msra.mxu0 0
  %4038 = vmatprep.subr.bf16.mxu0 0
  %4039 = vmatpush1.bf16.msra.mxu0 %v4021
  %4040 = vmatprep.subr.bf16.mxu0 0
  %4041 = vmatpush1.bf16.msra.mxu0 %v4020
  %4042 = vmatprep.subr.bf16.mxu0 0
  %4043 = vmatpush1.bf16.msra.mxu0 %v4019
  %4044 = vmatprep.subr.bf16.mxu0 0
  %4045 = vmatpush1.bf16.msra.mxu0 %v4018
  %4046 = vmatprep.subr.bf16.mxu0 0
  %4047 = vmatpush2.bf16.msra.mxu0 0
  %4048 = vmatprep.subr.bf16.mxu0 0
  %4049 = vmatpush2.bf16.msra.mxu0 0
  %4050 = vmatprep.subr.bf16.mxu0 0
  %4051 = vmatpush2.bf16.msra.mxu0 0
  %4052 = vmatprep.subr.bf16.mxu0 0
  %4053 = vmatpush2.bf16.msra.mxu0 0
  %4054 = vmatprep.subr.bf16.mxu0 0
  %4055 = vmatpush2.bf16.msra.mxu0 0
  %4056 = vmatprep.subr.bf16.mxu0 0
  %4057 = vmatpush2.bf16.msra.mxu0 0
  %4058 = vmatprep.subr.bf16.mxu0 0
  %4059 = vmatpush2.bf16.msra.mxu0 0
  %4060 = vmatprep.subr.bf16.mxu0 0
  %4061 = vmatpush2.bf16.msra.mxu0 0
  %4062 = vmatprep.mubr.bf16.mxu0 0
  %4063 = vmatmul.mubr.bf16.gmra.mxu0 %v4028
  %v4064 = vpop.f32.mrf.mxu0
  %v4065 = vadd.f32 %v4001, %v4064
  %v4066 = vpop.f32.mrf.mxu0
  %v4067 = vpop.f32.mrf.mxu0
  %v4068 = vadd.f32 %v4001, %v4067
  %v4069 = vpop.f32.mrf.mxu0
  %4070 = vdwg.mxu0
  %v4071 = vadd.f32 %v3918, %v4065
  %v4072 = vadd.f32 %v3919, %v4068
  %v4073 = vsel %vm125, %v4071, 0.0
  %4074 = vadd.xlane.f32.xlu0 %v4073
  %v4075 = vpop.xlane.xlu0 %4074
  %v4076 = vsel %vm125, %v4072, 0.0
  %4077 = vadd.xlane.f32.xlu0 %v4076
  %v4078 = vpop.xlane.xlu0 %4077
  %v4079 = vmul.f32 %v4075, %v1950
  %v4080 = vmul.f32 %v4078, %v1950
  %v4081 = vsub.f32 %v4071, %v4079
  %v4082 = vsub.f32 %v4072, %v4080
  %v4083 = vmul.f32 %v4081, %v4081
  %v4084 = vmul.f32 %v4082, %v4082
  %v4085 = vsel %vm125, %v4083, 0.0
  %4086 = vadd.xlane.f32.xlu0 %v4085
  %v4087 = vpop.xlane.xlu0 %4086
  %v4088 = vsel %vm125, %v4084, 0.0
  %4089 = vadd.xlane.f32.xlu0 %v4088
  %v4090 = vpop.xlane.xlu0 %4089
  %v4091 = vmul.f32 %v4087, %v1950
  %v4092 = vmul.f32 %v4090, %v1950
  %v4093 = vadd.f32 %v4091, 1e-05
  %v4094 = vadd.f32 %v4092, 1e-05
  %v4095 = vrsqrt.pop %v4093
  %v4096 = vrsqrt.pop %v4094
  %v4097 = vmul.f32 %v4081, %v4095
  %v4098 = vmul.f32 %v4082, %v4096
  %v4099 = vlaneseq
  %v4100 = vshrl.u32 %v4099, 7
  %v4101 = vsub.s32 7, %v4100
  %v4102 = vrot.slane %v60, %v4101
  %v4103 = vmul.f32 %v4097, %v4102
  %v4104 = vmul.f32 %v4098, %v4102
  %v4105 = vlaneseq
  %v4106 = vshrl.u32 %v4105, 7
  %v4107 = vsub.s32 0, %v4106
  %v4108 = vrot.slane %v61, %v4107
  %v4109 = vadd.f32 %v4103, %v4108
  %v4110 = vadd.f32 %v4104, %v4108
  %4111 = vst.msk [vmem:[%s18] sm:$0xff] %vm125, %v4109
  %4112 = vst.msk [vmem:[%s18 + $0x8] sm:$0xff] %vm125, %v4110
  // Predicated region
  $region74: #{transformer_decoder_layer.1} parent=0 // pred_check
    _
  $region75: #{transformer_decoder_layer.1} parent=0 // pred_check_branch
    %4114 = sbr.rel (0) target = $region77
  $region76: #{transformer_decoder_layer.1} parent=0 // pred_region
    _
  $region77: #{transformer_decoder_layer.1} parent=0 // pred_fallthru
    _
  // Predicated region
  $region78: #{transformer_decoder_layer.1} parent=0 // pred_check
    _
  $region79: #{transformer_decoder_layer.1} parent=0 // pred_check_branch
    %4116 = sbr.rel (0) target = $region81
  $region80: #{transformer_decoder_layer.1} parent=0 // pred_region
    _
  $region81: #{transformer_decoder_layer.1} parent=0 // pred_fallthru
    _

</llo_original>
